<compile_context>
chip_gen: v6e
topology: v6e:2x2x1
jax: 0.10.0
libtpu: 0.0.40
codegen_flags: <defaults>
</compile_context>

<pallas_src>
import functools

import jax
import jax.numpy as jnp
from jax import lax
from jax.experimental import pallas as pl
from jax.experimental.pallas import tpu as pltpu

LN_EPS = 1e-5  # nn.LayerNorm / TransformerEncoderLayer default
LANE = 128


def _layernorm(x, g, b):
    mu = jnp.mean(x, axis=-1, keepdims=True)
    var = jnp.mean((x - mu) ** 2, axis=-1, keepdims=True)
    return (x - mu) * jax.lax.rsqrt(var + LN_EPS) * g + b


def _erf(x):
    # Abramowitz & Stegun 7.1.26 (max abs error ~1.5e-7) -- matches PyTorch's
    # exact-erf GELU to well below the correctness tolerance.
    p = 0.3275911
    a1, a2, a3, a4, a5 = 0.254829592, -0.284496736, 1.421413741, -1.453152027, 1.061405429
    ax = jnp.abs(x)
    t = 1.0 / (1.0 + p * ax)
    poly = ((((a5 * t + a4) * t + a3) * t + a2) * t + a1) * t
    y = 1.0 - poly * jnp.exp(-ax * ax)
    return jnp.where(x < 0, -y, y)


def _gelu_exact(x):
    return 0.5 * x * (1.0 + _erf(x * 0.7071067811865476))


def vit_kernel(patches_ref, w_pe_ref, pos_ref, w_qkv_ref, b_qkv_ref, w_o_ref,
               w1_ref, b1_ref, w2_ref, w_head_ref, b_head_ref, vecs_ref,
               out_ref, *, nhead, tb, n, mm_dtype):
    f32 = jnp.float32
    E = w_qkv_ref.shape[0]
    hd = E // nhead
    R = tb * n                                    # fused rows for this step

    # packed (1, E) parameters (f32)
    vecs = vecs_ref[...]
    b_pe, b_o = vecs[0:1], vecs[1:2]
    ln1_g, ln1_b = vecs[2:3], vecs[3:4]
    b2 = vecs[4:5]
    ln2_g, ln2_b = vecs[5:6], vecs[6:7]
    lnf_g, lnf_b = vecs[7:8], vecs[8:9]

    # --- patch embedding + learnable positional encoding -------------------
    x = patches_ref[...].reshape(R, patches_ref.shape[-1]).astype(mm_dtype)
    h = jnp.dot(x, w_pe_ref[...], preferred_element_type=f32) + b_pe      # f32
    h = (h.reshape(tb, n, E) + pos_ref[...]).reshape(R, E)                # broadcast add

    # --- multi-head self attention (post-norm layer, dropout = identity) ---
    qkv = jnp.dot(h.astype(mm_dtype), w_qkv_ref[...],
                  preferred_element_type=f32) + b_qkv_ref[...]            # (R, 3E) f32

    def heads(base):
        # (R, E) column block -> (nhead*tb, n, hd); batch order = (head, sample)
        return jnp.concatenate(
            [qkv[:, base + hh * hd: base + (hh + 1) * hd].reshape(tb, n, hd)
             for hh in range(nhead)], axis=0)

    q = heads(0)
    k = heads(E)
    v = heads(2 * E)

    scale = 1.0 / (hd ** 0.5)
    # one batched score matmul over all (head, sample) pairs: (BH, n, n)
    s = lax.dot_general(q.astype(mm_dtype), k.astype(mm_dtype),
                        (((2,), (2,)), ((0,), (0,))),
                        preferred_element_type=f32) * scale
    s = s - jnp.max(s, axis=-1, keepdims=True)
    p = jnp.exp(s)
    p = p * pl.reciprocal(jnp.sum(p, axis=-1, keepdims=True), approx=True)
    o = lax.dot_general(p.astype(mm_dtype), v.astype(mm_dtype),
                        (((2,), (1,)), ((0,), (0,))),
                        preferred_element_type=f32)                        # (BH, n, hd)

    # merge heads -> (R, E): 4 leading-axis slices + one lane concat
    attn = jnp.concatenate(
        [o[hh * tb:(hh + 1) * tb].reshape(R, hd) for hh in range(nhead)], axis=1)
    attn = jnp.dot(attn.astype(mm_dtype), w_o_ref[...],
                   preferred_element_type=f32) + b_o

    h = _layernorm(h + attn, ln1_g, ln1_b)

    # --- feed forward (E -> 2E -> E, exact-erf gelu) ------------------------
    ff = jnp.dot(h.astype(mm_dtype), w1_ref[...],
                 preferred_element_type=f32) + b1_ref[...]
    ff = _gelu_exact(ff)
    ff = jnp.dot(ff.astype(mm_dtype), w2_ref[...],
                 preferred_element_type=f32) + b2
    h = _layernorm(h + ff, ln2_g, ln2_b)

    # --- per-sample mean pool, final LN, classification head ---------------
    pooled = jnp.mean(h.reshape(tb, n, E), axis=1)                         # (tb, E)
    pooled = _layernorm(pooled, lnf_g, lnf_b)
    logits = jnp.dot(pooled.astype(mm_dtype), w_head_ref[...],
                     preferred_element_type=f32) + b_head_ref[...]
    out_ref[...] = logits                                                  # (tb, NC_pad)


def _patchify(x, patch_size):
    # Matches PyTorch unfold(2,p,p).unfold(3,p,p) -> view -> permute -> reshape
    B, C, H, W = x.shape
    p = patch_size
    N = (H // p) * (W // p)
    patches = x.reshape(B, C, H // p, p, W // p, p)
    patches = patches.transpose(0, 2, 4, 1, 3, 5).reshape(B, N, C * p * p)
    return patches


def vit_forward(x, params, *, patch_size, nhead, batch_tile=None,
                mm_dtype=jnp.bfloat16):
    B, C, H, W = x.shape
    patches = _patchify(x, patch_size)                           # (B, N, Pd)
    _, N, Pd = patches.shape
    E = params["w_pe"].shape[1]
    NC = params["w_head"].shape[1]
    assert E % nhead == 0

    # lane-dense padding (pure wrapper work, zero-padded -> semantics preserved)
    Pd_pad = ((Pd + LANE - 1) // LANE) * LANE
    NC_pad = ((NC + LANE - 1) // LANE) * LANE
    patches_p = jnp.pad(patches, ((0, 0), (0, 0), (0, Pd_pad - Pd)))
    w_pe_p = jnp.pad(params["w_pe"], ((0, Pd_pad - Pd), (0, 0)))
    w_head_p = jnp.pad(params["w_head"], ((0, 0), (0, NC_pad - NC)))
    b_head_p = jnp.pad(params["b_head"], ((0, 0), (0, NC_pad - NC)))

    # pack all (1, E) row-vector params into one sublane-aligned (16, E) block
    row_names = ["b_pe", "b_o", "ln1_g", "ln1_b", "b2", "ln2_g", "ln2_b",
                 "lnf_g", "lnf_b"]
    vecs = jnp.concatenate(
        [params[r] for r in row_names]
        + [jnp.zeros((16 - len(row_names), E), jnp.float32)], axis=0)

    # Batch tiling:
    #   * TB=16 (R=256 rows) fills the v6e/v7x 256-wide MXU M dim,
    #   * TB=8  (R=128 rows) is enough on v5e and keeps >=2 "parallel" grid
    #     steps so both v7x TensorCores stay busy,
    #   * otherwise fuse the whole (small) batch in one step (grid=(1,)),
    # and any TB used with grid>1 is a multiple of 8 so the output block
    # (TB, NC_pad) satisfies the (8,128) block-shape rule.
    if batch_tile is None:
        if B % 16 == 0 and B >= 32:
            batch_tile = 16
        elif B % 8 == 0 and B >= 16:
            batch_tile = 8
        else:
            batch_tile = B
    TB = batch_tile
    assert B % TB == 0, "batch_tile must divide batch size"
    assert TB == B or TB % 8 == 0, "grid>1 requires TB to be a multiple of 8"
    grid = (B // TB,)

    def full_spec(arr):
        nd = arr.ndim
        return pl.BlockSpec(arr.shape, lambda b, _nd=nd: (0,) * _nd)

    cast = lambda a: a.astype(mm_dtype)       # matmul operands only
    weights = [cast(w_pe_p), params["pos"], cast(params["w_qkv"]), params["b_qkv"],
               cast(params["w_o"]), cast(params["w1"]), params["b1"],
               cast(params["w2"]), cast(w_head_p), b_head_p, vecs]

    in_specs = [pl.BlockSpec((TB, N, Pd_pad), lambda b: (b, 0, 0))]
    in_specs += [full_spec(w) for w in weights]

    out = pl.pallas_call(
        functools.partial(vit_kernel, nhead=nhead, tb=TB, n=N, mm_dtype=mm_dtype),
        out_shape=jax.ShapeDtypeStruct((B, NC_pad), jnp.float32),
        grid=grid,
        in_specs=in_specs,
        out_specs=pl.BlockSpec((TB, NC_pad), lambda b: (b, 0)),
        compiler_params=pltpu.CompilerParams(
            dimension_semantics=("parallel",),
            vmem_limit_bytes=32 * 1024 * 1024),
    )(patches_p, *weights)
    return out[:, :NC]


def vit_reference(x, params, *, patch_size, nhead):
    """Pure-JAX reference with PyTorch-matching semantics (exact-erf GELU)."""
    patches = _patchify(x, patch_size)
    B, N, _ = patches.shape
    E = params["w_pe"].shape[1]
    hd = E // nhead

    h = patches @ params["w_pe"] + params["b_pe"] + params["pos"]
    qkv = h @ params["w_qkv"] + params["b_qkv"]
    q, k, v = qkv[..., :E], qkv[..., E:2 * E], qkv[..., 2 * E:]
    to_heads = lambda t: t.reshape(B, N, nhead, hd).transpose(0, 2, 1, 3)
    qh, kh, vh = to_heads(q), to_heads(k), to_heads(v)
    s = jnp.einsum("bhqd,bhkd->bhqk", qh, kh) / (hd ** 0.5)
    p = jax.nn.softmax(s, axis=-1)
    o = jnp.einsum("bhqk,bhkd->bhqd", p, vh).transpose(0, 2, 1, 3).reshape(B, N, E)
    attn = o @ params["w_o"] + params["b_o"]
    h = _layernorm(h + attn, params["ln1_g"], params["ln1_b"])
    ff = jax.nn.gelu(h @ params["w1"] + params["b1"], approximate=False)
    ff = ff @ params["w2"] + params["b2"]
    h = _layernorm(h + ff, params["ln2_g"], params["ln2_b"])
    pooled = jnp.mean(h, axis=1)
    pooled = _layernorm(pooled, params["lnf_g"], params["lnf_b"])
    return pooled @ params["w_head"] + params["b_head"]


def init_params(key, patch_dim, embed_dim, nhead, num_patches, num_classes):
    E = embed_dim
    s = 0.02
    ks = jax.random.split(key, 16)
    rnd = lambda k, shape: (s * jax.random.normal(k, shape)).astype(jnp.float32)
    return dict(
        w_pe=rnd(ks[0], (patch_dim, E)), b_pe=rnd(ks[1], (1, E)),
        pos=rnd(ks[2], (num_patches, E)),
        w_qkv=rnd(ks[3], (E, 3 * E)), b_qkv=rnd(ks[4], (1, 3 * E)),
        w_o=rnd(ks[5], (E, E)), b_o=rnd(ks[6], (1, E)),
        ln1_g=jnp.ones((1, E), jnp.float32), ln1_b=jnp.zeros((1, E), jnp.float32),
        w1=rnd(ks[7], (E, 2 * E)), b1=rnd(ks[8], (1, 2 * E)),
        w2=rnd(ks[9], (2 * E, E)), b2=rnd(ks[10], (1, E)),
        ln2_g=jnp.ones((1, E), jnp.float32), ln2_b=jnp.zeros((1, E), jnp.float32),
        lnf_g=jnp.ones((1, E), jnp.float32), lnf_b=jnp.zeros((1, E), jnp.float32),
        w_head=rnd(ks[11], (E, num_classes)), b_head=rnd(ks[12], (1, num_classes)),
    )


if __name__ == "__main__":
    # Small shapes consistent with the module: embed_dim=128, nhead=4,
    # patch_size=4, in_chans=3, num_classes=10; reduced image 16x16 -> 16 patches.
    B, C, H, W = 2, 3, 16, 16
    PATCH = 4
    EMBED = 128
    NHEAD = 4
    NUM_CLASSES = 10
    N_PATCHES = (H // PATCH) * (W // PATCH)
    PATCH_DIM = C * PATCH * PATCH

    key = jax.random.PRNGKey(0)
    kx, kp = jax.random.split(key)
    x = jax.random.normal(kx, (B, C, H, W), jnp.float32)
    params = init_params(kp, PATCH_DIM, EMBED, NHEAD, N_PATCHES, NUM_CLASSES)

    ref = vit_reference(x, params, patch_size=PATCH, nhead=NHEAD)

    # Exact-semantics path (f32 matmul operands): tight correctness check.
    out_f32 = jax.block_until_ready(
        vit_forward(x, params, patch_size=PATCH, nhead=NHEAD,
                    mm_dtype=jnp.float32))
    assert out_f32.shape == (B, NUM_CLASSES)
    assert jnp.allclose(out_f32, ref, atol=1e-3, rtol=1e-3), "f32 path mismatch"

    # Fast path (bf16 MXU operands, f32 accumulation): bf16-quantization bound.
    out = jax.block_until_ready(
        vit_forward(x, params, patch_size=PATCH, nhead=NHEAD))
    assert out.shape == (B, NUM_CLASSES)
    assert jnp.allclose(out, ref, atol=2e-2, rtol=2e-2), "bf16 path mismatch"

    print("KERNEL_OK")
</pallas_src>

<mosaic_0001>
module attributes {stable_mosaic.version = 11 : i64} {
  func.func @vit_kernel(%arg0: i32, %arg1: memref<2x16x128xf32, #tpu.memory_space<vmem>>, %arg2: memref<128x128xf32, #tpu.memory_space<vmem>>, %arg3: memref<16x128xf32, #tpu.memory_space<vmem>>, %arg4: memref<128x384xf32, #tpu.memory_space<vmem>>, %arg5: memref<1x384xf32, #tpu.memory_space<vmem>>, %arg6: memref<128x128xf32, #tpu.memory_space<vmem>>, %arg7: memref<128x256xf32, #tpu.memory_space<vmem>>, %arg8: memref<1x256xf32, #tpu.memory_space<vmem>>, %arg9: memref<256x128xf32, #tpu.memory_space<vmem>>, %arg10: memref<128x128xf32, #tpu.memory_space<vmem>>, %arg11: memref<1x128xf32, #tpu.memory_space<vmem>>, %arg12: memref<16x128xf32, #tpu.memory_space<vmem>>, %arg13: memref<2x128xf32, #tpu.memory_space<vmem>>) attributes {dimension_semantics = [#tpu.dimension_semantics<parallel>], iteration_bounds = array<i64: 1>, scalar_prefetch = 0 : i64, scratch_operands = 0 : i64, tpu.core_type = #tpu.core_type<tc>, window_params = [{transform_indices = @transform_0, window_bounds = array<i64: 2, 16, 128>}, {pipeline_mode = #tpu.pipeline_mode<synchronous>, transform_indices = @transform_1, window_bounds = array<i64: 128, 128>}, {pipeline_mode = #tpu.pipeline_mode<synchronous>, transform_indices = @transform_2, window_bounds = array<i64: 16, 128>}, {pipeline_mode = #tpu.pipeline_mode<synchronous>, transform_indices = @transform_3, window_bounds = array<i64: 128, 384>}, {pipeline_mode = #tpu.pipeline_mode<synchronous>, transform_indices = @transform_4, window_bounds = array<i64: 1, 384>}, {pipeline_mode = #tpu.pipeline_mode<synchronous>, transform_indices = @transform_5, window_bounds = array<i64: 128, 128>}, {pipeline_mode = #tpu.pipeline_mode<synchronous>, transform_indices = @transform_6, window_bounds = array<i64: 128, 256>}, {pipeline_mode = #tpu.pipeline_mode<synchronous>, transform_indices = @transform_7, window_bounds = array<i64: 1, 256>}, {pipeline_mode = #tpu.pipeline_mode<synchronous>, transform_indices = @transform_8, window_bounds = array<i64: 256, 128>}, {pipeline_mode = #tpu.pipeline_mode<synchronous>, transform_indices = @transform_9, window_bounds = array<i64: 128, 128>}, {pipeline_mode = #tpu.pipeline_mode<synchronous>, transform_indices = @transform_10, window_bounds = array<i64: 1, 128>}, {pipeline_mode = #tpu.pipeline_mode<synchronous>, transform_indices = @transform_11, window_bounds = array<i64: 16, 128>}, {transform_indices = @transform_12, window_bounds = array<i64: 2, 128>}]} {
    %c0 = arith.constant 0 : index
    %c0_0 = arith.constant 0 : index
    %0 = vector.load %arg12[%c0, %c0_0] : memref<16x128xf32, #tpu.memory_space<vmem>>, vector<16x128xf32>
    %1 = vector.extract_strided_slice %0 {offsets = [0, 0], sizes = [1, 128], strides = [1, 1]} : vector<16x128xf32> to vector<1x128xf32>
    %2 = vector.extract_strided_slice %0 {offsets = [1, 0], sizes = [1, 128], strides = [1, 1]} : vector<16x128xf32> to vector<1x128xf32>
    %3 = vector.extract_strided_slice %0 {offsets = [2, 0], sizes = [1, 128], strides = [1, 1]} : vector<16x128xf32> to vector<1x128xf32>
    %4 = vector.extract_strided_slice %0 {offsets = [3, 0], sizes = [1, 128], strides = [1, 1]} : vector<16x128xf32> to vector<1x128xf32>
    %5 = vector.extract_strided_slice %0 {offsets = [4, 0], sizes = [1, 128], strides = [1, 1]} : vector<16x128xf32> to vector<1x128xf32>
    %6 = vector.extract_strided_slice %0 {offsets = [5, 0], sizes = [1, 128], strides = [1, 1]} : vector<16x128xf32> to vector<1x128xf32>
    %7 = vector.extract_strided_slice %0 {offsets = [6, 0], sizes = [1, 128], strides = [1, 1]} : vector<16x128xf32> to vector<1x128xf32>
    %8 = vector.extract_strided_slice %0 {offsets = [7, 0], sizes = [1, 128], strides = [1, 1]} : vector<16x128xf32> to vector<1x128xf32>
    %9 = vector.extract_strided_slice %0 {offsets = [8, 0], sizes = [1, 128], strides = [1, 1]} : vector<16x128xf32> to vector<1x128xf32>
    %c0_1 = arith.constant 0 : index
    %c0_2 = arith.constant 0 : index
    %c0_3 = arith.constant 0 : index
    %10 = vector.load %arg1[%c0_1, %c0_2, %c0_3] : memref<2x16x128xf32, #tpu.memory_space<vmem>>, vector<2x16x128xf32>
    %11 = vector.shape_cast %10 : vector<2x16x128xf32> to vector<32x128xf32>
    %c0_4 = arith.constant 0 : index
    %c0_5 = arith.constant 0 : index
    %12 = vector.load %arg2[%c0_4, %c0_5] : memref<128x128xf32, #tpu.memory_space<vmem>>, vector<128x128xf32>
    %cst = arith.constant dense<0.000000e+00> : vector<32x128xf32>
    %13 = tpu.matmul %11, %12, %cst {dimension_numbers = #tpu.dot_dimension_numbers<[1], [0], [0], [1], [0, 0, 1, 1], [], []>} : vector<32x128xf32>, vector<128x128xf32>, vector<32x128xf32> -> vector<32x128xf32>
    %14 = vector.broadcast %1 : vector<1x128xf32> to vector<32x128xf32>
    %15 = arith.addf %13, %14 : vector<32x128xf32>
    %16 = vector.shape_cast %15 : vector<32x128xf32> to vector<2x16x128xf32>
    %c0_6 = arith.constant 0 : index
    %c0_7 = arith.constant 0 : index
    %17 = vector.load %arg3[%c0_6, %c0_7] : memref<16x128xf32, #tpu.memory_space<vmem>>, vector<16x128xf32>
    %18 = vector.shape_cast %17 : vector<16x128xf32> to vector<1x16x128xf32>
    %19 = vector.broadcast %18 : vector<1x16x128xf32> to vector<2x16x128xf32>
    %20 = arith.addf %16, %19 : vector<2x16x128xf32>
    %21 = vector.shape_cast %20 : vector<2x16x128xf32> to vector<32x128xf32>
    %c0_8 = arith.constant 0 : index
    %c0_9 = arith.constant 0 : index
    %22 = vector.load %arg4[%c0_8, %c0_9] : memref<128x384xf32, #tpu.memory_space<vmem>>, vector<128x384xf32>
    %cst_10 = arith.constant dense<0.000000e+00> : vector<32x384xf32>
    %23 = tpu.matmul %21, %22, %cst_10 {dimension_numbers = #tpu.dot_dimension_numbers<[1], [0], [0], [1], [0, 0, 1, 1], [], []>} : vector<32x128xf32>, vector<128x384xf32>, vector<32x384xf32> -> vector<32x384xf32>
    %c0_11 = arith.constant 0 : index
    %c0_12 = arith.constant 0 : index
    %24 = vector.load %arg5[%c0_11, %c0_12] : memref<1x384xf32, #tpu.memory_space<vmem>>, vector<1x384xf32>
    %25 = vector.broadcast %24 : vector<1x384xf32> to vector<32x384xf32>
    %26 = arith.addf %23, %25 : vector<32x384xf32>
    %27 = vector.extract_strided_slice %26 {offsets = [0, 0], sizes = [32, 32], strides = [1, 1]} : vector<32x384xf32> to vector<32x32xf32>
    %28 = vector.shape_cast %27 : vector<32x32xf32> to vector<2x16x32xf32>
    %29 = vector.extract_strided_slice %26 {offsets = [0, 32], sizes = [32, 32], strides = [1, 1]} : vector<32x384xf32> to vector<32x32xf32>
    %30 = vector.shape_cast %29 : vector<32x32xf32> to vector<2x16x32xf32>
    %31 = vector.extract_strided_slice %26 {offsets = [0, 64], sizes = [32, 32], strides = [1, 1]} : vector<32x384xf32> to vector<32x32xf32>
    %32 = vector.shape_cast %31 : vector<32x32xf32> to vector<2x16x32xf32>
    %33 = vector.extract_strided_slice %26 {offsets = [0, 96], sizes = [32, 32], strides = [1, 1]} : vector<32x384xf32> to vector<32x32xf32>
    %34 = vector.shape_cast %33 : vector<32x32xf32> to vector<2x16x32xf32>
    %35 = tpu.concatenate %28, %30, %32, %34 in 0 : vector<2x16x32xf32>, vector<2x16x32xf32>, vector<2x16x32xf32>, vector<2x16x32xf32> -> vector<8x16x32xf32>
    %36 = vector.extract_strided_slice %26 {offsets = [0, 128], sizes = [32, 32], strides = [1, 1]} : vector<32x384xf32> to vector<32x32xf32>
    %37 = vector.shape_cast %36 : vector<32x32xf32> to vector<2x16x32xf32>
    %38 = vector.extract_strided_slice %26 {offsets = [0, 160], sizes = [32, 32], strides = [1, 1]} : vector<32x384xf32> to vector<32x32xf32>
    %39 = vector.shape_cast %38 : vector<32x32xf32> to vector<2x16x32xf32>
    %40 = vector.extract_strided_slice %26 {offsets = [0, 192], sizes = [32, 32], strides = [1, 1]} : vector<32x384xf32> to vector<32x32xf32>
    %41 = vector.shape_cast %40 : vector<32x32xf32> to vector<2x16x32xf32>
    %42 = vector.extract_strided_slice %26 {offsets = [0, 224], sizes = [32, 32], strides = [1, 1]} : vector<32x384xf32> to vector<32x32xf32>
    %43 = vector.shape_cast %42 : vector<32x32xf32> to vector<2x16x32xf32>
    %44 = tpu.concatenate %37, %39, %41, %43 in 0 : vector<2x16x32xf32>, vector<2x16x32xf32>, vector<2x16x32xf32>, vector<2x16x32xf32> -> vector<8x16x32xf32>
    %45 = vector.extract_strided_slice %26 {offsets = [0, 256], sizes = [32, 32], strides = [1, 1]} : vector<32x384xf32> to vector<32x32xf32>
    %46 = vector.shape_cast %45 : vector<32x32xf32> to vector<2x16x32xf32>
    %47 = vector.extract_strided_slice %26 {offsets = [0, 288], sizes = [32, 32], strides = [1, 1]} : vector<32x384xf32> to vector<32x32xf32>
    %48 = vector.shape_cast %47 : vector<32x32xf32> to vector<2x16x32xf32>
    %49 = vector.extract_strided_slice %26 {offsets = [0, 320], sizes = [32, 32], strides = [1, 1]} : vector<32x384xf32> to vector<32x32xf32>
    %50 = vector.shape_cast %49 : vector<32x32xf32> to vector<2x16x32xf32>
    %51 = vector.extract_strided_slice %26 {offsets = [0, 352], sizes = [32, 32], strides = [1, 1]} : vector<32x384xf32> to vector<32x32xf32>
    %52 = vector.shape_cast %51 : vector<32x32xf32> to vector<2x16x32xf32>
    %53 = tpu.concatenate %46, %48, %50, %52 in 0 : vector<2x16x32xf32>, vector<2x16x32xf32>, vector<2x16x32xf32>, vector<2x16x32xf32> -> vector<8x16x32xf32>
    %cst_13 = arith.constant dense<0.000000e+00> : vector<8x16x16xf32>
    %54 = tpu.matmul %35, %44, %cst_13 {dimension_numbers = #tpu.dot_dimension_numbers<[2], [2], [1], [1], [0, 0, 0, 1, 1, 1], [0], [0]>} : vector<8x16x32xf32>, vector<8x16x32xf32>, vector<8x16x16xf32> -> vector<8x16x16xf32>
    %cst_14 = arith.constant 0.176776692 : f32
    %55 = vector.broadcast %cst_14 : f32 to vector<8x16x16xf32>
    %56 = arith.mulf %54, %55 : vector<8x16x16xf32>
    %cst_15 = arith.constant dense<0xFF800000> : vector<8x16xf32>
    %57 = vector.multi_reduction <maximumf>, %56, %cst_15 [2] : vector<8x16x16xf32> to vector<8x16xf32>
    %58 = vector.shape_cast %57 : vector<8x16xf32> to vector<8x16x1xf32>
    %59 = vector.broadcast %58 : vector<8x16x1xf32> to vector<8x16x16xf32>
    %60 = arith.subf %56, %59 : vector<8x16x16xf32>
    %61 = math.exp %60 : vector<8x16x16xf32>
    %cst_16 = arith.constant dense<0.000000e+00> : vector<8x16xf32>
    %62 = vector.multi_reduction <add>, %61, %cst_16 [2] : vector<8x16x16xf32> to vector<8x16xf32>
    %63 = vector.shape_cast %62 : vector<8x16xf32> to vector<8x16x1xf32>
    %64 = tpu.reciprocal %63 {approx = true} : vector<8x16x1xf32> -> vector<8x16x1xf32>
    %65 = vector.broadcast %64 : vector<8x16x1xf32> to vector<8x16x16xf32>
    %66 = arith.mulf %61, %65 : vector<8x16x16xf32>
    %cst_17 = arith.constant dense<0.000000e+00> : vector<8x16x32xf32>
    %67 = tpu.matmul %66, %53, %cst_17 {dimension_numbers = #tpu.dot_dimension_numbers<[2], [1], [1], [2], [0, 0, 0, 1, 1, 2], [0], [0]>} : vector<8x16x16xf32>, vector<8x16x32xf32>, vector<8x16x32xf32> -> vector<8x16x32xf32>
    %68 = vector.extract_strided_slice %67 {offsets = [0, 0, 0], sizes = [2, 16, 32], strides = [1, 1, 1]} : vector<8x16x32xf32> to vector<2x16x32xf32>
    %69 = vector.shape_cast %68 : vector<2x16x32xf32> to vector<32x32xf32>
    %70 = vector.extract_strided_slice %67 {offsets = [2, 0, 0], sizes = [2, 16, 32], strides = [1, 1, 1]} : vector<8x16x32xf32> to vector<2x16x32xf32>
    %71 = vector.shape_cast %70 : vector<2x16x32xf32> to vector<32x32xf32>
    %72 = vector.extract_strided_slice %67 {offsets = [4, 0, 0], sizes = [2, 16, 32], strides = [1, 1, 1]} : vector<8x16x32xf32> to vector<2x16x32xf32>
    %73 = vector.shape_cast %72 : vector<2x16x32xf32> to vector<32x32xf32>
    %74 = vector.extract_strided_slice %67 {offsets = [6, 0, 0], sizes = [2, 16, 32], strides = [1, 1, 1]} : vector<8x16x32xf32> to vector<2x16x32xf32>
    %75 = vector.shape_cast %74 : vector<2x16x32xf32> to vector<32x32xf32>
    %76 = tpu.concatenate %69, %71, %73, %75 in 1 : vector<32x32xf32>, vector<32x32xf32>, vector<32x32xf32>, vector<32x32xf32> -> vector<32x128xf32>
    %c0_18 = arith.constant 0 : index
    %c0_19 = arith.constant 0 : index
    %77 = vector.load %arg6[%c0_18, %c0_19] : memref<128x128xf32, #tpu.memory_space<vmem>>, vector<128x128xf32>
    %cst_20 = arith.constant dense<0.000000e+00> : vector<32x128xf32>
    %78 = tpu.matmul %76, %77, %cst_20 {dimension_numbers = #tpu.dot_dimension_numbers<[1], [0], [0], [1], [0, 0, 1, 1], [], []>} : vector<32x128xf32>, vector<128x128xf32>, vector<32x128xf32> -> vector<32x128xf32>
    %79 = vector.broadcast %2 : vector<1x128xf32> to vector<32x128xf32>
    %80 = arith.addf %78, %79 : vector<32x128xf32>
    %81 = arith.addf %21, %80 : vector<32x128xf32>
    %cst_21 = arith.constant dense<0.000000e+00> : vector<32xf32>
    %82 = vector.multi_reduction <add>, %81, %cst_21 [1] : vector<32x128xf32> to vector<32xf32>
    %83 = vector.shape_cast %82 : vector<32xf32> to vector<32x1xf32>
    %cst_22 = arith.constant 1.280000e+02 : f32
    %84 = vector.broadcast %cst_22 : f32 to vector<32x1xf32>
    %85 = arith.divf %83, %84 : vector<32x1xf32>
    %86 = vector.broadcast %85 : vector<32x1xf32> to vector<32x128xf32>
    %87 = arith.subf %81, %86 : vector<32x128xf32>
    %88 = arith.mulf %87, %87 : vector<32x128xf32>
    %cst_23 = arith.constant dense<0.000000e+00> : vector<32xf32>
    %89 = vector.multi_reduction <add>, %88, %cst_23 [1] : vector<32x128xf32> to vector<32xf32>
    %90 = vector.shape_cast %89 : vector<32xf32> to vector<32x1xf32>
    %cst_24 = arith.constant 1.280000e+02 : f32
    %91 = vector.broadcast %cst_24 : f32 to vector<32x1xf32>
    %92 = arith.divf %90, %91 : vector<32x1xf32>
    %93 = vector.broadcast %85 : vector<32x1xf32> to vector<32x128xf32>
    %94 = arith.subf %81, %93 : vector<32x128xf32>
    %cst_25 = arith.constant 9.99999974E-6 : f32
    %95 = vector.broadcast %cst_25 : f32 to vector<32x1xf32>
    %96 = arith.addf %92, %95 : vector<32x1xf32>
    %97 = math.rsqrt %96 : vector<32x1xf32>
    %98 = vector.broadcast %97 : vector<32x1xf32> to vector<32x128xf32>
    %99 = arith.mulf %94, %98 : vector<32x128xf32>
    %100 = vector.broadcast %3 : vector<1x128xf32> to vector<32x128xf32>
    %101 = arith.mulf %99, %100 : vector<32x128xf32>
    %102 = vector.broadcast %4 : vector<1x128xf32> to vector<32x128xf32>
    %103 = arith.addf %101, %102 : vector<32x128xf32>
    %c0_26 = arith.constant 0 : index
    %c0_27 = arith.constant 0 : index
    %104 = vector.load %arg7[%c0_26, %c0_27] : memref<128x256xf32, #tpu.memory_space<vmem>>, vector<128x256xf32>
    %cst_28 = arith.constant dense<0.000000e+00> : vector<32x256xf32>
    %105 = tpu.matmul %103, %104, %cst_28 {dimension_numbers = #tpu.dot_dimension_numbers<[1], [0], [0], [1], [0, 0, 1, 1], [], []>} : vector<32x128xf32>, vector<128x256xf32>, vector<32x256xf32> -> vector<32x256xf32>
    %c0_29 = arith.constant 0 : index
    %c0_30 = arith.constant 0 : index
    %106 = vector.load %arg8[%c0_29, %c0_30] : memref<1x256xf32, #tpu.memory_space<vmem>>, vector<1x256xf32>
    %107 = vector.broadcast %106 : vector<1x256xf32> to vector<32x256xf32>
    %108 = arith.addf %105, %107 : vector<32x256xf32>
    %cst_31 = arith.constant 5.000000e-01 : f32
    %109 = vector.broadcast %cst_31 : f32 to vector<32x256xf32>
    %110 = arith.mulf %109, %108 : vector<32x256xf32>
    %cst_32 = arith.constant 0.707106769 : f32
    %111 = vector.broadcast %cst_32 : f32 to vector<32x256xf32>
    %112 = arith.mulf %108, %111 : vector<32x256xf32>
    %113 = math.absf %112 : vector<32x256xf32>
    %cst_33 = arith.constant 0.327591091 : f32
    %114 = vector.broadcast %cst_33 : f32 to vector<32x256xf32>
    %115 = arith.mulf %114, %113 : vector<32x256xf32>
    %cst_34 = arith.constant 1.000000e+00 : f32
    %116 = vector.broadcast %cst_34 : f32 to vector<32x256xf32>
    %117 = arith.addf %116, %115 : vector<32x256xf32>
    %cst_35 = arith.constant 1.000000e+00 : f32
    %118 = vector.broadcast %cst_35 : f32 to vector<32x256xf32>
    %119 = arith.divf %118, %117 : vector<32x256xf32>
    %cst_36 = arith.constant 1.06140542 : f32
    %120 = vector.broadcast %cst_36 : f32 to vector<32x256xf32>
    %121 = arith.mulf %120, %119 : vector<32x256xf32>
    %cst_37 = arith.constant -1.45315206 : f32
    %122 = vector.broadcast %cst_37 : f32 to vector<32x256xf32>
    %123 = arith.addf %121, %122 : vector<32x256xf32>
    %124 = arith.mulf %123, %119 : vector<32x256xf32>
    %cst_38 = arith.constant 1.42141378 : f32
    %125 = vector.broadcast %cst_38 : f32 to vector<32x256xf32>
    %126 = arith.addf %124, %125 : vector<32x256xf32>
    %127 = arith.mulf %126, %119 : vector<32x256xf32>
    %cst_39 = arith.constant -0.284496725 : f32
    %128 = vector.broadcast %cst_39 : f32 to vector<32x256xf32>
    %129 = arith.addf %127, %128 : vector<32x256xf32>
    %130 = arith.mulf %129, %119 : vector<32x256xf32>
    %cst_40 = arith.constant 0.254829586 : f32
    %131 = vector.broadcast %cst_40 : f32 to vector<32x256xf32>
    %132 = arith.addf %130, %131 : vector<32x256xf32>
    %133 = arith.mulf %132, %119 : vector<32x256xf32>
    %cst_41 = arith.constant 0.000000e+00 : f32
    %134 = vector.broadcast %cst_41 : f32 to vector<32x256xf32>
    %135 = arith.subf %134, %113 : vector<32x256xf32>
    %136 = arith.mulf %135, %113 : vector<32x256xf32>
    %137 = math.exp %136 : vector<32x256xf32>
    %138 = arith.mulf %133, %137 : vector<32x256xf32>
    %cst_42 = arith.constant 1.000000e+00 : f32
    %139 = vector.broadcast %cst_42 : f32 to vector<32x256xf32>
    %140 = arith.subf %139, %138 : vector<32x256xf32>
    %cst_43 = arith.constant 0.000000e+00 : f32
    %141 = vector.broadcast %cst_43 : f32 to vector<32x256xf32>
    %142 = arith.cmpf olt, %112, %141 : vector<32x256xf32>
    %cst_44 = arith.constant 0.000000e+00 : f32
    %143 = vector.broadcast %cst_44 : f32 to vector<32x256xf32>
    %144 = arith.subf %143, %140 : vector<32x256xf32>
    %145 = arith.select %142, %144, %140 : vector<32x256xi1>, vector<32x256xf32>
    %cst_45 = arith.constant 1.000000e+00 : f32
    %146 = vector.broadcast %cst_45 : f32 to vector<32x256xf32>
    %147 = arith.addf %146, %145 : vector<32x256xf32>
    %148 = arith.mulf %110, %147 : vector<32x256xf32>
    %c0_46 = arith.constant 0 : index
    %c0_47 = arith.constant 0 : index
    %149 = vector.load %arg9[%c0_46, %c0_47] : memref<256x128xf32, #tpu.memory_space<vmem>>, vector<256x128xf32>
    %cst_48 = arith.constant dense<0.000000e+00> : vector<32x128xf32>
    %150 = tpu.matmul %148, %149, %cst_48 {dimension_numbers = #tpu.dot_dimension_numbers<[1], [0], [0], [1], [0, 0, 1, 1], [], []>} : vector<32x256xf32>, vector<256x128xf32>, vector<32x128xf32> -> vector<32x128xf32>
    %151 = vector.broadcast %5 : vector<1x128xf32> to vector<32x128xf32>
    %152 = arith.addf %150, %151 : vector<32x128xf32>
    %153 = arith.addf %103, %152 : vector<32x128xf32>
    %cst_49 = arith.constant dense<0.000000e+00> : vector<32xf32>
    %154 = vector.multi_reduction <add>, %153, %cst_49 [1] : vector<32x128xf32> to vector<32xf32>
    %155 = vector.shape_cast %154 : vector<32xf32> to vector<32x1xf32>
    %cst_50 = arith.constant 1.280000e+02 : f32
    %156 = vector.broadcast %cst_50 : f32 to vector<32x1xf32>
    %157 = arith.divf %155, %156 : vector<32x1xf32>
    %158 = vector.broadcast %157 : vector<32x1xf32> to vector<32x128xf32>
    %159 = arith.subf %153, %158 : vector<32x128xf32>
    %160 = arith.mulf %159, %159 : vector<32x128xf32>
    %cst_51 = arith.constant dense<0.000000e+00> : vector<32xf32>
    %161 = vector.multi_reduction <add>, %160, %cst_51 [1] : vector<32x128xf32> to vector<32xf32>
    %162 = vector.shape_cast %161 : vector<32xf32> to vector<32x1xf32>
    %cst_52 = arith.constant 1.280000e+02 : f32
    %163 = vector.broadcast %cst_52 : f32 to vector<32x1xf32>
    %164 = arith.divf %162, %163 : vector<32x1xf32>
    %165 = vector.broadcast %157 : vector<32x1xf32> to vector<32x128xf32>
    %166 = arith.subf %153, %165 : vector<32x128xf32>
    %cst_53 = arith.constant 9.99999974E-6 : f32
    %167 = vector.broadcast %cst_53 : f32 to vector<32x1xf32>
    %168 = arith.addf %164, %167 : vector<32x1xf32>
    %169 = math.rsqrt %168 : vector<32x1xf32>
    %170 = vector.broadcast %169 : vector<32x1xf32> to vector<32x128xf32>
    %171 = arith.mulf %166, %170 : vector<32x128xf32>
    %172 = vector.broadcast %6 : vector<1x128xf32> to vector<32x128xf32>
    %173 = arith.mulf %171, %172 : vector<32x128xf32>
    %174 = vector.broadcast %7 : vector<1x128xf32> to vector<32x128xf32>
    %175 = arith.addf %173, %174 : vector<32x128xf32>
    %176 = vector.shape_cast %175 : vector<32x128xf32> to vector<2x16x128xf32>
    %cst_54 = arith.constant dense<0.000000e+00> : vector<2x128xf32>
    %177 = vector.multi_reduction <add>, %176, %cst_54 [1] : vector<2x16x128xf32> to vector<2x128xf32>
    %cst_55 = arith.constant 1.600000e+01 : f32
    %178 = vector.broadcast %cst_55 : f32 to vector<2x128xf32>
    %179 = arith.divf %177, %178 : vector<2x128xf32>
    %cst_56 = arith.constant dense<0.000000e+00> : vector<2xf32>
    %180 = vector.multi_reduction <add>, %179, %cst_56 [1] : vector<2x128xf32> to vector<2xf32>
    %181 = vector.shape_cast %180 : vector<2xf32> to vector<2x1xf32>
    %cst_57 = arith.constant 1.280000e+02 : f32
    %182 = vector.broadcast %cst_57 : f32 to vector<2x1xf32>
    %183 = arith.divf %181, %182 : vector<2x1xf32>
    %184 = vector.broadcast %183 : vector<2x1xf32> to vector<2x128xf32>
    %185 = arith.subf %179, %184 : vector<2x128xf32>
    %186 = arith.mulf %185, %185 : vector<2x128xf32>
    %cst_58 = arith.constant dense<0.000000e+00> : vector<2xf32>
    %187 = vector.multi_reduction <add>, %186, %cst_58 [1] : vector<2x128xf32> to vector<2xf32>
    %188 = vector.shape_cast %187 : vector<2xf32> to vector<2x1xf32>
    %cst_59 = arith.constant 1.280000e+02 : f32
    %189 = vector.broadcast %cst_59 : f32 to vector<2x1xf32>
    %190 = arith.divf %188, %189 : vector<2x1xf32>
    %191 = vector.broadcast %183 : vector<2x1xf32> to vector<2x128xf32>
    %192 = arith.subf %179, %191 : vector<2x128xf32>
    %cst_60 = arith.constant 9.99999974E-6 : f32
    %193 = vector.broadcast %cst_60 : f32 to vector<2x1xf32>
    %194 = arith.addf %190, %193 : vector<2x1xf32>
    %195 = math.rsqrt %194 : vector<2x1xf32>
    %196 = vector.broadcast %195 : vector<2x1xf32> to vector<2x128xf32>
    %197 = arith.mulf %192, %196 : vector<2x128xf32>
    %198 = vector.broadcast %8 : vector<1x128xf32> to vector<2x128xf32>
    %199 = arith.mulf %197, %198 : vector<2x128xf32>
    %200 = vector.broadcast %9 : vector<1x128xf32> to vector<2x128xf32>
    %201 = arith.addf %199, %200 : vector<2x128xf32>
    %c0_61 = arith.constant 0 : index
    %c0_62 = arith.constant 0 : index
    %202 = vector.load %arg10[%c0_61, %c0_62] : memref<128x128xf32, #tpu.memory_space<vmem>>, vector<128x128xf32>
    %cst_63 = arith.constant dense<0.000000e+00> : vector<2x128xf32>
    %203 = tpu.matmul %201, %202, %cst_63 {dimension_numbers = #tpu.dot_dimension_numbers<[1], [0], [0], [1], [0, 0, 1, 1], [], []>} : vector<2x128xf32>, vector<128x128xf32>, vector<2x128xf32> -> vector<2x128xf32>
    %c0_64 = arith.constant 0 : index
    %c0_65 = arith.constant 0 : index
    %204 = vector.load %arg11[%c0_64, %c0_65] : memref<1x128xf32, #tpu.memory_space<vmem>>, vector<1x128xf32>
    %205 = vector.broadcast %204 : vector<1x128xf32> to vector<2x128xf32>
    %206 = arith.addf %203, %205 : vector<2x128xf32>
    %c0_66 = arith.constant 0 : index
    %c0_67 = arith.constant 0 : index
    %207 = vector.load %arg13[%c0_66, %c0_67] : memref<2x128xf32, #tpu.memory_space<vmem>>, vector<2x128xf32>
    tpu.vector_store %arg13[%c0_66, %c0_67], %206 {strides = array<i32>} : memref<2x128xf32, #tpu.memory_space<vmem>>, vector<2x128xf32>,
    return
  }
  func.func @transform_0(%arg0: i32) -> (i32, i32, i32) {
    %c0_i32 = arith.constant 0 : i32
    %c0_i32_0 = arith.constant 0 : i32
    %c0_i32_1 = arith.constant 0 : i32
    return %arg0, %c0_i32, %c0_i32_0 : i32, i32, i32
  }
  func.func @transform_1(%arg0: i32) -> (i32, i32) {
    %c0_i32 = arith.constant 0 : i32
    %c0_i32_0 = arith.constant 0 : i32
    %c0_i32_1 = arith.constant 0 : i32
    return %c0_i32, %c0_i32_0 : i32, i32
  }
  func.func @transform_2(%arg0: i32) -> (i32, i32) {
    %c0_i32 = arith.constant 0 : i32
    %c0_i32_0 = arith.constant 0 : i32
    %c0_i32_1 = arith.constant 0 : i32
    return %c0_i32, %c0_i32_0 : i32, i32
  }
  func.func @transform_3(%arg0: i32) -> (i32, i32) {
    %c0_i32 = arith.constant 0 : i32
    %c0_i32_0 = arith.constant 0 : i32
    %c0_i32_1 = arith.constant 0 : i32
    return %c0_i32, %c0_i32_0 : i32, i32
  }
  func.func @transform_4(%arg0: i32) -> (i32, i32) {
    %c0_i32 = arith.constant 0 : i32
    %c0_i32_0 = arith.constant 0 : i32
    %c0_i32_1 = arith.constant 0 : i32
    return %c0_i32, %c0_i32_0 : i32, i32
  }
  func.func @transform_5(%arg0: i32) -> (i32, i32) {
    %c0_i32 = arith.constant 0 : i32
    %c0_i32_0 = arith.constant 0 : i32
    %c0_i32_1 = arith.constant 0 : i32
    return %c0_i32, %c0_i32_0 : i32, i32
  }
  func.func @transform_6(%arg0: i32) -> (i32, i32) {
    %c0_i32 = arith.constant 0 : i32
    %c0_i32_0 = arith.constant 0 : i32
    %c0_i32_1 = arith.constant 0 : i32
    return %c0_i32, %c0_i32_0 : i32, i32
  }
  func.func @transform_7(%arg0: i32) -> (i32, i32) {
    %c0_i32 = arith.constant 0 : i32
    %c0_i32_0 = arith.constant 0 : i32
    %c0_i32_1 = arith.constant 0 : i32
    return %c0_i32, %c0_i32_0 : i32, i32
  }
  func.func @transform_8(%arg0: i32) -> (i32, i32) {
    %c0_i32 = arith.constant 0 : i32
    %c0_i32_0 = arith.constant 0 : i32
    %c0_i32_1 = arith.constant 0 : i32
    return %c0_i32, %c0_i32_0 : i32, i32
  }
  func.func @transform_9(%arg0: i32) -> (i32, i32) {
    %c0_i32 = arith.constant 0 : i32
    %c0_i32_0 = arith.constant 0 : i32
    %c0_i32_1 = arith.constant 0 : i32
    return %c0_i32, %c0_i32_0 : i32, i32
  }
  func.func @transform_10(%arg0: i32) -> (i32, i32) {
    %c0_i32 = arith.constant 0 : i32
    %c0_i32_0 = arith.constant 0 : i32
    %c0_i32_1 = arith.constant 0 : i32
    return %c0_i32, %c0_i32_0 : i32, i32
  }
  func.func @transform_11(%arg0: i32) -> (i32, i32) {
    %c0_i32 = arith.constant 0 : i32
    %c0_i32_0 = arith.constant 0 : i32
    %c0_i32_1 = arith.constant 0 : i32
    return %c0_i32, %c0_i32_0 : i32, i32
  }
  func.func @transform_12(%arg0: i32) -> (i32, i32) {
    %c0_i32 = arith.constant 0 : i32
    %c0_i32_0 = arith.constant 0 : i32
    return %arg0, %c0_i32 : i32, i32
  }
}

</mosaic_0001>

<llo_original>
// kernel: tpu_custom_call.1
$region0: #{tpu_custom_call.1}
  #allocation0 [shape = 'u32[]', space=smem, size = 0x4, offset = 0x4, fixed_abs, tag = 'smem constant byte address 0x4 - core index']
  #allocation1 [shape = 'u32[144,128]{1,0:T(1,128)}', space=vmem, size = 0x12000, scoped, tag = 'internal scratch']
  %s0 = inlined_call_operand.hbm [shape: f32[2,16,128], index: 0, kind: input, shape index: {}]
  %s1 = inlined_call_operand.hbm [shape: f32[128,128], index: 1, kind: input, shape index: {}]
  %s2 = inlined_call_operand.hbm [shape: f32[16,128], index: 2, kind: input, shape index: {}]
  %s3 = inlined_call_operand.hbm [shape: f32[128,384], index: 3, kind: input, shape index: {}]
  %s4 = inlined_call_operand.vmem [shape: f32[1,384], index: 4, kind: input, shape index: {}]
  %s5 = inlined_call_operand.hbm [shape: f32[128,128], index: 5, kind: input, shape index: {}]
  %s6 = inlined_call_operand.hbm [shape: f32[128,256], index: 6, kind: input, shape index: {}]
  %s7 = inlined_call_operand.hbm [shape: f32[1,256], index: 7, kind: input, shape index: {}]
  %s8 = inlined_call_operand.hbm [shape: f32[256,128], index: 8, kind: input, shape index: {}]
  %s9 = inlined_call_operand.hbm [shape: f32[128,128], index: 9, kind: input, shape index: {}]
  %s10 = inlined_call_operand.vmem [shape: f32[1,128], index: 10, kind: input, shape index: {}]
  %s11 = inlined_call_operand.vmem [shape: f32[16,128], index: 11, kind: input, shape index: {}]
  %s12 = inlined_call_operand.hbm [shape: f32[2,128], index: 12, kind: output, shape index: {}]
  %s13 = sld [smem:[#allocation0]]
  $region94: #{tpu_custom_call.1} parent=0
    _
  %s15 = ssub.s32 1, %s13
  %s16 = scalar_select 0, %s15, %s13
  $region1: #{tpu_custom_call.1} parent=0
    #allocation2 [shape = 'u8[16384]{0}', space=vmem, size = 0x4000, scoped, tag = 'input window, operand 0, single buffered']
    #allocation3 [shape = 's32[1]{0}', space=sflag, size = 0x4, scoped, tag = 'scoped memory for tpu_custom_call.1']
    #allocation4 [shape = 's32[1]{0}', space=sflag, size = 0x4, scoped, tag = 'scoped memory for tpu_custom_call.1']
    #allocation5 [shape = 'u8[65536]{0}', space=vmem, size = 0x10000, scoped, tag = 'input window, operand 1, single buffered']
    #allocation6 [shape = 's32[1]{0}', space=sflag, size = 0x4, scoped, tag = 'scoped memory for tpu_custom_call.1']
    #allocation7 [shape = 'u8[8192]{0}', space=vmem, size = 0x2000, scoped, tag = 'input window, operand 2, single buffered']
    #allocation8 [shape = 'u8[196608]{0}', space=vmem, size = 0x30000, scoped, tag = 'input window, operand 3, single buffered']
    #allocation9 [shape = 's32[1]{0}', space=sflag, size = 0x4, scoped, tag = 'scoped memory for tpu_custom_call.1']
    #allocation10 [shape = 'u8[65536]{0}', space=vmem, size = 0x10000, scoped, tag = 'input window, operand 5, single buffered']
    #allocation11 [shape = 'u8[131072]{0}', space=vmem, size = 0x20000, scoped, tag = 'input window, operand 6, single buffered']
    #allocation12 [shape = 's32[1]{0}', space=sflag, size = 0x4, scoped, tag = 'scoped memory for tpu_custom_call.1']
    #allocation13 [shape = 'u8[1024]{0}', space=vmem, size = 0x400, scoped, tag = 'input window, operand 7, single buffered']
    #allocation14 [shape = 'u8[131072]{0}', space=vmem, size = 0x20000, scoped, tag = 'input window, operand 8, single buffered']
    #allocation15 [shape = 's32[1]{0}', space=sflag, size = 0x4, scoped, tag = 'scoped memory for tpu_custom_call.1']
    #allocation16 [shape = 'u8[65536]{0}', space=vmem, size = 0x10000, scoped, tag = 'input window, operand 9, single buffered']
    #allocation17 [shape = 'u8[1024]{0}', space=vmem, size = 0x400, scoped, tag = 'output window, operand 0, single buffered']
    %17 = vsyncpa [#allocation3], 0
    %18 = vsyncpa [#allocation6], 0
    %19 = vsyncpa [#allocation9], 0
    %20 = vsyncpa [#allocation12], 0
    %21 = vsyncpa [#allocation15], 0
    %22 = vsyncpa [#allocation4], 0
    // Predicated region
    $region2: #{tpu_custom_call.1} parent=1 // pred_check
      _
    $region3: #{tpu_custom_call.1} parent=1 // pred_check_branch
      %24 = sbr.rel (0) target = $region5
    $region4: #{tpu_custom_call.1} parent=1 // pred_region
      %s26 = ssub.s32 512, 512
      %27 = vsyncadd [#allocation3], %s26
      %s28 = sshll.u32 [#allocation2], 4
      %s29 = int_to_ptr.vmem [resolvable:$true] %s28
      %34 = dma.hbm_to_vmem [thread:$0]  %s0, 512, %s29, [#allocation3], 128, 128, 8
    $region5: #{tpu_custom_call.1} parent=1 // pred_fallthru
      _
    // Predicated region
    $region6: #{tpu_custom_call.1} parent=1 // pred_check
      _
    $region7: #{tpu_custom_call.1} parent=1 // pred_check_branch
      %36 = sbr.rel (0) target = $region9
    $region8: #{tpu_custom_call.1} parent=1 // pred_region
      %s38 = ssub.s32 2048, 2048
      %39 = vsyncadd [#allocation6], %s38
      %s40 = sshll.u32 [#allocation5], 4
      %s41 = int_to_ptr.vmem [resolvable:$true] %s40
      %46 = dma.hbm_to_vmem [thread:$0]  %s1, 2048, %s41, [#allocation6], 128, 128, 8
    $region9: #{tpu_custom_call.1} parent=1 // pred_fallthru
      _
    // Predicated region
    $region10: #{tpu_custom_call.1} parent=1 // pred_check
      _
    $region11: #{tpu_custom_call.1} parent=1 // pred_check_branch
      %48 = sbr.rel (0) target = $region13
    $region12: #{tpu_custom_call.1} parent=1 // pred_region
      %s50 = ssub.s32 256, 256
      %51 = vsyncadd [#allocation6], %s50
      %s52 = sshll.u32 [#allocation7], 4
      %s53 = int_to_ptr.vmem [resolvable:$true] %s52
      %58 = dma.hbm_to_vmem [thread:$0]  %s2, 256, %s53, [#allocation6], 128, 128, 8
    $region13: #{tpu_custom_call.1} parent=1 // pred_fallthru
      _
    // Predicated region
    $region14: #{tpu_custom_call.1} parent=1 // pred_check
      _
    $region15: #{tpu_custom_call.1} parent=1 // pred_check_branch
      %60 = sbr.rel (0) target = $region17
    $region16: #{tpu_custom_call.1} parent=1 // pred_region
      %s62 = ssub.s32 6144, 6144
      %63 = vsyncadd [#allocation9], %s62
      %s64 = sshll.u32 [#allocation8], 4
      %s65 = int_to_ptr.vmem [resolvable:$true] %s64
      %70 = dma.hbm_to_vmem [thread:$0]  %s3, 6144, %s65, [#allocation9], 384, 384, 24
    $region17: #{tpu_custom_call.1} parent=1 // pred_fallthru
      _
    // Predicated region
    $region18: #{tpu_custom_call.1} parent=1 // pred_check
      _
    $region19: #{tpu_custom_call.1} parent=1 // pred_check_branch
      %72 = sbr.rel (0) target = $region21
    $region20: #{tpu_custom_call.1} parent=1 // pred_region
      _
    $region21: #{tpu_custom_call.1} parent=1 // pred_fallthru
      _
    // Predicated region
    $region22: #{tpu_custom_call.1} parent=1 // pred_check
      _
    $region23: #{tpu_custom_call.1} parent=1 // pred_check_branch
      %74 = sbr.rel (0) target = $region25
    $region24: #{tpu_custom_call.1} parent=1 // pred_region
      %s76 = ssub.s32 2048, 2048
      %77 = vsyncadd [#allocation9], %s76
      %s78 = sshll.u32 [#allocation10], 4
      %s79 = int_to_ptr.vmem [resolvable:$true] %s78
      %84 = dma.hbm_to_vmem [thread:$0]  %s5, 2048, %s79, [#allocation9], 128, 128, 8
    $region25: #{tpu_custom_call.1} parent=1 // pred_fallthru
      _
    // Predicated region
    $region26: #{tpu_custom_call.1} parent=1 // pred_check
      _
    $region27: #{tpu_custom_call.1} parent=1 // pred_check_branch
      %86 = sbr.rel (0) target = $region29
    $region28: #{tpu_custom_call.1} parent=1 // pred_region
      %s88 = ssub.s32 4096, 4096
      %89 = vsyncadd [#allocation12], %s88
      %s90 = sshll.u32 [#allocation11], 4
      %s91 = int_to_ptr.vmem [resolvable:$true] %s90
      %96 = dma.hbm_to_vmem [thread:$0]  %s6, 4096, %s91, [#allocation12], 256, 256, 16
    $region29: #{tpu_custom_call.1} parent=1 // pred_fallthru
      _
    // Predicated region
    $region30: #{tpu_custom_call.1} parent=1 // pred_check
      _
    $region31: #{tpu_custom_call.1} parent=1 // pred_check_branch
      %98 = sbr.rel (0) target = $region33
    $region32: #{tpu_custom_call.1} parent=1 // pred_region
      %s100 = ssub.s32 32, 32
      %101 = vsyncadd [#allocation12], %s100
      %s103 = sshll.u32 [#allocation13], 4
      %s104 = int_to_ptr.vmem [resolvable:$true] %s103
      %106 = dma.hbm_to_vmem [thread:$0]  %s7, 32, %s104, [#allocation12]
    $region33: #{tpu_custom_call.1} parent=1 // pred_fallthru
      _
    // Predicated region
    $region34: #{tpu_custom_call.1} parent=1 // pred_check
      _
    $region35: #{tpu_custom_call.1} parent=1 // pred_check_branch
      %108 = sbr.rel (0) target = $region37
    $region36: #{tpu_custom_call.1} parent=1 // pred_region
      %s110 = ssub.s32 4096, 4096
      %111 = vsyncadd [#allocation15], %s110
      %s112 = sshll.u32 [#allocation14], 4
      %s113 = int_to_ptr.vmem [resolvable:$true] %s112
      %118 = dma.hbm_to_vmem [thread:$0]  %s8, 4096, %s113, [#allocation15], 128, 128, 8
    $region37: #{tpu_custom_call.1} parent=1 // pred_fallthru
      _
    // Predicated region
    $region38: #{tpu_custom_call.1} parent=1 // pred_check
      _
    $region39: #{tpu_custom_call.1} parent=1 // pred_check_branch
      %120 = sbr.rel (0) target = $region41
    $region40: #{tpu_custom_call.1} parent=1 // pred_region
      %s122 = ssub.s32 2048, 2048
      %123 = vsyncadd [#allocation15], %s122
      %s124 = sshll.u32 [#allocation16], 4
      %s125 = int_to_ptr.vmem [resolvable:$true] %s124
      %130 = dma.hbm_to_vmem [thread:$0]  %s9, 2048, %s125, [#allocation15], 128, 128, 8
    $region41: #{tpu_custom_call.1} parent=1 // pred_fallthru
      _
    // Predicated region
    $region42: #{tpu_custom_call.1} parent=1 // pred_check
      _
    $region43: #{tpu_custom_call.1} parent=1 // pred_check_branch
      %132 = sbr.rel (0) target = $region45
    $region44: #{tpu_custom_call.1} parent=1 // pred_region
      _
    $region45: #{tpu_custom_call.1} parent=1 // pred_fallthru
      _
    // Predicated region
    $region46: #{tpu_custom_call.1} parent=1 // pred_check
      _
    $region47: #{tpu_custom_call.1} parent=1 // pred_check_branch
      %134 = sbr.rel (0) target = $region49
    $region48: #{tpu_custom_call.1} parent=1 // pred_region
      _
    $region49: #{tpu_custom_call.1} parent=1 // pred_fallthru
      _
    // Predicated region
    $region50: #{tpu_custom_call.1} parent=1 // pred_check
      _
    $region51: #{tpu_custom_call.1} parent=1 // pred_check_branch
      %136 = sbr.rel (0) target = $region53
    $region52: #{tpu_custom_call.1} parent=1 // pred_region
      %137 = dma.done [#allocation3], 512
    $region53: #{tpu_custom_call.1} parent=1 // pred_fallthru
      _
    // Predicated region
    $region54: #{tpu_custom_call.1} parent=1 // pred_check
      _
    $region55: #{tpu_custom_call.1} parent=1 // pred_check_branch
      %139 = sbr.rel (0) target = $region57
    $region56: #{tpu_custom_call.1} parent=1 // pred_region
      %140 = dma.done [#allocation6], 2048
    $region57: #{tpu_custom_call.1} parent=1 // pred_fallthru
      _
    // Predicated region
    $region58: #{tpu_custom_call.1} parent=1 // pred_check
      _
    $region59: #{tpu_custom_call.1} parent=1 // pred_check_branch
      %142 = sbr.rel (0) target = $region61
    $region60: #{tpu_custom_call.1} parent=1 // pred_region
      %143 = dma.done [#allocation6], 256
    $region61: #{tpu_custom_call.1} parent=1 // pred_fallthru
      _
    // Predicated region
    $region62: #{tpu_custom_call.1} parent=1 // pred_check
      _
    $region63: #{tpu_custom_call.1} parent=1 // pred_check_branch
      %145 = sbr.rel (0) target = $region65
    $region64: #{tpu_custom_call.1} parent=1 // pred_region
      %146 = dma.done [#allocation9], 6144
    $region65: #{tpu_custom_call.1} parent=1 // pred_fallthru
      _
    // Predicated region
    $region66: #{tpu_custom_call.1} parent=1 // pred_check
      _
    $region67: #{tpu_custom_call.1} parent=1 // pred_check_branch
      %148 = sbr.rel (0) target = $region69
    $region68: #{tpu_custom_call.1} parent=1 // pred_region
      %149 = dma.done [#allocation9], 2048
    $region69: #{tpu_custom_call.1} parent=1 // pred_fallthru
      _
    // Predicated region
    $region70: #{tpu_custom_call.1} parent=1 // pred_check
      _
    $region71: #{tpu_custom_call.1} parent=1 // pred_check_branch
      %151 = sbr.rel (0) target = $region73
    $region72: #{tpu_custom_call.1} parent=1 // pred_region
      %152 = dma.done [#allocation12], 4096
    $region73: #{tpu_custom_call.1} parent=1 // pred_fallthru
      _
    // Predicated region
    $region74: #{tpu_custom_call.1} parent=1 // pred_check
      _
    $region75: #{tpu_custom_call.1} parent=1 // pred_check_branch
      %154 = sbr.rel (0) target = $region77
    $region76: #{tpu_custom_call.1} parent=1 // pred_region
      %155 = dma.done [#allocation12], 32
    $region77: #{tpu_custom_call.1} parent=1 // pred_fallthru
      _
    // Predicated region
    $region78: #{tpu_custom_call.1} parent=1 // pred_check
      _
    $region79: #{tpu_custom_call.1} parent=1 // pred_check_branch
      %157 = sbr.rel (0) target = $region81
    $region80: #{tpu_custom_call.1} parent=1 // pred_region
      %158 = dma.done [#allocation15], 4096
    $region81: #{tpu_custom_call.1} parent=1 // pred_fallthru
      _
    // Predicated region
    $region82: #{tpu_custom_call.1} parent=1 // pred_check
      _
    $region83: #{tpu_custom_call.1} parent=1 // pred_check_branch
      %160 = sbr.rel (0) target = $region85
    $region84: #{tpu_custom_call.1} parent=1 // pred_region
      %161 = dma.done [#allocation15], 2048
    $region85: #{tpu_custom_call.1} parent=1 // pred_fallthru
      _
    %v162 = vld [vmem:[%s11] sm:$0xff]
    %v163 = vld [vmem:[%s11 + $0x8] sm:$0xff]
    %v164 = vld [vmem:[#allocation2] sm:$0xff]
    %v165 = vld [vmem:[#allocation2 + $0x8] sm:$0xff]
    %v166 = vld [vmem:[#allocation2 + $0x10] sm:$0xff]
    %v167 = vld [vmem:[#allocation2 + $0x18] sm:$0xff]
    %v168 = vld [vmem:[#allocation5] sm:$0xff]
    %v169 = vld [vmem:[#allocation5 + $0x8] sm:$0xff]
    %v170 = vld [vmem:[#allocation5 + $0x10] sm:$0xff]
    %v171 = vld [vmem:[#allocation5 + $0x18] sm:$0xff]
    %v172 = vld [vmem:[#allocation5 + $0x20] sm:$0xff]
    %v173 = vld [vmem:[#allocation5 + $0x28] sm:$0xff]
    %v174 = vld [vmem:[#allocation5 + $0x30] sm:$0xff]
    %v175 = vld [vmem:[#allocation5 + $0x38] sm:$0xff]
    %v176 = vld [vmem:[#allocation5 + $0x40] sm:$0xff]
    %v177 = vld [vmem:[#allocation5 + $0x48] sm:$0xff]
    %v178 = vld [vmem:[#allocation5 + $0x50] sm:$0xff]
    %v179 = vld [vmem:[#allocation5 + $0x58] sm:$0xff]
    %v180 = vld [vmem:[#allocation5 + $0x60] sm:$0xff]
    %v181 = vld [vmem:[#allocation5 + $0x68] sm:$0xff]
    %v182 = vld [vmem:[#allocation5 + $0x70] sm:$0xff]
    %v183 = vld [vmem:[#allocation5 + $0x78] sm:$0xff]
    %v184 = vlaneseq
    %v185 = vshrl.u32 %v184, 7
    %v186 = vsub.s32 0, %v185
    %v187 = vrot.slane %v162, %v186
    %188 = vmatprep.subr.mxu0 0.0
    %189 = vmatpush1.msra.mxu0 %v183
    %190 = vmatprep.subr.mxu0 0.0
    %191 = vmatpush1.msra.mxu0 %v182
    %192 = vmatprep.subr.mxu0 0.0
    %193 = vmatpush1.msra.mxu0 %v181
    %194 = vmatprep.subr.mxu0 0.0
    %195 = vmatpush1.msra.mxu0 %v180
    %196 = vmatprep.subr.mxu0 0.0
    %197 = vmatpush1.msra.mxu0 %v179
    %198 = vmatprep.subr.mxu0 0.0
    %199 = vmatpush1.msra.mxu0 %v178
    %200 = vmatprep.subr.mxu0 0.0
    %201 = vmatpush1.msra.mxu0 %v177
    %202 = vmatprep.subr.mxu0 0.0
    %203 = vmatpush1.msra.mxu0 %v176
    %204 = vmatprep.subr.mxu0 0.0
    %205 = vmatpush1.msra.mxu0 %v175
    %206 = vmatprep.subr.mxu0 0.0
    %207 = vmatpush1.msra.mxu0 %v174
    %208 = vmatprep.subr.mxu0 0.0
    %209 = vmatpush1.msra.mxu0 %v173
    %210 = vmatprep.subr.mxu0 0.0
    %211 = vmatpush1.msra.mxu0 %v172
    %212 = vmatprep.subr.mxu0 0.0
    %213 = vmatpush1.msra.mxu0 %v171
    %214 = vmatprep.subr.mxu0 0.0
    %215 = vmatpush1.msra.mxu0 %v170
    %216 = vmatprep.subr.mxu0 0.0
    %217 = vmatpush1.msra.mxu0 %v169
    %218 = vmatprep.subr.mxu0 0.0
    %219 = vmatpush1.msra.mxu0 %v168
    %220 = vmatprep.subr.mxu0 0.0
    %221 = vmatpush2.msra.mxu0 0.0
    %222 = vmatprep.subr.mxu0 0.0
    %223 = vmatpush2.msra.mxu0 0.0
    %224 = vmatprep.subr.mxu0 0.0
    %225 = vmatpush2.msra.mxu0 0.0
    %226 = vmatprep.subr.mxu0 0.0
    %227 = vmatpush2.msra.mxu0 0.0
    %228 = vmatprep.subr.mxu0 0.0
    %229 = vmatpush2.msra.mxu0 0.0
    %230 = vmatprep.subr.mxu0 0.0
    %231 = vmatpush2.msra.mxu0 0.0
    %232 = vmatprep.subr.mxu0 0.0
    %233 = vmatpush2.msra.mxu0 0.0
    %234 = vmatprep.subr.mxu0 0.0
    %235 = vmatpush2.msra.mxu0 0.0
    %236 = vmatprep.subr.mxu0 0.0
    %237 = vmatpush2.msra.mxu0 0.0
    %238 = vmatprep.subr.mxu0 0.0
    %239 = vmatpush2.msra.mxu0 0.0
    %240 = vmatprep.subr.mxu0 0.0
    %241 = vmatpush2.msra.mxu0 0.0
    %242 = vmatprep.subr.mxu0 0.0
    %243 = vmatpush2.msra.mxu0 0.0
    %244 = vmatprep.subr.mxu0 0.0
    %245 = vmatpush2.msra.mxu0 0.0
    %246 = vmatprep.subr.mxu0 0.0
    %247 = vmatpush2.msra.mxu0 0.0
    %248 = vmatprep.subr.mxu0 0.0
    %249 = vmatpush2.msra.mxu0 0.0
    %250 = vmatprep.subr.mxu0 0.0
    %251 = vmatpush2.msra.mxu0 0.0
    %252 = vmatprep.mubr.f32.mxu0 0.0
    %253 = vmatmul.mubr.f32.gmra.mxu0 %v164
    %v254 = vpop.f32.mrf.mxu0
    %v255 = vadd.f32 %v187, %v254
    %v256 = vpop.f32.mrf.mxu0
    %257 = vmatprep.mubr.f32.mxu0 0.0
    %258 = vmatmul.mubr.f32.gmra.mxu0 %v165
    %v259 = vpop.f32.mrf.mxu0
    %v260 = vadd.f32 %v187, %v259
    %v261 = vpop.f32.mrf.mxu0
    %262 = vmatprep.mubr.f32.mxu0 0.0
    %263 = vmatmul.mubr.f32.gmra.mxu0 %v166
    %v264 = vpop.f32.mrf.mxu0
    %v265 = vadd.f32 %v187, %v264
    %v266 = vpop.f32.mrf.mxu0
    %267 = vmatprep.mubr.f32.mxu0 0.0
    %268 = vmatmul.mubr.f32.gmra.mxu0 %v167
    %v269 = vpop.f32.mrf.mxu0
    %v270 = vadd.f32 %v187, %v269
    %v271 = vpop.f32.mrf.mxu0
    %272 = vdwg.mxu0
    %v273 = vld [vmem:[#allocation7] sm:$0xff]
    %v274 = vld [vmem:[#allocation7 + $0x8] sm:$0xff]
    %v275 = vadd.f32 %v255, %v273
    %v276 = vadd.f32 %v260, %v274
    %v277 = vadd.f32 %v265, %v273
    %v278 = vadd.f32 %v270, %v274
    %v279 = vld [vmem:[#allocation8] sm:$0xff]
    %v280 = vld [vmem:[#allocation8 + $0x8] sm:$0xff]
    %v281 = vld [vmem:[#allocation8 + $0x10] sm:$0xff]
    %v282 = vld [vmem:[#allocation8 + $0x18] sm:$0xff]
    %v283 = vld [vmem:[#allocation8 + $0x20] sm:$0xff]
    %v284 = vld [vmem:[#allocation8 + $0x28] sm:$0xff]
    %v285 = vld [vmem:[#allocation8 + $0x30] sm:$0xff]
    %v286 = vld [vmem:[#allocation8 + $0x38] sm:$0xff]
    %v287 = vld [vmem:[#allocation8 + $0x40] sm:$0xff]
    %v288 = vld [vmem:[#allocation8 + $0x48] sm:$0xff]
    %v289 = vld [vmem:[#allocation8 + $0x50] sm:$0xff]
    %v290 = vld [vmem:[#allocation8 + $0x58] sm:$0xff]
    %v291 = vld [vmem:[#allocation8 + $0x60] sm:$0xff]
    %v292 = vld [vmem:[#allocation8 + $0x68] sm:$0xff]
    %v293 = vld [vmem:[#allocation8 + $0x70] sm:$0xff]
    %v294 = vld [vmem:[#allocation8 + $0x78] sm:$0xff]
    %v295 = vld [vmem:[#allocation8 + $0x80] sm:$0xff]
    %v296 = vld [vmem:[#allocation8 + $0x88] sm:$0xff]
    %v297 = vld [vmem:[#allocation8 + $0x90] sm:$0xff]
    %v298 = vld [vmem:[#allocation8 + $0x98] sm:$0xff]
    %v299 = vld [vmem:[#allocation8 + $0xa0] sm:$0xff]
    %v300 = vld [vmem:[#allocation8 + $0xa8] sm:$0xff]
    %v301 = vld [vmem:[#allocation8 + $0xb0] sm:$0xff]
    %v302 = vld [vmem:[#allocation8 + $0xb8] sm:$0xff]
    %v303 = vld [vmem:[#allocation8 + $0xc0] sm:$0xff]
    %v304 = vld [vmem:[#allocation8 + $0xc8] sm:$0xff]
    %v305 = vld [vmem:[#allocation8 + $0xd0] sm:$0xff]
    %v306 = vld [vmem:[#allocation8 + $0xd8] sm:$0xff]
    %v307 = vld [vmem:[#allocation8 + $0xe0] sm:$0xff]
    %v308 = vld [vmem:[#allocation8 + $0xe8] sm:$0xff]
    %v309 = vld [vmem:[#allocation8 + $0xf0] sm:$0xff]
    %v310 = vld [vmem:[#allocation8 + $0xf8] sm:$0xff]
    %v311 = vld [vmem:[#allocation8 + $0x100] sm:$0xff]
    %v312 = vld [vmem:[#allocation8 + $0x108] sm:$0xff]
    %v313 = vld [vmem:[#allocation8 + $0x110] sm:$0xff]
    %v314 = vld [vmem:[#allocation8 + $0x118] sm:$0xff]
    %v315 = vld [vmem:[#allocation8 + $0x120] sm:$0xff]
    %v316 = vld [vmem:[#allocation8 + $0x128] sm:$0xff]
    %v317 = vld [vmem:[#allocation8 + $0x130] sm:$0xff]
    %v318 = vld [vmem:[#allocation8 + $0x138] sm:$0xff]
    %v319 = vld [vmem:[#allocation8 + $0x140] sm:$0xff]
    %v320 = vld [vmem:[#allocation8 + $0x148] sm:$0xff]
    %v321 = vld [vmem:[#allocation8 + $0x150] sm:$0xff]
    %v322 = vld [vmem:[#allocation8 + $0x158] sm:$0xff]
    %v323 = vld [vmem:[#allocation8 + $0x160] sm:$0xff]
    %v324 = vld [vmem:[#allocation8 + $0x168] sm:$0xff]
    %v325 = vld [vmem:[#allocation8 + $0x170] sm:$0xff]
    %v326 = vld [vmem:[#allocation8 + $0x178] sm:$0xff]
    %v327 = vld [vmem:[%s4] sm:$0x7]
    %v329 = vlaneseq
    %v330 = vshrl.u32 %v329, 7
    %v331 = vsub.s32 0, %v330
    %v332 = vrot.slane %v327, %v331
    %v333 = vlaneseq
    %v334 = vshrl.u32 %v333, 7
    %v335 = vsub.s32 1, %v334
    %v336 = vrot.slane %v327, %v335
    %v337 = vlaneseq
    %v338 = vshrl.u32 %v337, 7
    %v339 = vsub.s32 2, %v338
    %v340 = vrot.slane %v327, %v339
    %344 = vmatprep.subr.mxu0 %v325
    %345 = vmatpush1.msra.mxu0 %v324
    %346 = vmatprep.subr.mxu0 %v322
    %347 = vmatpush1.msra.mxu0 %v321
    %348 = vmatprep.subr.mxu0 %v319
    %349 = vmatpush1.msra.mxu0 %v318
    %350 = vmatprep.subr.mxu0 %v316
    %351 = vmatpush1.msra.mxu0 %v315
    %352 = vmatprep.subr.mxu0 %v313
    %353 = vmatpush1.msra.mxu0 %v312
    %354 = vmatprep.subr.mxu0 %v310
    %355 = vmatpush1.msra.mxu0 %v309
    %356 = vmatprep.subr.mxu0 %v307
    %357 = vmatpush1.msra.mxu0 %v306
    %358 = vmatprep.subr.mxu0 %v304
    %359 = vmatpush1.msra.mxu0 %v303
    %360 = vmatprep.subr.mxu0 %v301
    %361 = vmatpush1.msra.mxu0 %v300
    %362 = vmatprep.subr.mxu0 %v298
    %363 = vmatpush1.msra.mxu0 %v297
    %364 = vmatprep.subr.mxu0 %v295
    %365 = vmatpush1.msra.mxu0 %v294
    %366 = vmatprep.subr.mxu0 %v292
    %367 = vmatpush1.msra.mxu0 %v291
    %368 = vmatprep.subr.mxu0 %v289
    %369 = vmatpush1.msra.mxu0 %v288
    %370 = vmatprep.subr.mxu0 %v286
    %371 = vmatpush1.msra.mxu0 %v285
    %372 = vmatprep.subr.mxu0 %v283
    %373 = vmatpush1.msra.mxu0 %v282
    %374 = vmatprep.subr.mxu0 %v280
    %375 = vmatpush1.msra.mxu0 %v279
    %376 = vmatprep.subr.mxu0 0.0
    %377 = vmatpush2.msra.mxu0 0.0
    %378 = vmatprep.subr.mxu0 0.0
    %379 = vmatpush2.msra.mxu0 0.0
    %380 = vmatprep.subr.mxu0 0.0
    %381 = vmatpush2.msra.mxu0 0.0
    %382 = vmatprep.subr.mxu0 0.0
    %383 = vmatpush2.msra.mxu0 0.0
    %384 = vmatprep.subr.mxu0 0.0
    %385 = vmatpush2.msra.mxu0 0.0
    %386 = vmatprep.subr.mxu0 0.0
    %387 = vmatpush2.msra.mxu0 0.0
    %388 = vmatprep.subr.mxu0 0.0
    %389 = vmatpush2.msra.mxu0 0.0
    %390 = vmatprep.subr.mxu0 0.0
    %391 = vmatpush2.msra.mxu0 0.0
    %392 = vmatprep.subr.mxu0 0.0
    %393 = vmatpush2.msra.mxu0 0.0
    %394 = vmatprep.subr.mxu0 0.0
    %395 = vmatpush2.msra.mxu0 0.0
    %396 = vmatprep.subr.mxu0 0.0
    %397 = vmatpush2.msra.mxu0 0.0
    %398 = vmatprep.subr.mxu0 0.0
    %399 = vmatpush2.msra.mxu0 0.0
    %400 = vmatprep.subr.mxu0 0.0
    %401 = vmatpush2.msra.mxu0 0.0
    %402 = vmatprep.subr.mxu0 0.0
    %403 = vmatpush2.msra.mxu0 0.0
    %404 = vmatprep.subr.mxu0 0.0
    %405 = vmatpush2.msra.mxu0 0.0
    %406 = vmatprep.subr.mxu0 0.0
    %407 = vmatpush2.msra.mxu0 0.0
    %408 = vmatprep.mubr.f32.mxu0 0.0
    %409 = vmatmul.mubr.f32.gmra.mxu0 %v275
    %v410 = vpop.f32.mrf.mxu0
    %v411 = vadd.f32 %v332, %v410
    %v412 = vpop.f32.mrf.mxu0
    %v413 = vadd.f32 %v336, %v412
    %414 = vmatprep.mubr.f32.mxu0 0.0
    %415 = vmatmul.mubr.f32.gmra.mxu0 %v276
    %v416 = vpop.f32.mrf.mxu0
    %v417 = vadd.f32 %v332, %v416
    %v418 = vpop.f32.mrf.mxu0
    %v419 = vadd.f32 %v336, %v418
    %420 = vmatprep.mubr.f32.mxu0 0.0
    %421 = vmatmul.mubr.f32.gmra.mxu0 %v277
    %v422 = vpop.f32.mrf.mxu0
    %v423 = vadd.f32 %v332, %v422
    %v424 = vpop.f32.mrf.mxu0
    %v425 = vadd.f32 %v336, %v424
    %426 = vmatprep.mubr.f32.mxu0 0.0
    %427 = vmatmul.mubr.f32.gmra.mxu0 %v278
    %v428 = vpop.f32.mrf.mxu0
    %v429 = vadd.f32 %v332, %v428
    %v430 = vpop.f32.mrf.mxu0
    %v431 = vadd.f32 %v336, %v430
    %432 = vdwg.mxu0
    %433 = vmatprep.subr.mxu0 0.0
    %434 = vmatpush1.msra.mxu0 %v326
    %435 = vmatprep.subr.mxu0 0.0
    %436 = vmatpush1.msra.mxu0 %v323
    %437 = vmatprep.subr.mxu0 0.0
    %438 = vmatpush1.msra.mxu0 %v320
    %439 = vmatprep.subr.mxu0 0.0
    %440 = vmatpush1.msra.mxu0 %v317
    %441 = vmatprep.subr.mxu0 0.0
    %442 = vmatpush1.msra.mxu0 %v314
    %443 = vmatprep.subr.mxu0 0.0
    %444 = vmatpush1.msra.mxu0 %v311
    %445 = vmatprep.subr.mxu0 0.0
    %446 = vmatpush1.msra.mxu0 %v308
    %447 = vmatprep.subr.mxu0 0.0
    %448 = vmatpush1.msra.mxu0 %v305
    %449 = vmatprep.subr.mxu0 0.0
    %450 = vmatpush1.msra.mxu0 %v302
    %451 = vmatprep.subr.mxu0 0.0
    %452 = vmatpush1.msra.mxu0 %v299
    %453 = vmatprep.subr.mxu0 0.0
    %454 = vmatpush1.msra.mxu0 %v296
    %455 = vmatprep.subr.mxu0 0.0
    %456 = vmatpush1.msra.mxu0 %v293
    %457 = vmatprep.subr.mxu0 0.0
    %458 = vmatpush1.msra.mxu0 %v290
    %459 = vmatprep.subr.mxu0 0.0
    %460 = vmatpush1.msra.mxu0 %v287
    %461 = vmatprep.subr.mxu0 0.0
    %462 = vmatpush1.msra.mxu0 %v284
    %463 = vmatprep.subr.mxu0 0.0
    %464 = vmatpush1.msra.mxu0 %v281
    %465 = vmatprep.subr.mxu0 0.0
    %466 = vmatpush2.msra.mxu0 0.0
    %467 = vmatprep.subr.mxu0 0.0
    %468 = vmatpush2.msra.mxu0 0.0
    %469 = vmatprep.subr.mxu0 0.0
    %470 = vmatpush2.msra.mxu0 0.0
    %471 = vmatprep.subr.mxu0 0.0
    %472 = vmatpush2.msra.mxu0 0.0
    %473 = vmatprep.subr.mxu0 0.0
    %474 = vmatpush2.msra.mxu0 0.0
    %475 = vmatprep.subr.mxu0 0.0
    %476 = vmatpush2.msra.mxu0 0.0
    %477 = vmatprep.subr.mxu0 0.0
    %478 = vmatpush2.msra.mxu0 0.0
    %479 = vmatprep.subr.mxu0 0.0
    %480 = vmatpush2.msra.mxu0 0.0
    %481 = vmatprep.subr.mxu0 0.0
    %482 = vmatpush2.msra.mxu0 0.0
    %483 = vmatprep.subr.mxu0 0.0
    %484 = vmatpush2.msra.mxu0 0.0
    %485 = vmatprep.subr.mxu0 0.0
    %486 = vmatpush2.msra.mxu0 0.0
    %487 = vmatprep.subr.mxu0 0.0
    %488 = vmatpush2.msra.mxu0 0.0
    %489 = vmatprep.subr.mxu0 0.0
    %490 = vmatpush2.msra.mxu0 0.0
    %491 = vmatprep.subr.mxu0 0.0
    %492 = vmatpush2.msra.mxu0 0.0
    %493 = vmatprep.subr.mxu0 0.0
    %494 = vmatpush2.msra.mxu0 0.0
    %495 = vmatprep.subr.mxu0 0.0
    %496 = vmatpush2.msra.mxu0 0.0
    %497 = vmatprep.mubr.f32.mxu0 0.0
    %498 = vmatmul.mubr.f32.gmra.mxu0 %v275
    %v499 = vpop.f32.mrf.mxu0
    %v500 = vadd.f32 %v340, %v499
    %v501 = vpop.f32.mrf.mxu0
    %502 = vmatprep.mubr.f32.mxu0 0.0
    %503 = vmatmul.mubr.f32.gmra.mxu0 %v276
    %v504 = vpop.f32.mrf.mxu0
    %v505 = vadd.f32 %v340, %v504
    %v506 = vpop.f32.mrf.mxu0
    %507 = vmatprep.mubr.f32.mxu0 0.0
    %508 = vmatmul.mubr.f32.gmra.mxu0 %v277
    %v509 = vpop.f32.mrf.mxu0
    %v510 = vadd.f32 %v340, %v509
    %v511 = vpop.f32.mrf.mxu0
    %512 = vmatprep.mubr.f32.mxu0 0.0
    %513 = vmatmul.mubr.f32.gmra.mxu0 %v278
    %v514 = vpop.f32.mrf.mxu0
    %v515 = vadd.f32 %v340, %v514
    %v516 = vpop.f32.mrf.mxu0
    %517 = vdwg.mxu0
    %522 = vrot.lane.b32.xlu0 %v411, 96
    %v523 = vpop.permute.xlu0 %522
    %524 = vrot.lane.b32.xlu0 %v417, 96
    %v525 = vpop.permute.xlu0 %524
    %526 = vrot.lane.b32.xlu0 %v423, 96
    %v527 = vpop.permute.xlu0 %526
    %528 = vrot.lane.b32.xlu0 %v429, 96
    %v529 = vpop.permute.xlu0 %528
    %530 = vrot.lane.b32.xlu0 %v411, 64
    %v531 = vpop.permute.xlu0 %530
    %532 = vrot.lane.b32.xlu0 %v417, 64
    %v533 = vpop.permute.xlu0 %532
    %534 = vrot.lane.b32.xlu0 %v423, 64
    %v535 = vpop.permute.xlu0 %534
    %536 = vrot.lane.b32.xlu0 %v429, 64
    %v537 = vpop.permute.xlu0 %536
    %538 = vrot.lane.b32.xlu0 %v411, 32
    %v539 = vpop.permute.xlu0 %538
    %540 = vrot.lane.b32.xlu0 %v417, 32
    %v541 = vpop.permute.xlu0 %540
    %542 = vrot.lane.b32.xlu0 %v423, 32
    %v543 = vpop.permute.xlu0 %542
    %544 = vrot.lane.b32.xlu0 %v429, 32
    %v545 = vpop.permute.xlu0 %544
    %550 = vrot.lane.b32.xlu0 %v413, 96
    %v551 = vpop.permute.xlu0 %550
    %552 = vrot.lane.b32.xlu0 %v419, 96
    %v553 = vpop.permute.xlu0 %552
    %554 = vrot.lane.b32.xlu0 %v425, 96
    %v555 = vpop.permute.xlu0 %554
    %556 = vrot.lane.b32.xlu0 %v431, 96
    %v557 = vpop.permute.xlu0 %556
    %558 = vrot.lane.b32.xlu0 %v413, 64
    %v559 = vpop.permute.xlu0 %558
    %560 = vrot.lane.b32.xlu0 %v419, 64
    %v561 = vpop.permute.xlu0 %560
    %562 = vrot.lane.b32.xlu0 %v425, 64
    %v563 = vpop.permute.xlu0 %562
    %564 = vrot.lane.b32.xlu0 %v431, 64
    %v565 = vpop.permute.xlu0 %564
    %566 = vrot.lane.b32.xlu0 %v413, 32
    %v567 = vpop.permute.xlu0 %566
    %568 = vrot.lane.b32.xlu0 %v419, 32
    %v569 = vpop.permute.xlu0 %568
    %570 = vrot.lane.b32.xlu0 %v425, 32
    %v571 = vpop.permute.xlu0 %570
    %572 = vrot.lane.b32.xlu0 %v431, 32
    %v573 = vpop.permute.xlu0 %572
    %578 = vrot.lane.b32.xlu0 %v500, 96
    %v579 = vpop.permute.xlu0 %578
    %580 = vrot.lane.b32.xlu0 %v505, 96
    %v581 = vpop.permute.xlu0 %580
    %582 = vrot.lane.b32.xlu0 %v510, 96
    %v583 = vpop.permute.xlu0 %582
    %584 = vrot.lane.b32.xlu0 %v515, 96
    %v585 = vpop.permute.xlu0 %584
    %590 = vrot.lane.b32.xlu0 %v500, 64
    %v591 = vpop.permute.xlu0 %590
    %592 = vrot.lane.b32.xlu0 %v505, 64
    %v593 = vpop.permute.xlu0 %592
    %594 = vrot.lane.b32.xlu0 %v510, 64
    %v595 = vpop.permute.xlu0 %594
    %596 = vrot.lane.b32.xlu0 %v515, 64
    %v597 = vpop.permute.xlu0 %596
    %602 = vrot.lane.b32.xlu0 %v500, 32
    %v603 = vpop.permute.xlu0 %602
    %604 = vrot.lane.b32.xlu0 %v505, 32
    %v605 = vpop.permute.xlu0 %604
    %606 = vrot.lane.b32.xlu0 %v510, 32
    %v607 = vpop.permute.xlu0 %606
    %608 = vrot.lane.b32.xlu0 %v515, 32
    %v609 = vpop.permute.xlu0 %608
    %vm614 = vcmask 261120
    %v615 = vsel %vm614, %v411, 0
    %v617 = vsel %vm614, %v417, 0
    %v619 = vsel %vm614, %v413, 0
    %v621 = vsel %vm614, %v419, 0
    %623 = vmatprep.subr.mxu0 0.0
    %624 = vmatpush1.xpose.msra.mxu0 0.0
    %625 = vmatprep.subr.mxu0 0.0
    %626 = vmatpush1.xpose.msra.mxu0 0.0
    %627 = vmatprep.subr.mxu0 0.0
    %628 = vmatpush1.xpose.msra.mxu0 0.0
    %629 = vmatprep.subr.mxu0 0.0
    %630 = vmatpush1.xpose.msra.mxu0 0.0
    %631 = vmatprep.subr.mxu0 0.0
    %632 = vmatpush1.xpose.msra.mxu0 0.0
    %633 = vmatprep.subr.mxu0 0.0
    %634 = vmatpush1.xpose.msra.mxu0 0.0
    %635 = vmatprep.subr.mxu0 0.0
    %636 = vmatpush1.xpose.msra.mxu0 0.0
    %637 = vmatprep.subr.mxu0 0.0
    %638 = vmatpush1.xpose.msra.mxu0 0.0
    %639 = vmatprep.subr.mxu0 0.0
    %640 = vmatpush1.xpose.msra.mxu0 0.0
    %641 = vmatprep.subr.mxu0 0.0
    %642 = vmatpush1.xpose.msra.mxu0 0.0
    %643 = vmatprep.subr.mxu0 0.0
    %644 = vmatpush1.xpose.msra.mxu0 0.0
    %645 = vmatprep.subr.mxu0 0.0
    %646 = vmatpush1.xpose.msra.mxu0 0.0
    %647 = vmatprep.subr.mxu0 0.0
    %648 = vmatpush1.xpose.msra.mxu0 0.0
    %649 = vmatprep.subr.mxu0 0.0
    %650 = vmatpush1.xpose.msra.mxu0 0.0
    %651 = vmatprep.subr.mxu0 0.0
    %652 = vmatpush1.xpose.msra.mxu0 %v621
    %653 = vmatprep.subr.mxu0 0.0
    %654 = vmatpush1.xpose.msra.mxu0 %v619
    %655 = vmatprep.subr.mxu0 0.0
    %656 = vmatpush2.xpose.msra.mxu0 0.0
    %657 = vmatprep.subr.mxu0 0.0
    %658 = vmatpush2.xpose.msra.mxu0 0.0
    %659 = vmatprep.subr.mxu0 0.0
    %660 = vmatpush2.xpose.msra.mxu0 0.0
    %661 = vmatprep.subr.mxu0 0.0
    %662 = vmatpush2.xpose.msra.mxu0 0.0
    %663 = vmatprep.subr.mxu0 0.0
    %664 = vmatpush2.xpose.msra.mxu0 0.0
    %665 = vmatprep.subr.mxu0 0.0
    %666 = vmatpush2.xpose.msra.mxu0 0.0
    %667 = vmatprep.subr.mxu0 0.0
    %668 = vmatpush2.xpose.msra.mxu0 0.0
    %669 = vmatprep.subr.mxu0 0.0
    %670 = vmatpush2.xpose.msra.mxu0 0.0
    %671 = vmatprep.subr.mxu0 0.0
    %672 = vmatpush2.xpose.msra.mxu0 0.0
    %673 = vmatprep.subr.mxu0 0.0
    %674 = vmatpush2.xpose.msra.mxu0 0.0
    %675 = vmatprep.subr.mxu0 0.0
    %676 = vmatpush2.xpose.msra.mxu0 0.0
    %677 = vmatprep.subr.mxu0 0.0
    %678 = vmatpush2.xpose.msra.mxu0 0.0
    %679 = vmatprep.subr.mxu0 0.0
    %680 = vmatpush2.xpose.msra.mxu0 0.0
    %681 = vmatprep.subr.mxu0 0.0
    %682 = vmatpush2.xpose.msra.mxu0 0.0
    %683 = vmatprep.subr.mxu0 0.0
    %684 = vmatpush2.xpose.msra.mxu0 0.0
    %685 = vmatprep.subr.mxu0 0.0
    %686 = vmatpush2.xpose.msra.mxu0 0.0
    %687 = vmatprep.mubr.f32.mxu0 0.0
    %688 = vmatmul.mubr.f32.gmra.mxu0 %v615
    %v689 = vpop.f32.mrf.mxu0
    %v690 = vadd.f32 0.0, %v689
    %v691 = vpop.f32.mrf.mxu0
    %692 = vmatprep.mubr.f32.mxu0 0.0
    %693 = vmatmul.mubr.f32.gmra.mxu0 %v617
    %v694 = vpop.f32.mrf.mxu0
    %v695 = vadd.f32 0.0, %v694
    %v696 = vpop.f32.mrf.mxu0
    %697 = vdwg.mxu0
    %v698 = vsel %vm614, %v423, 0
    %v700 = vsel %vm614, %v429, 0
    %v702 = vsel %vm614, %v425, 0
    %v704 = vsel %vm614, %v431, 0
    %706 = vmatprep.subr.mxu0 0.0
    %707 = vmatpush1.xpose.msra.mxu0 0.0
    %708 = vmatprep.subr.mxu0 0.0
    %709 = vmatpush1.xpose.msra.mxu0 0.0
    %710 = vmatprep.subr.mxu0 0.0
    %711 = vmatpush1.xpose.msra.mxu0 0.0
    %712 = vmatprep.subr.mxu0 0.0
    %713 = vmatpush1.xpose.msra.mxu0 0.0
    %714 = vmatprep.subr.mxu0 0.0
    %715 = vmatpush1.xpose.msra.mxu0 0.0
    %716 = vmatprep.subr.mxu0 0.0
    %717 = vmatpush1.xpose.msra.mxu0 0.0
    %718 = vmatprep.subr.mxu0 0.0
    %719 = vmatpush1.xpose.msra.mxu0 0.0
    %720 = vmatprep.subr.mxu0 0.0
    %721 = vmatpush1.xpose.msra.mxu0 0.0
    %722 = vmatprep.subr.mxu0 0.0
    %723 = vmatpush1.xpose.msra.mxu0 0.0
    %724 = vmatprep.subr.mxu0 0.0
    %725 = vmatpush1.xpose.msra.mxu0 0.0
    %726 = vmatprep.subr.mxu0 0.0
    %727 = vmatpush1.xpose.msra.mxu0 0.0
    %728 = vmatprep.subr.mxu0 0.0
    %729 = vmatpush1.xpose.msra.mxu0 0.0
    %730 = vmatprep.subr.mxu0 0.0
    %731 = vmatpush1.xpose.msra.mxu0 0.0
    %732 = vmatprep.subr.mxu0 0.0
    %733 = vmatpush1.xpose.msra.mxu0 0.0
    %734 = vmatprep.subr.mxu0 0.0
    %735 = vmatpush1.xpose.msra.mxu0 %v704
    %736 = vmatprep.subr.mxu0 0.0
    %737 = vmatpush1.xpose.msra.mxu0 %v702
    %738 = vmatprep.subr.mxu0 0.0
    %739 = vmatpush2.xpose.msra.mxu0 0.0
    %740 = vmatprep.subr.mxu0 0.0
    %741 = vmatpush2.xpose.msra.mxu0 0.0
    %742 = vmatprep.subr.mxu0 0.0
    %743 = vmatpush2.xpose.msra.mxu0 0.0
    %744 = vmatprep.subr.mxu0 0.0
    %745 = vmatpush2.xpose.msra.mxu0 0.0
    %746 = vmatprep.subr.mxu0 0.0
    %747 = vmatpush2.xpose.msra.mxu0 0.0
    %748 = vmatprep.subr.mxu0 0.0
    %749 = vmatpush2.xpose.msra.mxu0 0.0
    %750 = vmatprep.subr.mxu0 0.0
    %751 = vmatpush2.xpose.msra.mxu0 0.0
    %752 = vmatprep.subr.mxu0 0.0
    %753 = vmatpush2.xpose.msra.mxu0 0.0
    %754 = vmatprep.subr.mxu0 0.0
    %755 = vmatpush2.xpose.msra.mxu0 0.0
    %756 = vmatprep.subr.mxu0 0.0
    %757 = vmatpush2.xpose.msra.mxu0 0.0
    %758 = vmatprep.subr.mxu0 0.0
    %759 = vmatpush2.xpose.msra.mxu0 0.0
    %760 = vmatprep.subr.mxu0 0.0
    %761 = vmatpush2.xpose.msra.mxu0 0.0
    %762 = vmatprep.subr.mxu0 0.0
    %763 = vmatpush2.xpose.msra.mxu0 0.0
    %764 = vmatprep.subr.mxu0 0.0
    %765 = vmatpush2.xpose.msra.mxu0 0.0
    %766 = vmatprep.subr.mxu0 0.0
    %767 = vmatpush2.xpose.msra.mxu0 0.0
    %768 = vmatprep.subr.mxu0 0.0
    %769 = vmatpush2.xpose.msra.mxu0 0.0
    %770 = vmatprep.mubr.f32.mxu0 0.0
    %771 = vmatmul.mubr.f32.gmra.mxu0 %v698
    %v772 = vpop.f32.mrf.mxu0
    %v773 = vadd.f32 0.0, %v772
    %v774 = vpop.f32.mrf.mxu0
    %775 = vmatprep.mubr.f32.mxu0 0.0
    %776 = vmatmul.mubr.f32.gmra.mxu0 %v700
    %v777 = vpop.f32.mrf.mxu0
    %v778 = vadd.f32 0.0, %v777
    %v779 = vpop.f32.mrf.mxu0
    %780 = vdwg.mxu0
    %v781 = vsel %vm614, %v523, 0
    %v783 = vsel %vm614, %v525, 0
    %v785 = vsel %vm614, %v551, 0
    %v787 = vsel %vm614, %v553, 0
    %789 = vmatprep.subr.mxu0 0.0
    %790 = vmatpush1.xpose.msra.mxu0 0.0
    %791 = vmatprep.subr.mxu0 0.0
    %792 = vmatpush1.xpose.msra.mxu0 0.0
    %793 = vmatprep.subr.mxu0 0.0
    %794 = vmatpush1.xpose.msra.mxu0 0.0
    %795 = vmatprep.subr.mxu0 0.0
    %796 = vmatpush1.xpose.msra.mxu0 0.0
    %797 = vmatprep.subr.mxu0 0.0
    %798 = vmatpush1.xpose.msra.mxu0 0.0
    %799 = vmatprep.subr.mxu0 0.0
    %800 = vmatpush1.xpose.msra.mxu0 0.0
    %801 = vmatprep.subr.mxu0 0.0
    %802 = vmatpush1.xpose.msra.mxu0 0.0
    %803 = vmatprep.subr.mxu0 0.0
    %804 = vmatpush1.xpose.msra.mxu0 0.0
    %805 = vmatprep.subr.mxu0 0.0
    %806 = vmatpush1.xpose.msra.mxu0 0.0
    %807 = vmatprep.subr.mxu0 0.0
    %808 = vmatpush1.xpose.msra.mxu0 0.0
    %809 = vmatprep.subr.mxu0 0.0
    %810 = vmatpush1.xpose.msra.mxu0 0.0
    %811 = vmatprep.subr.mxu0 0.0
    %812 = vmatpush1.xpose.msra.mxu0 0.0
    %813 = vmatprep.subr.mxu0 0.0
    %814 = vmatpush1.xpose.msra.mxu0 0.0
    %815 = vmatprep.subr.mxu0 0.0
    %816 = vmatpush1.xpose.msra.mxu0 0.0
    %817 = vmatprep.subr.mxu0 0.0
    %818 = vmatpush1.xpose.msra.mxu0 %v787
    %819 = vmatprep.subr.mxu0 0.0
    %820 = vmatpush1.xpose.msra.mxu0 %v785
    %821 = vmatprep.subr.mxu0 0.0
    %822 = vmatpush2.xpose.msra.mxu0 0.0
    %823 = vmatprep.subr.mxu0 0.0
    %824 = vmatpush2.xpose.msra.mxu0 0.0
    %825 = vmatprep.subr.mxu0 0.0
    %826 = vmatpush2.xpose.msra.mxu0 0.0
    %827 = vmatprep.subr.mxu0 0.0
    %828 = vmatpush2.xpose.msra.mxu0 0.0
    %829 = vmatprep.subr.mxu0 0.0
    %830 = vmatpush2.xpose.msra.mxu0 0.0
    %831 = vmatprep.subr.mxu0 0.0
    %832 = vmatpush2.xpose.msra.mxu0 0.0
    %833 = vmatprep.subr.mxu0 0.0
    %834 = vmatpush2.xpose.msra.mxu0 0.0
    %835 = vmatprep.subr.mxu0 0.0
    %836 = vmatpush2.xpose.msra.mxu0 0.0
    %837 = vmatprep.subr.mxu0 0.0
    %838 = vmatpush2.xpose.msra.mxu0 0.0
    %839 = vmatprep.subr.mxu0 0.0
    %840 = vmatpush2.xpose.msra.mxu0 0.0
    %841 = vmatprep.subr.mxu0 0.0
    %842 = vmatpush2.xpose.msra.mxu0 0.0
    %843 = vmatprep.subr.mxu0 0.0
    %844 = vmatpush2.xpose.msra.mxu0 0.0
    %845 = vmatprep.subr.mxu0 0.0
    %846 = vmatpush2.xpose.msra.mxu0 0.0
    %847 = vmatprep.subr.mxu0 0.0
    %848 = vmatpush2.xpose.msra.mxu0 0.0
    %849 = vmatprep.subr.mxu0 0.0
    %850 = vmatpush2.xpose.msra.mxu0 0.0
    %851 = vmatprep.subr.mxu0 0.0
    %852 = vmatpush2.xpose.msra.mxu0 0.0
    %853 = vmatprep.mubr.f32.mxu0 0.0
    %854 = vmatmul.mubr.f32.gmra.mxu0 %v781
    %v855 = vpop.f32.mrf.mxu0
    %v856 = vadd.f32 0.0, %v855
    %v857 = vpop.f32.mrf.mxu0
    %858 = vmatprep.mubr.f32.mxu0 0.0
    %859 = vmatmul.mubr.f32.gmra.mxu0 %v783
    %v860 = vpop.f32.mrf.mxu0
    %v861 = vadd.f32 0.0, %v860
    %v862 = vpop.f32.mrf.mxu0
    %863 = vdwg.mxu0
    %v864 = vsel %vm614, %v527, 0
    %v866 = vsel %vm614, %v529, 0
    %v868 = vsel %vm614, %v555, 0
    %v870 = vsel %vm614, %v557, 0
    %872 = vmatprep.subr.mxu0 0.0
    %873 = vmatpush1.xpose.msra.mxu0 0.0
    %874 = vmatprep.subr.mxu0 0.0
    %875 = vmatpush1.xpose.msra.mxu0 0.0
    %876 = vmatprep.subr.mxu0 0.0
    %877 = vmatpush1.xpose.msra.mxu0 0.0
    %878 = vmatprep.subr.mxu0 0.0
    %879 = vmatpush1.xpose.msra.mxu0 0.0
    %880 = vmatprep.subr.mxu0 0.0
    %881 = vmatpush1.xpose.msra.mxu0 0.0
    %882 = vmatprep.subr.mxu0 0.0
    %883 = vmatpush1.xpose.msra.mxu0 0.0
    %884 = vmatprep.subr.mxu0 0.0
    %885 = vmatpush1.xpose.msra.mxu0 0.0
    %886 = vmatprep.subr.mxu0 0.0
    %887 = vmatpush1.xpose.msra.mxu0 0.0
    %888 = vmatprep.subr.mxu0 0.0
    %889 = vmatpush1.xpose.msra.mxu0 0.0
    %890 = vmatprep.subr.mxu0 0.0
    %891 = vmatpush1.xpose.msra.mxu0 0.0
    %892 = vmatprep.subr.mxu0 0.0
    %893 = vmatpush1.xpose.msra.mxu0 0.0
    %894 = vmatprep.subr.mxu0 0.0
    %895 = vmatpush1.xpose.msra.mxu0 0.0
    %896 = vmatprep.subr.mxu0 0.0
    %897 = vmatpush1.xpose.msra.mxu0 0.0
    %898 = vmatprep.subr.mxu0 0.0
    %899 = vmatpush1.xpose.msra.mxu0 0.0
    %900 = vmatprep.subr.mxu0 0.0
    %901 = vmatpush1.xpose.msra.mxu0 %v870
    %902 = vmatprep.subr.mxu0 0.0
    %903 = vmatpush1.xpose.msra.mxu0 %v868
    %904 = vmatprep.subr.mxu0 0.0
    %905 = vmatpush2.xpose.msra.mxu0 0.0
    %906 = vmatprep.subr.mxu0 0.0
    %907 = vmatpush2.xpose.msra.mxu0 0.0
    %908 = vmatprep.subr.mxu0 0.0
    %909 = vmatpush2.xpose.msra.mxu0 0.0
    %910 = vmatprep.subr.mxu0 0.0
    %911 = vmatpush2.xpose.msra.mxu0 0.0
    %912 = vmatprep.subr.mxu0 0.0
    %913 = vmatpush2.xpose.msra.mxu0 0.0
    %914 = vmatprep.subr.mxu0 0.0
    %915 = vmatpush2.xpose.msra.mxu0 0.0
    %916 = vmatprep.subr.mxu0 0.0
    %917 = vmatpush2.xpose.msra.mxu0 0.0
    %918 = vmatprep.subr.mxu0 0.0
    %919 = vmatpush2.xpose.msra.mxu0 0.0
    %920 = vmatprep.subr.mxu0 0.0
    %921 = vmatpush2.xpose.msra.mxu0 0.0
    %922 = vmatprep.subr.mxu0 0.0
    %923 = vmatpush2.xpose.msra.mxu0 0.0
    %924 = vmatprep.subr.mxu0 0.0
    %925 = vmatpush2.xpose.msra.mxu0 0.0
    %926 = vmatprep.subr.mxu0 0.0
    %927 = vmatpush2.xpose.msra.mxu0 0.0
    %928 = vmatprep.subr.mxu0 0.0
    %929 = vmatpush2.xpose.msra.mxu0 0.0
    %930 = vmatprep.subr.mxu0 0.0
    %931 = vmatpush2.xpose.msra.mxu0 0.0
    %932 = vmatprep.subr.mxu0 0.0
    %933 = vmatpush2.xpose.msra.mxu0 0.0
    %934 = vmatprep.subr.mxu0 0.0
    %935 = vmatpush2.xpose.msra.mxu0 0.0
    %936 = vmatprep.mubr.f32.mxu0 0.0
    %937 = vmatmul.mubr.f32.gmra.mxu0 %v864
    %v938 = vpop.f32.mrf.mxu0
    %v939 = vadd.f32 0.0, %v938
    %v940 = vpop.f32.mrf.mxu0
    %941 = vmatprep.mubr.f32.mxu0 0.0
    %942 = vmatmul.mubr.f32.gmra.mxu0 %v866
    %v943 = vpop.f32.mrf.mxu0
    %v944 = vadd.f32 0.0, %v943
    %v945 = vpop.f32.mrf.mxu0
    %946 = vdwg.mxu0
    %v947 = vsel %vm614, %v531, 0
    %v949 = vsel %vm614, %v533, 0
    %v951 = vsel %vm614, %v559, 0
    %v953 = vsel %vm614, %v561, 0
    %955 = vmatprep.subr.mxu0 0.0
    %956 = vmatpush1.xpose.msra.mxu0 0.0
    %957 = vmatprep.subr.mxu0 0.0
    %958 = vmatpush1.xpose.msra.mxu0 0.0
    %959 = vmatprep.subr.mxu0 0.0
    %960 = vmatpush1.xpose.msra.mxu0 0.0
    %961 = vmatprep.subr.mxu0 0.0
    %962 = vmatpush1.xpose.msra.mxu0 0.0
    %963 = vmatprep.subr.mxu0 0.0
    %964 = vmatpush1.xpose.msra.mxu0 0.0
    %965 = vmatprep.subr.mxu0 0.0
    %966 = vmatpush1.xpose.msra.mxu0 0.0
    %967 = vmatprep.subr.mxu0 0.0
    %968 = vmatpush1.xpose.msra.mxu0 0.0
    %969 = vmatprep.subr.mxu0 0.0
    %970 = vmatpush1.xpose.msra.mxu0 0.0
    %971 = vmatprep.subr.mxu0 0.0
    %972 = vmatpush1.xpose.msra.mxu0 0.0
    %973 = vmatprep.subr.mxu0 0.0
    %974 = vmatpush1.xpose.msra.mxu0 0.0
    %975 = vmatprep.subr.mxu0 0.0
    %976 = vmatpush1.xpose.msra.mxu0 0.0
    %977 = vmatprep.subr.mxu0 0.0
    %978 = vmatpush1.xpose.msra.mxu0 0.0
    %979 = vmatprep.subr.mxu0 0.0
    %980 = vmatpush1.xpose.msra.mxu0 0.0
    %981 = vmatprep.subr.mxu0 0.0
    %982 = vmatpush1.xpose.msra.mxu0 0.0
    %983 = vmatprep.subr.mxu0 0.0
    %984 = vmatpush1.xpose.msra.mxu0 %v953
    %985 = vmatprep.subr.mxu0 0.0
    %986 = vmatpush1.xpose.msra.mxu0 %v951
    %987 = vmatprep.subr.mxu0 0.0
    %988 = vmatpush2.xpose.msra.mxu0 0.0
    %989 = vmatprep.subr.mxu0 0.0
    %990 = vmatpush2.xpose.msra.mxu0 0.0
    %991 = vmatprep.subr.mxu0 0.0
    %992 = vmatpush2.xpose.msra.mxu0 0.0
    %993 = vmatprep.subr.mxu0 0.0
    %994 = vmatpush2.xpose.msra.mxu0 0.0
    %995 = vmatprep.subr.mxu0 0.0
    %996 = vmatpush2.xpose.msra.mxu0 0.0
    %997 = vmatprep.subr.mxu0 0.0
    %998 = vmatpush2.xpose.msra.mxu0 0.0
    %999 = vmatprep.subr.mxu0 0.0
    %1000 = vmatpush2.xpose.msra.mxu0 0.0
    %1001 = vmatprep.subr.mxu0 0.0
    %1002 = vmatpush2.xpose.msra.mxu0 0.0
    %1003 = vmatprep.subr.mxu0 0.0
    %1004 = vmatpush2.xpose.msra.mxu0 0.0
    %1005 = vmatprep.subr.mxu0 0.0
    %1006 = vmatpush2.xpose.msra.mxu0 0.0
    %1007 = vmatprep.subr.mxu0 0.0
    %1008 = vmatpush2.xpose.msra.mxu0 0.0
    %1009 = vmatprep.subr.mxu0 0.0
    %1010 = vmatpush2.xpose.msra.mxu0 0.0
    %1011 = vmatprep.subr.mxu0 0.0
    %1012 = vmatpush2.xpose.msra.mxu0 0.0
    %1013 = vmatprep.subr.mxu0 0.0
    %1014 = vmatpush2.xpose.msra.mxu0 0.0
    %1015 = vmatprep.subr.mxu0 0.0
    %1016 = vmatpush2.xpose.msra.mxu0 0.0
    %1017 = vmatprep.subr.mxu0 0.0
    %1018 = vmatpush2.xpose.msra.mxu0 0.0
    %1019 = vmatprep.mubr.f32.mxu0 0.0
    %1020 = vmatmul.mubr.f32.gmra.mxu0 %v947
    %v1021 = vpop.f32.mrf.mxu0
    %v1022 = vadd.f32 0.0, %v1021
    %v1023 = vpop.f32.mrf.mxu0
    %1024 = vmatprep.mubr.f32.mxu0 0.0
    %1025 = vmatmul.mubr.f32.gmra.mxu0 %v949
    %v1026 = vpop.f32.mrf.mxu0
    %v1027 = vadd.f32 0.0, %v1026
    %v1028 = vpop.f32.mrf.mxu0
    %1029 = vdwg.mxu0
    %v1030 = vsel %vm614, %v535, 0
    %v1032 = vsel %vm614, %v537, 0
    %v1034 = vsel %vm614, %v563, 0
    %v1036 = vsel %vm614, %v565, 0
    %1038 = vmatprep.subr.mxu0 0.0
    %1039 = vmatpush1.xpose.msra.mxu0 0.0
    %1040 = vmatprep.subr.mxu0 0.0
    %1041 = vmatpush1.xpose.msra.mxu0 0.0
    %1042 = vmatprep.subr.mxu0 0.0
    %1043 = vmatpush1.xpose.msra.mxu0 0.0
    %1044 = vmatprep.subr.mxu0 0.0
    %1045 = vmatpush1.xpose.msra.mxu0 0.0
    %1046 = vmatprep.subr.mxu0 0.0
    %1047 = vmatpush1.xpose.msra.mxu0 0.0
    %1048 = vmatprep.subr.mxu0 0.0
    %1049 = vmatpush1.xpose.msra.mxu0 0.0
    %1050 = vmatprep.subr.mxu0 0.0
    %1051 = vmatpush1.xpose.msra.mxu0 0.0
    %1052 = vmatprep.subr.mxu0 0.0
    %1053 = vmatpush1.xpose.msra.mxu0 0.0
    %1054 = vmatprep.subr.mxu0 0.0
    %1055 = vmatpush1.xpose.msra.mxu0 0.0
    %1056 = vmatprep.subr.mxu0 0.0
    %1057 = vmatpush1.xpose.msra.mxu0 0.0
    %1058 = vmatprep.subr.mxu0 0.0
    %1059 = vmatpush1.xpose.msra.mxu0 0.0
    %1060 = vmatprep.subr.mxu0 0.0
    %1061 = vmatpush1.xpose.msra.mxu0 0.0
    %1062 = vmatprep.subr.mxu0 0.0
    %1063 = vmatpush1.xpose.msra.mxu0 0.0
    %1064 = vmatprep.subr.mxu0 0.0
    %1065 = vmatpush1.xpose.msra.mxu0 0.0
    %1066 = vmatprep.subr.mxu0 0.0
    %1067 = vmatpush1.xpose.msra.mxu0 %v1036
    %1068 = vmatprep.subr.mxu0 0.0
    %1069 = vmatpush1.xpose.msra.mxu0 %v1034
    %1070 = vmatprep.subr.mxu0 0.0
    %1071 = vmatpush2.xpose.msra.mxu0 0.0
    %1072 = vmatprep.subr.mxu0 0.0
    %1073 = vmatpush2.xpose.msra.mxu0 0.0
    %1074 = vmatprep.subr.mxu0 0.0
    %1075 = vmatpush2.xpose.msra.mxu0 0.0
    %1076 = vmatprep.subr.mxu0 0.0
    %1077 = vmatpush2.xpose.msra.mxu0 0.0
    %1078 = vmatprep.subr.mxu0 0.0
    %1079 = vmatpush2.xpose.msra.mxu0 0.0
    %1080 = vmatprep.subr.mxu0 0.0
    %1081 = vmatpush2.xpose.msra.mxu0 0.0
    %1082 = vmatprep.subr.mxu0 0.0
    %1083 = vmatpush2.xpose.msra.mxu0 0.0
    %1084 = vmatprep.subr.mxu0 0.0
    %1085 = vmatpush2.xpose.msra.mxu0 0.0
    %1086 = vmatprep.subr.mxu0 0.0
    %1087 = vmatpush2.xpose.msra.mxu0 0.0
    %1088 = vmatprep.subr.mxu0 0.0
    %1089 = vmatpush2.xpose.msra.mxu0 0.0
    %1090 = vmatprep.subr.mxu0 0.0
    %1091 = vmatpush2.xpose.msra.mxu0 0.0
    %1092 = vmatprep.subr.mxu0 0.0
    %1093 = vmatpush2.xpose.msra.mxu0 0.0
    %1094 = vmatprep.subr.mxu0 0.0
    %1095 = vmatpush2.xpose.msra.mxu0 0.0
    %1096 = vmatprep.subr.mxu0 0.0
    %1097 = vmatpush2.xpose.msra.mxu0 0.0
    %1098 = vmatprep.subr.mxu0 0.0
    %1099 = vmatpush2.xpose.msra.mxu0 0.0
    %1100 = vmatprep.subr.mxu0 0.0
    %1101 = vmatpush2.xpose.msra.mxu0 0.0
    %1102 = vmatprep.mubr.f32.mxu0 0.0
    %1103 = vmatmul.mubr.f32.gmra.mxu0 %v1030
    %v1104 = vpop.f32.mrf.mxu0
    %v1105 = vadd.f32 0.0, %v1104
    %v1106 = vpop.f32.mrf.mxu0
    %1107 = vmatprep.mubr.f32.mxu0 0.0
    %1108 = vmatmul.mubr.f32.gmra.mxu0 %v1032
    %v1109 = vpop.f32.mrf.mxu0
    %v1110 = vadd.f32 0.0, %v1109
    %v1111 = vpop.f32.mrf.mxu0
    %1112 = vdwg.mxu0
    %v1113 = vsel %vm614, %v539, 0
    %v1115 = vsel %vm614, %v541, 0
    %v1117 = vsel %vm614, %v567, 0
    %v1119 = vsel %vm614, %v569, 0
    %1121 = vmatprep.subr.mxu0 0.0
    %1122 = vmatpush1.xpose.msra.mxu0 0.0
    %1123 = vmatprep.subr.mxu0 0.0
    %1124 = vmatpush1.xpose.msra.mxu0 0.0
    %1125 = vmatprep.subr.mxu0 0.0
    %1126 = vmatpush1.xpose.msra.mxu0 0.0
    %1127 = vmatprep.subr.mxu0 0.0
    %1128 = vmatpush1.xpose.msra.mxu0 0.0
    %1129 = vmatprep.subr.mxu0 0.0
    %1130 = vmatpush1.xpose.msra.mxu0 0.0
    %1131 = vmatprep.subr.mxu0 0.0
    %1132 = vmatpush1.xpose.msra.mxu0 0.0
    %1133 = vmatprep.subr.mxu0 0.0
    %1134 = vmatpush1.xpose.msra.mxu0 0.0
    %1135 = vmatprep.subr.mxu0 0.0
    %1136 = vmatpush1.xpose.msra.mxu0 0.0
    %1137 = vmatprep.subr.mxu0 0.0
    %1138 = vmatpush1.xpose.msra.mxu0 0.0
    %1139 = vmatprep.subr.mxu0 0.0
    %1140 = vmatpush1.xpose.msra.mxu0 0.0
    %1141 = vmatprep.subr.mxu0 0.0
    %1142 = vmatpush1.xpose.msra.mxu0 0.0
    %1143 = vmatprep.subr.mxu0 0.0
    %1144 = vmatpush1.xpose.msra.mxu0 0.0
    %1145 = vmatprep.subr.mxu0 0.0
    %1146 = vmatpush1.xpose.msra.mxu0 0.0
    %1147 = vmatprep.subr.mxu0 0.0
    %1148 = vmatpush1.xpose.msra.mxu0 0.0
    %1149 = vmatprep.subr.mxu0 0.0
    %1150 = vmatpush1.xpose.msra.mxu0 %v1119
    %1151 = vmatprep.subr.mxu0 0.0
    %1152 = vmatpush1.xpose.msra.mxu0 %v1117
    %1153 = vmatprep.subr.mxu0 0.0
    %1154 = vmatpush2.xpose.msra.mxu0 0.0
    %1155 = vmatprep.subr.mxu0 0.0
    %1156 = vmatpush2.xpose.msra.mxu0 0.0
    %1157 = vmatprep.subr.mxu0 0.0
    %1158 = vmatpush2.xpose.msra.mxu0 0.0
    %1159 = vmatprep.subr.mxu0 0.0
    %1160 = vmatpush2.xpose.msra.mxu0 0.0
    %1161 = vmatprep.subr.mxu0 0.0
    %1162 = vmatpush2.xpose.msra.mxu0 0.0
    %1163 = vmatprep.subr.mxu0 0.0
    %1164 = vmatpush2.xpose.msra.mxu0 0.0
    %1165 = vmatprep.subr.mxu0 0.0
    %1166 = vmatpush2.xpose.msra.mxu0 0.0
    %1167 = vmatprep.subr.mxu0 0.0
    %1168 = vmatpush2.xpose.msra.mxu0 0.0
    %1169 = vmatprep.subr.mxu0 0.0
    %1170 = vmatpush2.xpose.msra.mxu0 0.0
    %1171 = vmatprep.subr.mxu0 0.0
    %1172 = vmatpush2.xpose.msra.mxu0 0.0
    %1173 = vmatprep.subr.mxu0 0.0
    %1174 = vmatpush2.xpose.msra.mxu0 0.0
    %1175 = vmatprep.subr.mxu0 0.0
    %1176 = vmatpush2.xpose.msra.mxu0 0.0
    %1177 = vmatprep.subr.mxu0 0.0
    %1178 = vmatpush2.xpose.msra.mxu0 0.0
    %1179 = vmatprep.subr.mxu0 0.0
    %1180 = vmatpush2.xpose.msra.mxu0 0.0
    %1181 = vmatprep.subr.mxu0 0.0
    %1182 = vmatpush2.xpose.msra.mxu0 0.0
    %1183 = vmatprep.subr.mxu0 0.0
    %1184 = vmatpush2.xpose.msra.mxu0 0.0
    %1185 = vmatprep.mubr.f32.mxu0 0.0
    %1186 = vmatmul.mubr.f32.gmra.mxu0 %v1113
    %v1187 = vpop.f32.mrf.mxu0
    %v1188 = vadd.f32 0.0, %v1187
    %v1189 = vpop.f32.mrf.mxu0
    %1190 = vmatprep.mubr.f32.mxu0 0.0
    %1191 = vmatmul.mubr.f32.gmra.mxu0 %v1115
    %v1192 = vpop.f32.mrf.mxu0
    %v1193 = vadd.f32 0.0, %v1192
    %v1194 = vpop.f32.mrf.mxu0
    %1195 = vdwg.mxu0
    %v1196 = vsel %vm614, %v543, 0
    %v1198 = vsel %vm614, %v545, 0
    %v1200 = vsel %vm614, %v571, 0
    %v1202 = vsel %vm614, %v573, 0
    %1204 = vmatprep.subr.mxu0 0.0
    %1205 = vmatpush1.xpose.msra.mxu0 0.0
    %1206 = vmatprep.subr.mxu0 0.0
    %1207 = vmatpush1.xpose.msra.mxu0 0.0
    %1208 = vmatprep.subr.mxu0 0.0
    %1209 = vmatpush1.xpose.msra.mxu0 0.0
    %1210 = vmatprep.subr.mxu0 0.0
    %1211 = vmatpush1.xpose.msra.mxu0 0.0
    %1212 = vmatprep.subr.mxu0 0.0
    %1213 = vmatpush1.xpose.msra.mxu0 0.0
    %1214 = vmatprep.subr.mxu0 0.0
    %1215 = vmatpush1.xpose.msra.mxu0 0.0
    %1216 = vmatprep.subr.mxu0 0.0
    %1217 = vmatpush1.xpose.msra.mxu0 0.0
    %1218 = vmatprep.subr.mxu0 0.0
    %1219 = vmatpush1.xpose.msra.mxu0 0.0
    %1220 = vmatprep.subr.mxu0 0.0
    %1221 = vmatpush1.xpose.msra.mxu0 0.0
    %1222 = vmatprep.subr.mxu0 0.0
    %1223 = vmatpush1.xpose.msra.mxu0 0.0
    %1224 = vmatprep.subr.mxu0 0.0
    %1225 = vmatpush1.xpose.msra.mxu0 0.0
    %1226 = vmatprep.subr.mxu0 0.0
    %1227 = vmatpush1.xpose.msra.mxu0 0.0
    %1228 = vmatprep.subr.mxu0 0.0
    %1229 = vmatpush1.xpose.msra.mxu0 0.0
    %1230 = vmatprep.subr.mxu0 0.0
    %1231 = vmatpush1.xpose.msra.mxu0 0.0
    %1232 = vmatprep.subr.mxu0 0.0
    %1233 = vmatpush1.xpose.msra.mxu0 %v1202
    %1234 = vmatprep.subr.mxu0 0.0
    %1235 = vmatpush1.xpose.msra.mxu0 %v1200
    %1236 = vmatprep.subr.mxu0 0.0
    %1237 = vmatpush2.xpose.msra.mxu0 0.0
    %1238 = vmatprep.subr.mxu0 0.0
    %1239 = vmatpush2.xpose.msra.mxu0 0.0
    %1240 = vmatprep.subr.mxu0 0.0
    %1241 = vmatpush2.xpose.msra.mxu0 0.0
    %1242 = vmatprep.subr.mxu0 0.0
    %1243 = vmatpush2.xpose.msra.mxu0 0.0
    %1244 = vmatprep.subr.mxu0 0.0
    %1245 = vmatpush2.xpose.msra.mxu0 0.0
    %1246 = vmatprep.subr.mxu0 0.0
    %1247 = vmatpush2.xpose.msra.mxu0 0.0
    %1248 = vmatprep.subr.mxu0 0.0
    %1249 = vmatpush2.xpose.msra.mxu0 0.0
    %1250 = vmatprep.subr.mxu0 0.0
    %1251 = vmatpush2.xpose.msra.mxu0 0.0
    %1252 = vmatprep.subr.mxu0 0.0
    %1253 = vmatpush2.xpose.msra.mxu0 0.0
    %1254 = vmatprep.subr.mxu0 0.0
    %1255 = vmatpush2.xpose.msra.mxu0 0.0
    %1256 = vmatprep.subr.mxu0 0.0
    %1257 = vmatpush2.xpose.msra.mxu0 0.0
    %1258 = vmatprep.subr.mxu0 0.0
    %1259 = vmatpush2.xpose.msra.mxu0 0.0
    %1260 = vmatprep.subr.mxu0 0.0
    %1261 = vmatpush2.xpose.msra.mxu0 0.0
    %1262 = vmatprep.subr.mxu0 0.0
    %1263 = vmatpush2.xpose.msra.mxu0 0.0
    %1264 = vmatprep.subr.mxu0 0.0
    %1265 = vmatpush2.xpose.msra.mxu0 0.0
    %1266 = vmatprep.subr.mxu0 0.0
    %1267 = vmatpush2.xpose.msra.mxu0 0.0
    %1268 = vmatprep.mubr.f32.mxu0 0.0
    %1269 = vmatmul.mubr.f32.gmra.mxu0 %v1196
    %v1270 = vpop.f32.mrf.mxu0
    %v1271 = vadd.f32 0.0, %v1270
    %v1272 = vpop.f32.mrf.mxu0
    %1273 = vmatprep.mubr.f32.mxu0 0.0
    %1274 = vmatmul.mubr.f32.gmra.mxu0 %v1198
    %v1275 = vpop.f32.mrf.mxu0
    %v1276 = vadd.f32 0.0, %v1275
    %v1277 = vpop.f32.mrf.mxu0
    %1278 = vdwg.mxu0
    %v1279 = vmul.f32 %v690, 0.17677669
    %v1280 = vmul.f32 %v695, 0.17677669
    %v1281 = vmul.f32 %v773, 0.17677669
    %v1282 = vmul.f32 %v778, 0.17677669
    %v1283 = vmul.f32 %v856, 0.17677669
    %v1284 = vmul.f32 %v861, 0.17677669
    %v1285 = vmul.f32 %v939, 0.17677669
    %v1286 = vmul.f32 %v944, 0.17677669
    %v1287 = vmul.f32 %v1022, 0.17677669
    %v1288 = vmul.f32 %v1027, 0.17677669
    %v1289 = vmul.f32 %v1105, 0.17677669
    %v1290 = vmul.f32 %v1110, 0.17677669
    %v1291 = vmul.f32 %v1188, 0.17677669
    %v1292 = vmul.f32 %v1193, 0.17677669
    %v1293 = vmul.f32 %v1271, 0.17677669
    %v1294 = vmul.f32 %v1276, 0.17677669
    %vm1295 = vcmask 130048
    %v1296 = vsel %vm1295, %v1279, -inf
    %1297 = vmax.xlane.f32.xlu0 %v1296
    %v1298 = vpop.xlane.xlu0 %1297
    %v1299 = vsel %vm1295, %v1280, -inf
    %1300 = vmax.xlane.f32.xlu0 %v1299
    %v1301 = vpop.xlane.xlu0 %1300
    %v1302 = vsel %vm1295, %v1281, -inf
    %1303 = vmax.xlane.f32.xlu0 %v1302
    %v1304 = vpop.xlane.xlu0 %1303
    %v1305 = vsel %vm1295, %v1282, -inf
    %1306 = vmax.xlane.f32.xlu0 %v1305
    %v1307 = vpop.xlane.xlu0 %1306
    %v1308 = vsel %vm1295, %v1283, -inf
    %1309 = vmax.xlane.f32.xlu0 %v1308
    %v1310 = vpop.xlane.xlu0 %1309
    %v1311 = vsel %vm1295, %v1284, -inf
    %1312 = vmax.xlane.f32.xlu0 %v1311
    %v1313 = vpop.xlane.xlu0 %1312
    %v1314 = vsel %vm1295, %v1285, -inf
    %1315 = vmax.xlane.f32.xlu0 %v1314
    %v1316 = vpop.xlane.xlu0 %1315
    %v1317 = vsel %vm1295, %v1286, -inf
    %1318 = vmax.xlane.f32.xlu0 %v1317
    %v1319 = vpop.xlane.xlu0 %1318
    %v1320 = vsel %vm1295, %v1287, -inf
    %1321 = vmax.xlane.f32.xlu0 %v1320
    %v1322 = vpop.xlane.xlu0 %1321
    %v1323 = vsel %vm1295, %v1288, -inf
    %1324 = vmax.xlane.f32.xlu0 %v1323
    %v1325 = vpop.xlane.xlu0 %1324
    %v1326 = vsel %vm1295, %v1289, -inf
    %1327 = vmax.xlane.f32.xlu0 %v1326
    %v1328 = vpop.xlane.xlu0 %1327
    %v1329 = vsel %vm1295, %v1290, -inf
    %1330 = vmax.xlane.f32.xlu0 %v1329
    %v1331 = vpop.xlane.xlu0 %1330
    %v1332 = vsel %vm1295, %v1291, -inf
    %1333 = vmax.xlane.f32.xlu0 %v1332
    %v1334 = vpop.xlane.xlu0 %1333
    %v1335 = vsel %vm1295, %v1292, -inf
    %1336 = vmax.xlane.f32.xlu0 %v1335
    %v1337 = vpop.xlane.xlu0 %1336
    %v1338 = vsel %vm1295, %v1293, -inf
    %1339 = vmax.xlane.f32.xlu0 %v1338
    %v1340 = vpop.xlane.xlu0 %1339
    %v1341 = vsel %vm1295, %v1294, -inf
    %1342 = vmax.xlane.f32.xlu0 %v1341
    %v1343 = vpop.xlane.xlu0 %1342
    %v1344 = vsub.f32 %v1279, %v1298
    %v1345 = vsub.f32 %v1280, %v1301
    %v1346 = vsub.f32 %v1281, %v1304
    %v1347 = vsub.f32 %v1282, %v1307
    %v1348 = vsub.f32 %v1283, %v1310
    %v1349 = vsub.f32 %v1284, %v1313
    %v1350 = vsub.f32 %v1285, %v1316
    %v1351 = vsub.f32 %v1286, %v1319
    %v1352 = vsub.f32 %v1287, %v1322
    %v1353 = vsub.f32 %v1288, %v1325
    %v1354 = vsub.f32 %v1289, %v1328
    %v1355 = vsub.f32 %v1290, %v1331
    %v1356 = vsub.f32 %v1291, %v1334
    %v1357 = vsub.f32 %v1292, %v1337
    %v1358 = vsub.f32 %v1293, %v1340
    %v1359 = vsub.f32 %v1294, %v1343
    %v1360 = vmul.f32 %v1344, 1.442695
    %v1361 = vpow.pop %v1360
    %v1362 = vmul.f32 %v1345, 1.442695
    %v1363 = vpow.pop %v1362
    %v1364 = vmul.f32 %v1346, 1.442695
    %v1365 = vpow.pop %v1364
    %v1366 = vmul.f32 %v1347, 1.442695
    %v1367 = vpow.pop %v1366
    %v1368 = vmul.f32 %v1348, 1.442695
    %v1369 = vpow.pop %v1368
    %v1370 = vmul.f32 %v1349, 1.442695
    %v1371 = vpow.pop %v1370
    %v1372 = vmul.f32 %v1350, 1.442695
    %v1373 = vpow.pop %v1372
    %v1374 = vmul.f32 %v1351, 1.442695
    %v1375 = vpow.pop %v1374
    %v1376 = vmul.f32 %v1352, 1.442695
    %v1377 = vpow.pop %v1376
    %v1378 = vmul.f32 %v1353, 1.442695
    %v1379 = vpow.pop %v1378
    %v1380 = vmul.f32 %v1354, 1.442695
    %v1381 = vpow.pop %v1380
    %v1382 = vmul.f32 %v1355, 1.442695
    %v1383 = vpow.pop %v1382
    %v1384 = vmul.f32 %v1356, 1.442695
    %v1385 = vpow.pop %v1384
    %v1386 = vmul.f32 %v1357, 1.442695
    %v1387 = vpow.pop %v1386
    %v1388 = vmul.f32 %v1358, 1.442695
    %v1389 = vpow.pop %v1388
    %v1390 = vmul.f32 %v1359, 1.442695
    %v1391 = vpow.pop %v1390
    %v1392 = vsel %vm1295, %v1361, 0.0
    %1393 = vadd.xlane.f32.xlu0 %v1392
    %v1394 = vpop.xlane.xlu0 %1393
    %v1395 = vsel %vm1295, %v1363, 0.0
    %1396 = vadd.xlane.f32.xlu0 %v1395
    %v1397 = vpop.xlane.xlu0 %1396
    %v1398 = vsel %vm1295, %v1365, 0.0
    %1399 = vadd.xlane.f32.xlu0 %v1398
    %v1400 = vpop.xlane.xlu0 %1399
    %v1401 = vsel %vm1295, %v1367, 0.0
    %1402 = vadd.xlane.f32.xlu0 %v1401
    %v1403 = vpop.xlane.xlu0 %1402
    %v1404 = vsel %vm1295, %v1369, 0.0
    %1405 = vadd.xlane.f32.xlu0 %v1404
    %v1406 = vpop.xlane.xlu0 %1405
    %v1407 = vsel %vm1295, %v1371, 0.0
    %1408 = vadd.xlane.f32.xlu0 %v1407
    %v1409 = vpop.xlane.xlu0 %1408
    %v1410 = vsel %vm1295, %v1373, 0.0
    %1411 = vadd.xlane.f32.xlu0 %v1410
    %v1412 = vpop.xlane.xlu0 %1411
    %v1413 = vsel %vm1295, %v1375, 0.0
    %1414 = vadd.xlane.f32.xlu0 %v1413
    %v1415 = vpop.xlane.xlu0 %1414
    %v1416 = vsel %vm1295, %v1377, 0.0
    %1417 = vadd.xlane.f32.xlu0 %v1416
    %v1418 = vpop.xlane.xlu0 %1417
    %v1419 = vsel %vm1295, %v1379, 0.0
    %1420 = vadd.xlane.f32.xlu0 %v1419
    %v1421 = vpop.xlane.xlu0 %1420
    %v1422 = vsel %vm1295, %v1381, 0.0
    %1423 = vadd.xlane.f32.xlu0 %v1422
    %v1424 = vpop.xlane.xlu0 %1423
    %v1425 = vsel %vm1295, %v1383, 0.0
    %1426 = vadd.xlane.f32.xlu0 %v1425
    %v1427 = vpop.xlane.xlu0 %1426
    %v1428 = vsel %vm1295, %v1385, 0.0
    %1429 = vadd.xlane.f32.xlu0 %v1428
    %v1430 = vpop.xlane.xlu0 %1429
    %v1431 = vsel %vm1295, %v1387, 0.0
    %1432 = vadd.xlane.f32.xlu0 %v1431
    %v1433 = vpop.xlane.xlu0 %1432
    %v1434 = vsel %vm1295, %v1389, 0.0
    %1435 = vadd.xlane.f32.xlu0 %v1434
    %v1436 = vpop.xlane.xlu0 %1435
    %v1437 = vsel %vm1295, %v1391, 0.0
    %1438 = vadd.xlane.f32.xlu0 %v1437
    %v1439 = vpop.xlane.xlu0 %1438
    %v1440 = vrcp.pop %v1394
    %v1441 = vrcp.pop %v1397
    %v1442 = vrcp.pop %v1400
    %v1443 = vrcp.pop %v1403
    %v1444 = vrcp.pop %v1406
    %v1445 = vrcp.pop %v1409
    %v1446 = vrcp.pop %v1412
    %v1447 = vrcp.pop %v1415
    %v1448 = vrcp.pop %v1418
    %v1449 = vrcp.pop %v1421
    %v1450 = vrcp.pop %v1424
    %v1451 = vrcp.pop %v1427
    %v1452 = vrcp.pop %v1430
    %v1453 = vrcp.pop %v1433
    %v1454 = vrcp.pop %v1436
    %v1455 = vrcp.pop %v1439
    %v1456 = vmul.f32 %v1361, %v1440
    %v1457 = vmul.f32 %v1363, %v1441
    %v1458 = vmul.f32 %v1365, %v1442
    %v1459 = vmul.f32 %v1367, %v1443
    %v1460 = vmul.f32 %v1369, %v1444
    %v1461 = vmul.f32 %v1371, %v1445
    %v1462 = vmul.f32 %v1373, %v1446
    %v1463 = vmul.f32 %v1375, %v1447
    %v1464 = vmul.f32 %v1377, %v1448
    %v1465 = vmul.f32 %v1379, %v1449
    %v1466 = vmul.f32 %v1381, %v1450
    %v1467 = vmul.f32 %v1383, %v1451
    %v1468 = vmul.f32 %v1385, %v1452
    %v1469 = vmul.f32 %v1387, %v1453
    %v1470 = vmul.f32 %v1389, %v1454
    %v1471 = vmul.f32 %v1391, %v1455
    %v1473 = vsel %vm1295, %v1456, 0
    %v1476 = vsel %vm1295, %v1457, 0
    %1478 = vmatprep.subr.mxu0 0.0
    %1479 = vmatpush1.msra.mxu0 0.0
    %1480 = vmatprep.subr.mxu0 0.0
    %1481 = vmatpush1.msra.mxu0 0.0
    %1482 = vmatprep.subr.mxu0 0.0
    %1483 = vmatpush1.msra.mxu0 0.0
    %1484 = vmatprep.subr.mxu0 0.0
    %1485 = vmatpush1.msra.mxu0 0.0
    %1486 = vmatprep.subr.mxu0 0.0
    %1487 = vmatpush1.msra.mxu0 0.0
    %1488 = vmatprep.subr.mxu0 0.0
    %1489 = vmatpush1.msra.mxu0 0.0
    %1490 = vmatprep.subr.mxu0 0.0
    %1491 = vmatpush1.msra.mxu0 0.0
    %1492 = vmatprep.subr.mxu0 0.0
    %1493 = vmatpush1.msra.mxu0 0.0
    %1494 = vmatprep.subr.mxu0 0.0
    %1495 = vmatpush1.msra.mxu0 0.0
    %1496 = vmatprep.subr.mxu0 0.0
    %1497 = vmatpush1.msra.mxu0 0.0
    %1498 = vmatprep.subr.mxu0 0.0
    %1499 = vmatpush1.msra.mxu0 0.0
    %1500 = vmatprep.subr.mxu0 0.0
    %1501 = vmatpush1.msra.mxu0 0.0
    %1502 = vmatprep.subr.mxu0 0.0
    %1503 = vmatpush1.msra.mxu0 0.0
    %1504 = vmatprep.subr.mxu0 0.0
    %1505 = vmatpush1.msra.mxu0 0.0
    %1506 = vmatprep.subr.mxu0 0.0
    %1507 = vmatpush1.msra.mxu0 %v505
    %1508 = vmatprep.subr.mxu0 0.0
    %1509 = vmatpush1.msra.mxu0 %v500
    %1510 = vmatprep.subr.mxu0 0.0
    %1511 = vmatpush2.msra.mxu0 0.0
    %1512 = vmatprep.subr.mxu0 0.0
    %1513 = vmatpush2.msra.mxu0 0.0
    %1514 = vmatprep.subr.mxu0 0.0
    %1515 = vmatpush2.msra.mxu0 0.0
    %1516 = vmatprep.subr.mxu0 0.0
    %1517 = vmatpush2.msra.mxu0 0.0
    %1518 = vmatprep.subr.mxu0 0.0
    %1519 = vmatpush2.msra.mxu0 0.0
    %1520 = vmatprep.subr.mxu0 0.0
    %1521 = vmatpush2.msra.mxu0 0.0
    %1522 = vmatprep.subr.mxu0 0.0
    %1523 = vmatpush2.msra.mxu0 0.0
    %1524 = vmatprep.subr.mxu0 0.0
    %1525 = vmatpush2.msra.mxu0 0.0
    %1526 = vmatprep.subr.mxu0 0.0
    %1527 = vmatpush2.msra.mxu0 0.0
    %1528 = vmatprep.subr.mxu0 0.0
    %1529 = vmatpush2.msra.mxu0 0.0
    %1530 = vmatprep.subr.mxu0 0.0
    %1531 = vmatpush2.msra.mxu0 0.0
    %1532 = vmatprep.subr.mxu0 0.0
    %1533 = vmatpush2.msra.mxu0 0.0
    %1534 = vmatprep.subr.mxu0 0.0
    %1535 = vmatpush2.msra.mxu0 0.0
    %1536 = vmatprep.subr.mxu0 0.0
    %1537 = vmatpush2.msra.mxu0 0.0
    %1538 = vmatprep.subr.mxu0 0.0
    %1539 = vmatpush2.msra.mxu0 0.0
    %1540 = vmatprep.subr.mxu0 0.0
    %1541 = vmatpush2.msra.mxu0 0.0
    %1542 = vmatprep.mubr.f32.mxu0 0.0
    %1543 = vmatmul.mubr.f32.gmra.mxu0 %v1473
    %v1544 = vpop.f32.mrf.mxu0
    %v1545 = vadd.f32 0.0, %v1544
    %v1546 = vpop.f32.mrf.mxu0
    %1547 = vmatprep.mubr.f32.mxu0 0.0
    %1548 = vmatmul.mubr.f32.gmra.mxu0 %v1476
    %v1549 = vpop.f32.mrf.mxu0
    %v1550 = vadd.f32 0.0, %v1549
    %v1551 = vpop.f32.mrf.mxu0
    %1552 = vdwg.mxu0
    %v1554 = vsel %vm1295, %v1458, 0
    %v1557 = vsel %vm1295, %v1459, 0
    %1559 = vmatprep.subr.mxu0 0.0
    %1560 = vmatpush1.msra.mxu0 0.0
    %1561 = vmatprep.subr.mxu0 0.0
    %1562 = vmatpush1.msra.mxu0 0.0
    %1563 = vmatprep.subr.mxu0 0.0
    %1564 = vmatpush1.msra.mxu0 0.0
    %1565 = vmatprep.subr.mxu0 0.0
    %1566 = vmatpush1.msra.mxu0 0.0
    %1567 = vmatprep.subr.mxu0 0.0
    %1568 = vmatpush1.msra.mxu0 0.0
    %1569 = vmatprep.subr.mxu0 0.0
    %1570 = vmatpush1.msra.mxu0 0.0
    %1571 = vmatprep.subr.mxu0 0.0
    %1572 = vmatpush1.msra.mxu0 0.0
    %1573 = vmatprep.subr.mxu0 0.0
    %1574 = vmatpush1.msra.mxu0 0.0
    %1575 = vmatprep.subr.mxu0 0.0
    %1576 = vmatpush1.msra.mxu0 0.0
    %1577 = vmatprep.subr.mxu0 0.0
    %1578 = vmatpush1.msra.mxu0 0.0
    %1579 = vmatprep.subr.mxu0 0.0
    %1580 = vmatpush1.msra.mxu0 0.0
    %1581 = vmatprep.subr.mxu0 0.0
    %1582 = vmatpush1.msra.mxu0 0.0
    %1583 = vmatprep.subr.mxu0 0.0
    %1584 = vmatpush1.msra.mxu0 0.0
    %1585 = vmatprep.subr.mxu0 0.0
    %1586 = vmatpush1.msra.mxu0 0.0
    %1587 = vmatprep.subr.mxu0 0.0
    %1588 = vmatpush1.msra.mxu0 %v515
    %1589 = vmatprep.subr.mxu0 0.0
    %1590 = vmatpush1.msra.mxu0 %v510
    %1591 = vmatprep.subr.mxu0 0.0
    %1592 = vmatpush2.msra.mxu0 0.0
    %1593 = vmatprep.subr.mxu0 0.0
    %1594 = vmatpush2.msra.mxu0 0.0
    %1595 = vmatprep.subr.mxu0 0.0
    %1596 = vmatpush2.msra.mxu0 0.0
    %1597 = vmatprep.subr.mxu0 0.0
    %1598 = vmatpush2.msra.mxu0 0.0
    %1599 = vmatprep.subr.mxu0 0.0
    %1600 = vmatpush2.msra.mxu0 0.0
    %1601 = vmatprep.subr.mxu0 0.0
    %1602 = vmatpush2.msra.mxu0 0.0
    %1603 = vmatprep.subr.mxu0 0.0
    %1604 = vmatpush2.msra.mxu0 0.0
    %1605 = vmatprep.subr.mxu0 0.0
    %1606 = vmatpush2.msra.mxu0 0.0
    %1607 = vmatprep.subr.mxu0 0.0
    %1608 = vmatpush2.msra.mxu0 0.0
    %1609 = vmatprep.subr.mxu0 0.0
    %1610 = vmatpush2.msra.mxu0 0.0
    %1611 = vmatprep.subr.mxu0 0.0
    %1612 = vmatpush2.msra.mxu0 0.0
    %1613 = vmatprep.subr.mxu0 0.0
    %1614 = vmatpush2.msra.mxu0 0.0
    %1615 = vmatprep.subr.mxu0 0.0
    %1616 = vmatpush2.msra.mxu0 0.0
    %1617 = vmatprep.subr.mxu0 0.0
    %1618 = vmatpush2.msra.mxu0 0.0
    %1619 = vmatprep.subr.mxu0 0.0
    %1620 = vmatpush2.msra.mxu0 0.0
    %1621 = vmatprep.subr.mxu0 0.0
    %1622 = vmatpush2.msra.mxu0 0.0
    %1623 = vmatprep.mubr.f32.mxu0 0.0
    %1624 = vmatmul.mubr.f32.gmra.mxu0 %v1554
    %v1625 = vpop.f32.mrf.mxu0
    %v1626 = vadd.f32 0.0, %v1625
    %v1627 = vpop.f32.mrf.mxu0
    %1628 = vmatprep.mubr.f32.mxu0 0.0
    %1629 = vmatmul.mubr.f32.gmra.mxu0 %v1557
    %v1630 = vpop.f32.mrf.mxu0
    %v1631 = vadd.f32 0.0, %v1630
    %v1632 = vpop.f32.mrf.mxu0
    %1633 = vdwg.mxu0
    %v1635 = vsel %vm1295, %v1460, 0
    %v1638 = vsel %vm1295, %v1461, 0
    %1640 = vmatprep.subr.mxu0 0.0
    %1641 = vmatpush1.msra.mxu0 0.0
    %1642 = vmatprep.subr.mxu0 0.0
    %1643 = vmatpush1.msra.mxu0 0.0
    %1644 = vmatprep.subr.mxu0 0.0
    %1645 = vmatpush1.msra.mxu0 0.0
    %1646 = vmatprep.subr.mxu0 0.0
    %1647 = vmatpush1.msra.mxu0 0.0
    %1648 = vmatprep.subr.mxu0 0.0
    %1649 = vmatpush1.msra.mxu0 0.0
    %1650 = vmatprep.subr.mxu0 0.0
    %1651 = vmatpush1.msra.mxu0 0.0
    %1652 = vmatprep.subr.mxu0 0.0
    %1653 = vmatpush1.msra.mxu0 0.0
    %1654 = vmatprep.subr.mxu0 0.0
    %1655 = vmatpush1.msra.mxu0 0.0
    %1656 = vmatprep.subr.mxu0 0.0
    %1657 = vmatpush1.msra.mxu0 0.0
    %1658 = vmatprep.subr.mxu0 0.0
    %1659 = vmatpush1.msra.mxu0 0.0
    %1660 = vmatprep.subr.mxu0 0.0
    %1661 = vmatpush1.msra.mxu0 0.0
    %1662 = vmatprep.subr.mxu0 0.0
    %1663 = vmatpush1.msra.mxu0 0.0
    %1664 = vmatprep.subr.mxu0 0.0
    %1665 = vmatpush1.msra.mxu0 0.0
    %1666 = vmatprep.subr.mxu0 0.0
    %1667 = vmatpush1.msra.mxu0 0.0
    %1668 = vmatprep.subr.mxu0 0.0
    %1669 = vmatpush1.msra.mxu0 %v581
    %1670 = vmatprep.subr.mxu0 0.0
    %1671 = vmatpush1.msra.mxu0 %v579
    %1672 = vmatprep.subr.mxu0 0.0
    %1673 = vmatpush2.msra.mxu0 0.0
    %1674 = vmatprep.subr.mxu0 0.0
    %1675 = vmatpush2.msra.mxu0 0.0
    %1676 = vmatprep.subr.mxu0 0.0
    %1677 = vmatpush2.msra.mxu0 0.0
    %1678 = vmatprep.subr.mxu0 0.0
    %1679 = vmatpush2.msra.mxu0 0.0
    %1680 = vmatprep.subr.mxu0 0.0
    %1681 = vmatpush2.msra.mxu0 0.0
    %1682 = vmatprep.subr.mxu0 0.0
    %1683 = vmatpush2.msra.mxu0 0.0
    %1684 = vmatprep.subr.mxu0 0.0
    %1685 = vmatpush2.msra.mxu0 0.0
    %1686 = vmatprep.subr.mxu0 0.0
    %1687 = vmatpush2.msra.mxu0 0.0
    %1688 = vmatprep.subr.mxu0 0.0
    %1689 = vmatpush2.msra.mxu0 0.0
    %1690 = vmatprep.subr.mxu0 0.0
    %1691 = vmatpush2.msra.mxu0 0.0
    %1692 = vmatprep.subr.mxu0 0.0
    %1693 = vmatpush2.msra.mxu0 0.0
    %1694 = vmatprep.subr.mxu0 0.0
    %1695 = vmatpush2.msra.mxu0 0.0
    %1696 = vmatprep.subr.mxu0 0.0
    %1697 = vmatpush2.msra.mxu0 0.0
    %1698 = vmatprep.subr.mxu0 0.0
    %1699 = vmatpush2.msra.mxu0 0.0
    %1700 = vmatprep.subr.mxu0 0.0
    %1701 = vmatpush2.msra.mxu0 0.0
    %1702 = vmatprep.subr.mxu0 0.0
    %1703 = vmatpush2.msra.mxu0 0.0
    %1704 = vmatprep.mubr.f32.mxu0 0.0
    %1705 = vmatmul.mubr.f32.gmra.mxu0 %v1635
    %v1706 = vpop.f32.mrf.mxu0
    %v1707 = vadd.f32 0.0, %v1706
    %v1708 = vpop.f32.mrf.mxu0
    %1709 = vmatprep.mubr.f32.mxu0 0.0
    %1710 = vmatmul.mubr.f32.gmra.mxu0 %v1638
    %v1711 = vpop.f32.mrf.mxu0
    %v1712 = vadd.f32 0.0, %v1711
    %v1713 = vpop.f32.mrf.mxu0
    %1714 = vdwg.mxu0
    %v1716 = vsel %vm1295, %v1462, 0
    %v1719 = vsel %vm1295, %v1463, 0
    %1721 = vmatprep.subr.mxu0 0.0
    %1722 = vmatpush1.msra.mxu0 0.0
    %1723 = vmatprep.subr.mxu0 0.0
    %1724 = vmatpush1.msra.mxu0 0.0
    %1725 = vmatprep.subr.mxu0 0.0
    %1726 = vmatpush1.msra.mxu0 0.0
    %1727 = vmatprep.subr.mxu0 0.0
    %1728 = vmatpush1.msra.mxu0 0.0
    %1729 = vmatprep.subr.mxu0 0.0
    %1730 = vmatpush1.msra.mxu0 0.0
    %1731 = vmatprep.subr.mxu0 0.0
    %1732 = vmatpush1.msra.mxu0 0.0
    %1733 = vmatprep.subr.mxu0 0.0
    %1734 = vmatpush1.msra.mxu0 0.0
    %1735 = vmatprep.subr.mxu0 0.0
    %1736 = vmatpush1.msra.mxu0 0.0
    %1737 = vmatprep.subr.mxu0 0.0
    %1738 = vmatpush1.msra.mxu0 0.0
    %1739 = vmatprep.subr.mxu0 0.0
    %1740 = vmatpush1.msra.mxu0 0.0
    %1741 = vmatprep.subr.mxu0 0.0
    %1742 = vmatpush1.msra.mxu0 0.0
    %1743 = vmatprep.subr.mxu0 0.0
    %1744 = vmatpush1.msra.mxu0 0.0
    %1745 = vmatprep.subr.mxu0 0.0
    %1746 = vmatpush1.msra.mxu0 0.0
    %1747 = vmatprep.subr.mxu0 0.0
    %1748 = vmatpush1.msra.mxu0 0.0
    %1749 = vmatprep.subr.mxu0 0.0
    %1750 = vmatpush1.msra.mxu0 %v585
    %1751 = vmatprep.subr.mxu0 0.0
    %1752 = vmatpush1.msra.mxu0 %v583
    %1753 = vmatprep.subr.mxu0 0.0
    %1754 = vmatpush2.msra.mxu0 0.0
    %1755 = vmatprep.subr.mxu0 0.0
    %1756 = vmatpush2.msra.mxu0 0.0
    %1757 = vmatprep.subr.mxu0 0.0
    %1758 = vmatpush2.msra.mxu0 0.0
    %1759 = vmatprep.subr.mxu0 0.0
    %1760 = vmatpush2.msra.mxu0 0.0
    %1761 = vmatprep.subr.mxu0 0.0
    %1762 = vmatpush2.msra.mxu0 0.0
    %1763 = vmatprep.subr.mxu0 0.0
    %1764 = vmatpush2.msra.mxu0 0.0
    %1765 = vmatprep.subr.mxu0 0.0
    %1766 = vmatpush2.msra.mxu0 0.0
    %1767 = vmatprep.subr.mxu0 0.0
    %1768 = vmatpush2.msra.mxu0 0.0
    %1769 = vmatprep.subr.mxu0 0.0
    %1770 = vmatpush2.msra.mxu0 0.0
    %1771 = vmatprep.subr.mxu0 0.0
    %1772 = vmatpush2.msra.mxu0 0.0
    %1773 = vmatprep.subr.mxu0 0.0
    %1774 = vmatpush2.msra.mxu0 0.0
    %1775 = vmatprep.subr.mxu0 0.0
    %1776 = vmatpush2.msra.mxu0 0.0
    %1777 = vmatprep.subr.mxu0 0.0
    %1778 = vmatpush2.msra.mxu0 0.0
    %1779 = vmatprep.subr.mxu0 0.0
    %1780 = vmatpush2.msra.mxu0 0.0
    %1781 = vmatprep.subr.mxu0 0.0
    %1782 = vmatpush2.msra.mxu0 0.0
    %1783 = vmatprep.subr.mxu0 0.0
    %1784 = vmatpush2.msra.mxu0 0.0
    %1785 = vmatprep.mubr.f32.mxu0 0.0
    %1786 = vmatmul.mubr.f32.gmra.mxu0 %v1716
    %v1787 = vpop.f32.mrf.mxu0
    %v1788 = vadd.f32 0.0, %v1787
    %v1789 = vpop.f32.mrf.mxu0
    %1790 = vmatprep.mubr.f32.mxu0 0.0
    %1791 = vmatmul.mubr.f32.gmra.mxu0 %v1719
    %v1792 = vpop.f32.mrf.mxu0
    %v1793 = vadd.f32 0.0, %v1792
    %v1794 = vpop.f32.mrf.mxu0
    %1795 = vdwg.mxu0
    %v1797 = vsel %vm1295, %v1464, 0
    %v1800 = vsel %vm1295, %v1465, 0
    %1802 = vmatprep.subr.mxu0 0.0
    %1803 = vmatpush1.msra.mxu0 0.0
    %1804 = vmatprep.subr.mxu0 0.0
    %1805 = vmatpush1.msra.mxu0 0.0
    %1806 = vmatprep.subr.mxu0 0.0
    %1807 = vmatpush1.msra.mxu0 0.0
    %1808 = vmatprep.subr.mxu0 0.0
    %1809 = vmatpush1.msra.mxu0 0.0
    %1810 = vmatprep.subr.mxu0 0.0
    %1811 = vmatpush1.msra.mxu0 0.0
    %1812 = vmatprep.subr.mxu0 0.0
    %1813 = vmatpush1.msra.mxu0 0.0
    %1814 = vmatprep.subr.mxu0 0.0
    %1815 = vmatpush1.msra.mxu0 0.0
    %1816 = vmatprep.subr.mxu0 0.0
    %1817 = vmatpush1.msra.mxu0 0.0
    %1818 = vmatprep.subr.mxu0 0.0
    %1819 = vmatpush1.msra.mxu0 0.0
    %1820 = vmatprep.subr.mxu0 0.0
    %1821 = vmatpush1.msra.mxu0 0.0
    %1822 = vmatprep.subr.mxu0 0.0
    %1823 = vmatpush1.msra.mxu0 0.0
    %1824 = vmatprep.subr.mxu0 0.0
    %1825 = vmatpush1.msra.mxu0 0.0
    %1826 = vmatprep.subr.mxu0 0.0
    %1827 = vmatpush1.msra.mxu0 0.0
    %1828 = vmatprep.subr.mxu0 0.0
    %1829 = vmatpush1.msra.mxu0 0.0
    %1830 = vmatprep.subr.mxu0 0.0
    %1831 = vmatpush1.msra.mxu0 %v593
    %1832 = vmatprep.subr.mxu0 0.0
    %1833 = vmatpush1.msra.mxu0 %v591
    %1834 = vmatprep.subr.mxu0 0.0
    %1835 = vmatpush2.msra.mxu0 0.0
    %1836 = vmatprep.subr.mxu0 0.0
    %1837 = vmatpush2.msra.mxu0 0.0
    %1838 = vmatprep.subr.mxu0 0.0
    %1839 = vmatpush2.msra.mxu0 0.0
    %1840 = vmatprep.subr.mxu0 0.0
    %1841 = vmatpush2.msra.mxu0 0.0
    %1842 = vmatprep.subr.mxu0 0.0
    %1843 = vmatpush2.msra.mxu0 0.0
    %1844 = vmatprep.subr.mxu0 0.0
    %1845 = vmatpush2.msra.mxu0 0.0
    %1846 = vmatprep.subr.mxu0 0.0
    %1847 = vmatpush2.msra.mxu0 0.0
    %1848 = vmatprep.subr.mxu0 0.0
    %1849 = vmatpush2.msra.mxu0 0.0
    %1850 = vmatprep.subr.mxu0 0.0
    %1851 = vmatpush2.msra.mxu0 0.0
    %1852 = vmatprep.subr.mxu0 0.0
    %1853 = vmatpush2.msra.mxu0 0.0
    %1854 = vmatprep.subr.mxu0 0.0
    %1855 = vmatpush2.msra.mxu0 0.0
    %1856 = vmatprep.subr.mxu0 0.0
    %1857 = vmatpush2.msra.mxu0 0.0
    %1858 = vmatprep.subr.mxu0 0.0
    %1859 = vmatpush2.msra.mxu0 0.0
    %1860 = vmatprep.subr.mxu0 0.0
    %1861 = vmatpush2.msra.mxu0 0.0
    %1862 = vmatprep.subr.mxu0 0.0
    %1863 = vmatpush2.msra.mxu0 0.0
    %1864 = vmatprep.subr.mxu0 0.0
    %1865 = vmatpush2.msra.mxu0 0.0
    %1866 = vmatprep.mubr.f32.mxu0 0.0
    %1867 = vmatmul.mubr.f32.gmra.mxu0 %v1797
    %v1868 = vpop.f32.mrf.mxu0
    %v1869 = vadd.f32 0.0, %v1868
    %v1870 = vpop.f32.mrf.mxu0
    %1871 = vmatprep.mubr.f32.mxu0 0.0
    %1872 = vmatmul.mubr.f32.gmra.mxu0 %v1800
    %v1873 = vpop.f32.mrf.mxu0
    %v1874 = vadd.f32 0.0, %v1873
    %v1875 = vpop.f32.mrf.mxu0
    %1876 = vdwg.mxu0
    %v1878 = vsel %vm1295, %v1466, 0
    %v1881 = vsel %vm1295, %v1467, 0
    %1883 = vmatprep.subr.mxu0 0.0
    %1884 = vmatpush1.msra.mxu0 0.0
    %1885 = vmatprep.subr.mxu0 0.0
    %1886 = vmatpush1.msra.mxu0 0.0
    %1887 = vmatprep.subr.mxu0 0.0
    %1888 = vmatpush1.msra.mxu0 0.0
    %1889 = vmatprep.subr.mxu0 0.0
    %1890 = vmatpush1.msra.mxu0 0.0
    %1891 = vmatprep.subr.mxu0 0.0
    %1892 = vmatpush1.msra.mxu0 0.0
    %1893 = vmatprep.subr.mxu0 0.0
    %1894 = vmatpush1.msra.mxu0 0.0
    %1895 = vmatprep.subr.mxu0 0.0
    %1896 = vmatpush1.msra.mxu0 0.0
    %1897 = vmatprep.subr.mxu0 0.0
    %1898 = vmatpush1.msra.mxu0 0.0
    %1899 = vmatprep.subr.mxu0 0.0
    %1900 = vmatpush1.msra.mxu0 0.0
    %1901 = vmatprep.subr.mxu0 0.0
    %1902 = vmatpush1.msra.mxu0 0.0
    %1903 = vmatprep.subr.mxu0 0.0
    %1904 = vmatpush1.msra.mxu0 0.0
    %1905 = vmatprep.subr.mxu0 0.0
    %1906 = vmatpush1.msra.mxu0 0.0
    %1907 = vmatprep.subr.mxu0 0.0
    %1908 = vmatpush1.msra.mxu0 0.0
    %1909 = vmatprep.subr.mxu0 0.0
    %1910 = vmatpush1.msra.mxu0 0.0
    %1911 = vmatprep.subr.mxu0 0.0
    %1912 = vmatpush1.msra.mxu0 %v597
    %1913 = vmatprep.subr.mxu0 0.0
    %1914 = vmatpush1.msra.mxu0 %v595
    %1915 = vmatprep.subr.mxu0 0.0
    %1916 = vmatpush2.msra.mxu0 0.0
    %1917 = vmatprep.subr.mxu0 0.0
    %1918 = vmatpush2.msra.mxu0 0.0
    %1919 = vmatprep.subr.mxu0 0.0
    %1920 = vmatpush2.msra.mxu0 0.0
    %1921 = vmatprep.subr.mxu0 0.0
    %1922 = vmatpush2.msra.mxu0 0.0
    %1923 = vmatprep.subr.mxu0 0.0
    %1924 = vmatpush2.msra.mxu0 0.0
    %1925 = vmatprep.subr.mxu0 0.0
    %1926 = vmatpush2.msra.mxu0 0.0
    %1927 = vmatprep.subr.mxu0 0.0
    %1928 = vmatpush2.msra.mxu0 0.0
    %1929 = vmatprep.subr.mxu0 0.0
    %1930 = vmatpush2.msra.mxu0 0.0
    %1931 = vmatprep.subr.mxu0 0.0
    %1932 = vmatpush2.msra.mxu0 0.0
    %1933 = vmatprep.subr.mxu0 0.0
    %1934 = vmatpush2.msra.mxu0 0.0
    %1935 = vmatprep.subr.mxu0 0.0
    %1936 = vmatpush2.msra.mxu0 0.0
    %1937 = vmatprep.subr.mxu0 0.0
    %1938 = vmatpush2.msra.mxu0 0.0
    %1939 = vmatprep.subr.mxu0 0.0
    %1940 = vmatpush2.msra.mxu0 0.0
    %1941 = vmatprep.subr.mxu0 0.0
    %1942 = vmatpush2.msra.mxu0 0.0
    %1943 = vmatprep.subr.mxu0 0.0
    %1944 = vmatpush2.msra.mxu0 0.0
    %1945 = vmatprep.subr.mxu0 0.0
    %1946 = vmatpush2.msra.mxu0 0.0
    %1947 = vmatprep.mubr.f32.mxu0 0.0
    %1948 = vmatmul.mubr.f32.gmra.mxu0 %v1878
    %v1949 = vpop.f32.mrf.mxu0
    %v1950 = vadd.f32 0.0, %v1949
    %v1951 = vpop.f32.mrf.mxu0
    %1952 = vmatprep.mubr.f32.mxu0 0.0
    %1953 = vmatmul.mubr.f32.gmra.mxu0 %v1881
    %v1954 = vpop.f32.mrf.mxu0
    %v1955 = vadd.f32 0.0, %v1954
    %v1956 = vpop.f32.mrf.mxu0
    %1957 = vdwg.mxu0
    %v1959 = vsel %vm1295, %v1468, 0
    %v1962 = vsel %vm1295, %v1469, 0
    %1964 = vmatprep.subr.mxu0 0.0
    %1965 = vmatpush1.msra.mxu0 0.0
    %1966 = vmatprep.subr.mxu0 0.0
    %1967 = vmatpush1.msra.mxu0 0.0
    %1968 = vmatprep.subr.mxu0 0.0
    %1969 = vmatpush1.msra.mxu0 0.0
    %1970 = vmatprep.subr.mxu0 0.0
    %1971 = vmatpush1.msra.mxu0 0.0
    %1972 = vmatprep.subr.mxu0 0.0
    %1973 = vmatpush1.msra.mxu0 0.0
    %1974 = vmatprep.subr.mxu0 0.0
    %1975 = vmatpush1.msra.mxu0 0.0
    %1976 = vmatprep.subr.mxu0 0.0
    %1977 = vmatpush1.msra.mxu0 0.0
    %1978 = vmatprep.subr.mxu0 0.0
    %1979 = vmatpush1.msra.mxu0 0.0
    %1980 = vmatprep.subr.mxu0 0.0
    %1981 = vmatpush1.msra.mxu0 0.0
    %1982 = vmatprep.subr.mxu0 0.0
    %1983 = vmatpush1.msra.mxu0 0.0
    %1984 = vmatprep.subr.mxu0 0.0
    %1985 = vmatpush1.msra.mxu0 0.0
    %1986 = vmatprep.subr.mxu0 0.0
    %1987 = vmatpush1.msra.mxu0 0.0
    %1988 = vmatprep.subr.mxu0 0.0
    %1989 = vmatpush1.msra.mxu0 0.0
    %1990 = vmatprep.subr.mxu0 0.0
    %1991 = vmatpush1.msra.mxu0 0.0
    %1992 = vmatprep.subr.mxu0 0.0
    %1993 = vmatpush1.msra.mxu0 %v605
    %1994 = vmatprep.subr.mxu0 0.0
    %1995 = vmatpush1.msra.mxu0 %v603
    %1996 = vmatprep.subr.mxu0 0.0
    %1997 = vmatpush2.msra.mxu0 0.0
    %1998 = vmatprep.subr.mxu0 0.0
    %1999 = vmatpush2.msra.mxu0 0.0
    %2000 = vmatprep.subr.mxu0 0.0
    %2001 = vmatpush2.msra.mxu0 0.0
    %2002 = vmatprep.subr.mxu0 0.0
    %2003 = vmatpush2.msra.mxu0 0.0
    %2004 = vmatprep.subr.mxu0 0.0
    %2005 = vmatpush2.msra.mxu0 0.0
    %2006 = vmatprep.subr.mxu0 0.0
    %2007 = vmatpush2.msra.mxu0 0.0
    %2008 = vmatprep.subr.mxu0 0.0
    %2009 = vmatpush2.msra.mxu0 0.0
    %2010 = vmatprep.subr.mxu0 0.0
    %2011 = vmatpush2.msra.mxu0 0.0
    %2012 = vmatprep.subr.mxu0 0.0
    %2013 = vmatpush2.msra.mxu0 0.0
    %2014 = vmatprep.subr.mxu0 0.0
    %2015 = vmatpush2.msra.mxu0 0.0
    %2016 = vmatprep.subr.mxu0 0.0
    %2017 = vmatpush2.msra.mxu0 0.0
    %2018 = vmatprep.subr.mxu0 0.0
    %2019 = vmatpush2.msra.mxu0 0.0
    %2020 = vmatprep.subr.mxu0 0.0
    %2021 = vmatpush2.msra.mxu0 0.0
    %2022 = vmatprep.subr.mxu0 0.0
    %2023 = vmatpush2.msra.mxu0 0.0
    %2024 = vmatprep.subr.mxu0 0.0
    %2025 = vmatpush2.msra.mxu0 0.0
    %2026 = vmatprep.subr.mxu0 0.0
    %2027 = vmatpush2.msra.mxu0 0.0
    %2028 = vmatprep.mubr.f32.mxu0 0.0
    %2029 = vmatmul.mubr.f32.gmra.mxu0 %v1959
    %v2030 = vpop.f32.mrf.mxu0
    %v2031 = vadd.f32 0.0, %v2030
    %v2032 = vpop.f32.mrf.mxu0
    %2033 = vmatprep.mubr.f32.mxu0 0.0
    %2034 = vmatmul.mubr.f32.gmra.mxu0 %v1962
    %v2035 = vpop.f32.mrf.mxu0
    %v2036 = vadd.f32 0.0, %v2035
    %v2037 = vpop.f32.mrf.mxu0
    %2038 = vdwg.mxu0
    %v2040 = vsel %vm1295, %v1470, 0
    %v2043 = vsel %vm1295, %v1471, 0
    %2045 = vmatprep.subr.mxu0 0.0
    %2046 = vmatpush1.msra.mxu0 0.0
    %2047 = vmatprep.subr.mxu0 0.0
    %2048 = vmatpush1.msra.mxu0 0.0
    %2049 = vmatprep.subr.mxu0 0.0
    %2050 = vmatpush1.msra.mxu0 0.0
    %2051 = vmatprep.subr.mxu0 0.0
    %2052 = vmatpush1.msra.mxu0 0.0
    %2053 = vmatprep.subr.mxu0 0.0
    %2054 = vmatpush1.msra.mxu0 0.0
    %2055 = vmatprep.subr.mxu0 0.0
    %2056 = vmatpush1.msra.mxu0 0.0
    %2057 = vmatprep.subr.mxu0 0.0
    %2058 = vmatpush1.msra.mxu0 0.0
    %2059 = vmatprep.subr.mxu0 0.0
    %2060 = vmatpush1.msra.mxu0 0.0
    %2061 = vmatprep.subr.mxu0 0.0
    %2062 = vmatpush1.msra.mxu0 0.0
    %2063 = vmatprep.subr.mxu0 0.0
    %2064 = vmatpush1.msra.mxu0 0.0
    %2065 = vmatprep.subr.mxu0 0.0
    %2066 = vmatpush1.msra.mxu0 0.0
    %2067 = vmatprep.subr.mxu0 0.0
    %2068 = vmatpush1.msra.mxu0 0.0
    %2069 = vmatprep.subr.mxu0 0.0
    %2070 = vmatpush1.msra.mxu0 0.0
    %2071 = vmatprep.subr.mxu0 0.0
    %2072 = vmatpush1.msra.mxu0 0.0
    %2073 = vmatprep.subr.mxu0 0.0
    %2074 = vmatpush1.msra.mxu0 %v609
    %2075 = vmatprep.subr.mxu0 0.0
    %2076 = vmatpush1.msra.mxu0 %v607
    %2077 = vmatprep.subr.mxu0 0.0
    %2078 = vmatpush2.msra.mxu0 0.0
    %2079 = vmatprep.subr.mxu0 0.0
    %2080 = vmatpush2.msra.mxu0 0.0
    %2081 = vmatprep.subr.mxu0 0.0
    %2082 = vmatpush2.msra.mxu0 0.0
    %2083 = vmatprep.subr.mxu0 0.0
    %2084 = vmatpush2.msra.mxu0 0.0
    %2085 = vmatprep.subr.mxu0 0.0
    %2086 = vmatpush2.msra.mxu0 0.0
    %2087 = vmatprep.subr.mxu0 0.0
    %2088 = vmatpush2.msra.mxu0 0.0
    %2089 = vmatprep.subr.mxu0 0.0
    %2090 = vmatpush2.msra.mxu0 0.0
    %2091 = vmatprep.subr.mxu0 0.0
    %2092 = vmatpush2.msra.mxu0 0.0
    %2093 = vmatprep.subr.mxu0 0.0
    %2094 = vmatpush2.msra.mxu0 0.0
    %2095 = vmatprep.subr.mxu0 0.0
    %2096 = vmatpush2.msra.mxu0 0.0
    %2097 = vmatprep.subr.mxu0 0.0
    %2098 = vmatpush2.msra.mxu0 0.0
    %2099 = vmatprep.subr.mxu0 0.0
    %2100 = vmatpush2.msra.mxu0 0.0
    %2101 = vmatprep.subr.mxu0 0.0
    %2102 = vmatpush2.msra.mxu0 0.0
    %2103 = vmatprep.subr.mxu0 0.0
    %2104 = vmatpush2.msra.mxu0 0.0
    %2105 = vmatprep.subr.mxu0 0.0
    %2106 = vmatpush2.msra.mxu0 0.0
    %2107 = vmatprep.subr.mxu0 0.0
    %2108 = vmatpush2.msra.mxu0 0.0
    %2109 = vmatprep.mubr.f32.mxu0 0.0
    %2110 = vmatmul.mubr.f32.gmra.mxu0 %v2040
    %v2111 = vpop.f32.mrf.mxu0
    %v2112 = vadd.f32 0.0, %v2111
    %v2113 = vpop.f32.mrf.mxu0
    %2114 = vmatprep.mubr.f32.mxu0 0.0
    %2115 = vmatmul.mubr.f32.gmra.mxu0 %v2043
    %v2116 = vpop.f32.mrf.mxu0
    %v2117 = vadd.f32 0.0, %v2116
    %v2118 = vpop.f32.mrf.mxu0
    %2119 = vdwg.mxu0
    %2124 = vrot.lane.b32.xlu0 %v1707, 32
    %v2125 = vpop.permute.xlu0 %2124
    %2126 = vrot.lane.b32.xlu0 %v1712, 32
    %v2127 = vpop.permute.xlu0 %2126
    %2128 = vrot.lane.b32.xlu0 %v1788, 32
    %v2129 = vpop.permute.xlu0 %2128
    %2130 = vrot.lane.b32.xlu0 %v1793, 32
    %v2131 = vpop.permute.xlu0 %2130
    %2140 = vrot.lane.b32.xlu0 %v1869, 64
    %v2141 = vpop.permute.xlu0 %2140
    %2142 = vrot.lane.b32.xlu0 %v1874, 64
    %v2143 = vpop.permute.xlu0 %2142
    %2144 = vrot.lane.b32.xlu0 %v1950, 64
    %v2145 = vpop.permute.xlu0 %2144
    %2146 = vrot.lane.b32.xlu0 %v1955, 64
    %v2147 = vpop.permute.xlu0 %2146
    %2156 = vrot.lane.b32.xlu0 %v2031, 96
    %v2157 = vpop.permute.xlu0 %2156
    %2158 = vrot.lane.b32.xlu0 %v2036, 96
    %v2159 = vpop.permute.xlu0 %2158
    %2160 = vrot.lane.b32.xlu0 %v2112, 96
    %v2161 = vpop.permute.xlu0 %2160
    %2162 = vrot.lane.b32.xlu0 %v2117, 96
    %v2163 = vpop.permute.xlu0 %2162
    %v2168 = vsel %vm614, %v1545, %v2125
    %v2169 = vsel %vm614, %v1550, %v2127
    %v2170 = vsel %vm614, %v1626, %v2129
    %v2171 = vsel %vm614, %v1631, %v2131
    %vm2172 = vcmask 523264
    %v2173 = vsel %vm2172, %v2168, %v2141
    %v2174 = vsel %vm2172, %v2169, %v2143
    %v2175 = vsel %vm2172, %v2170, %v2145
    %v2176 = vsel %vm2172, %v2171, %v2147
    %vm2177 = vcmask 785408
    %v2178 = vsel %vm2177, %v2173, %v2157
    %v2179 = vsel %vm2177, %v2174, %v2159
    %v2180 = vsel %vm2177, %v2175, %v2161
    %v2181 = vsel %vm2177, %v2176, %v2163
    %v2182 = vld [vmem:[#allocation10] sm:$0xff]
    %v2183 = vld [vmem:[#allocation10 + $0x8] sm:$0xff]
    %v2184 = vld [vmem:[#allocation10 + $0x10] sm:$0xff]
    %v2185 = vld [vmem:[#allocation10 + $0x18] sm:$0xff]
    %v2186 = vld [vmem:[#allocation10 + $0x20] sm:$0xff]
    %v2187 = vld [vmem:[#allocation10 + $0x28] sm:$0xff]
    %v2188 = vld [vmem:[#allocation10 + $0x30] sm:$0xff]
    %v2189 = vld [vmem:[#allocation10 + $0x38] sm:$0xff]
    %v2190 = vld [vmem:[#allocation10 + $0x40] sm:$0xff]
    %v2191 = vld [vmem:[#allocation10 + $0x48] sm:$0xff]
    %v2192 = vld [vmem:[#allocation10 + $0x50] sm:$0xff]
    %v2193 = vld [vmem:[#allocation10 + $0x58] sm:$0xff]
    %v2194 = vld [vmem:[#allocation10 + $0x60] sm:$0xff]
    %v2195 = vld [vmem:[#allocation10 + $0x68] sm:$0xff]
    %v2196 = vld [vmem:[#allocation10 + $0x70] sm:$0xff]
    %v2197 = vld [vmem:[#allocation10 + $0x78] sm:$0xff]
    %v2198 = vlaneseq
    %v2199 = vshrl.u32 %v2198, 7
    %v2200 = vsub.s32 1, %v2199
    %v2201 = vrot.slane %v162, %v2200
    %2202 = vmatprep.subr.mxu0 0.0
    %2203 = vmatpush1.msra.mxu0 %v2197
    %2204 = vmatprep.subr.mxu0 0.0
    %2205 = vmatpush1.msra.mxu0 %v2196
    %2206 = vmatprep.subr.mxu0 0.0
    %2207 = vmatpush1.msra.mxu0 %v2195
    %2208 = vmatprep.subr.mxu0 0.0
    %2209 = vmatpush1.msra.mxu0 %v2194
    %2210 = vmatprep.subr.mxu0 0.0
    %2211 = vmatpush1.msra.mxu0 %v2193
    %2212 = vmatprep.subr.mxu0 0.0
    %2213 = vmatpush1.msra.mxu0 %v2192
    %2214 = vmatprep.subr.mxu0 0.0
    %2215 = vmatpush1.msra.mxu0 %v2191
    %2216 = vmatprep.subr.mxu0 0.0
    %2217 = vmatpush1.msra.mxu0 %v2190
    %2218 = vmatprep.subr.mxu0 0.0
    %2219 = vmatpush1.msra.mxu0 %v2189
    %2220 = vmatprep.subr.mxu0 0.0
    %2221 = vmatpush1.msra.mxu0 %v2188
    %2222 = vmatprep.subr.mxu0 0.0
    %2223 = vmatpush1.msra.mxu0 %v2187
    %2224 = vmatprep.subr.mxu0 0.0
    %2225 = vmatpush1.msra.mxu0 %v2186
    %2226 = vmatprep.subr.mxu0 0.0
    %2227 = vmatpush1.msra.mxu0 %v2185
    %2228 = vmatprep.subr.mxu0 0.0
    %2229 = vmatpush1.msra.mxu0 %v2184
    %2230 = vmatprep.subr.mxu0 0.0
    %2231 = vmatpush1.msra.mxu0 %v2183
    %2232 = vmatprep.subr.mxu0 0.0
    %2233 = vmatpush1.msra.mxu0 %v2182
    %2234 = vmatprep.subr.mxu0 0.0
    %2235 = vmatpush2.msra.mxu0 0.0
    %2236 = vmatprep.subr.mxu0 0.0
    %2237 = vmatpush2.msra.mxu0 0.0
    %2238 = vmatprep.subr.mxu0 0.0
    %2239 = vmatpush2.msra.mxu0 0.0
    %2240 = vmatprep.subr.mxu0 0.0
    %2241 = vmatpush2.msra.mxu0 0.0
    %2242 = vmatprep.subr.mxu0 0.0
    %2243 = vmatpush2.msra.mxu0 0.0
    %2244 = vmatprep.subr.mxu0 0.0
    %2245 = vmatpush2.msra.mxu0 0.0
    %2246 = vmatprep.subr.mxu0 0.0
    %2247 = vmatpush2.msra.mxu0 0.0
    %2248 = vmatprep.subr.mxu0 0.0
    %2249 = vmatpush2.msra.mxu0 0.0
    %2250 = vmatprep.subr.mxu0 0.0
    %2251 = vmatpush2.msra.mxu0 0.0
    %2252 = vmatprep.subr.mxu0 0.0
    %2253 = vmatpush2.msra.mxu0 0.0
    %2254 = vmatprep.subr.mxu0 0.0
    %2255 = vmatpush2.msra.mxu0 0.0
    %2256 = vmatprep.subr.mxu0 0.0
    %2257 = vmatpush2.msra.mxu0 0.0
    %2258 = vmatprep.subr.mxu0 0.0
    %2259 = vmatpush2.msra.mxu0 0.0
    %2260 = vmatprep.subr.mxu0 0.0
    %2261 = vmatpush2.msra.mxu0 0.0
    %2262 = vmatprep.subr.mxu0 0.0
    %2263 = vmatpush2.msra.mxu0 0.0
    %2264 = vmatprep.subr.mxu0 0.0
    %2265 = vmatpush2.msra.mxu0 0.0
    %2266 = vmatprep.mubr.f32.mxu0 0.0
    %2267 = vmatmul.mubr.f32.gmra.mxu0 %v2178
    %v2268 = vpop.f32.mrf.mxu0
    %v2269 = vadd.f32 %v2201, %v2268
    %v2270 = vpop.f32.mrf.mxu0
    %2271 = vmatprep.mubr.f32.mxu0 0.0
    %2272 = vmatmul.mubr.f32.gmra.mxu0 %v2179
    %v2273 = vpop.f32.mrf.mxu0
    %v2274 = vadd.f32 %v2201, %v2273
    %v2275 = vpop.f32.mrf.mxu0
    %2276 = vmatprep.mubr.f32.mxu0 0.0
    %2277 = vmatmul.mubr.f32.gmra.mxu0 %v2180
    %v2278 = vpop.f32.mrf.mxu0
    %v2279 = vadd.f32 %v2201, %v2278
    %v2280 = vpop.f32.mrf.mxu0
    %2281 = vmatprep.mubr.f32.mxu0 0.0
    %2282 = vmatmul.mubr.f32.gmra.mxu0 %v2181
    %v2283 = vpop.f32.mrf.mxu0
    %v2284 = vadd.f32 %v2201, %v2283
    %v2285 = vpop.f32.mrf.mxu0
    %2286 = vdwg.mxu0
    %v2287 = vadd.f32 %v275, %v2269
    %v2288 = vadd.f32 %v276, %v2274
    %v2289 = vadd.f32 %v277, %v2279
    %v2290 = vadd.f32 %v278, %v2284
    %2291 = vadd.xlane.f32.xlu0 %v2287
    %v2292 = vpop.xlane.xlu0 %2291
    %2293 = vadd.xlane.f32.xlu0 %v2288
    %v2294 = vpop.xlane.xlu0 %2293
    %2295 = vadd.xlane.f32.xlu0 %v2289
    %v2296 = vpop.xlane.xlu0 %2295
    %2297 = vadd.xlane.f32.xlu0 %v2290
    %v2298 = vpop.xlane.xlu0 %2297
    %v2299 = vrcp.pop 128.0
    %v2300 = vmul.f32 %v2292, %v2299
    %v2301 = vmul.f32 %v2294, %v2299
    %v2302 = vmul.f32 %v2296, %v2299
    %v2303 = vmul.f32 %v2298, %v2299
    %v2304 = vsub.f32 %v2287, %v2300
    %v2305 = vsub.f32 %v2288, %v2301
    %v2306 = vsub.f32 %v2289, %v2302
    %v2307 = vsub.f32 %v2290, %v2303
    %v2308 = vmul.f32 %v2304, %v2304
    %v2309 = vmul.f32 %v2305, %v2305
    %v2310 = vmul.f32 %v2306, %v2306
    %v2311 = vmul.f32 %v2307, %v2307
    %2312 = vadd.xlane.f32.xlu0 %v2308
    %v2313 = vpop.xlane.xlu0 %2312
    %2314 = vadd.xlane.f32.xlu0 %v2309
    %v2315 = vpop.xlane.xlu0 %2314
    %2316 = vadd.xlane.f32.xlu0 %v2310
    %v2317 = vpop.xlane.xlu0 %2316
    %2318 = vadd.xlane.f32.xlu0 %v2311
    %v2319 = vpop.xlane.xlu0 %2318
    %v2320 = vmul.f32 %v2313, %v2299
    %v2321 = vmul.f32 %v2315, %v2299
    %v2322 = vmul.f32 %v2317, %v2299
    %v2323 = vmul.f32 %v2319, %v2299
    %v2324 = vadd.f32 %v2320, 1e-05
    %v2325 = vadd.f32 %v2321, 1e-05
    %v2326 = vadd.f32 %v2322, 1e-05
    %v2327 = vadd.f32 %v2323, 1e-05
    %v2328 = vrsqrt.pop %v2324
    %v2329 = vrsqrt.pop %v2325
    %v2330 = vrsqrt.pop %v2326
    %v2331 = vrsqrt.pop %v2327
    %v2332 = vmul.f32 %v2304, %v2328
    %v2333 = vmul.f32 %v2305, %v2329
    %v2334 = vmul.f32 %v2306, %v2330
    %v2335 = vmul.f32 %v2307, %v2331
    %v2336 = vlaneseq
    %v2337 = vshrl.u32 %v2336, 7
    %v2338 = vsub.s32 2, %v2337
    %v2339 = vrot.slane %v162, %v2338
    %v2340 = vmul.f32 %v2332, %v2339
    %v2341 = vmul.f32 %v2333, %v2339
    %v2342 = vmul.f32 %v2334, %v2339
    %v2343 = vmul.f32 %v2335, %v2339
    %v2344 = vlaneseq
    %v2345 = vshrl.u32 %v2344, 7
    %v2346 = vsub.s32 3, %v2345
    %v2347 = vrot.slane %v162, %v2346
    %v2348 = vadd.f32 %v2340, %v2347
    %v2349 = vadd.f32 %v2341, %v2347
    %v2350 = vadd.f32 %v2342, %v2347
    %v2351 = vadd.f32 %v2343, %v2347
    %v2352 = vld [vmem:[#allocation11] sm:$0xff]
    %v2353 = vld [vmem:[#allocation11 + $0x8] sm:$0xff]
    %v2354 = vld [vmem:[#allocation11 + $0x10] sm:$0xff]
    %v2355 = vld [vmem:[#allocation11 + $0x18] sm:$0xff]
    %v2356 = vld [vmem:[#allocation11 + $0x20] sm:$0xff]
    %v2357 = vld [vmem:[#allocation11 + $0x28] sm:$0xff]
    %v2358 = vld [vmem:[#allocation11 + $0x30] sm:$0xff]
    %v2359 = vld [vmem:[#allocation11 + $0x38] sm:$0xff]
    %v2360 = vld [vmem:[#allocation11 + $0x40] sm:$0xff]
    %v2361 = vld [vmem:[#allocation11 + $0x48] sm:$0xff]
    %v2362 = vld [vmem:[#allocation11 + $0x50] sm:$0xff]
    %v2363 = vld [vmem:[#allocation11 + $0x58] sm:$0xff]
    %v2364 = vld [vmem:[#allocation11 + $0x60] sm:$0xff]
    %v2365 = vld [vmem:[#allocation11 + $0x68] sm:$0xff]
    %v2366 = vld [vmem:[#allocation11 + $0x70] sm:$0xff]
    %v2367 = vld [vmem:[#allocation11 + $0x78] sm:$0xff]
    %v2368 = vld [vmem:[#allocation11 + $0x80] sm:$0xff]
    %v2369 = vld [vmem:[#allocation11 + $0x88] sm:$0xff]
    %v2370 = vld [vmem:[#allocation11 + $0x90] sm:$0xff]
    %v2371 = vld [vmem:[#allocation11 + $0x98] sm:$0xff]
    %v2372 = vld [vmem:[#allocation11 + $0xa0] sm:$0xff]
    %v2373 = vld [vmem:[#allocation11 + $0xa8] sm:$0xff]
    %v2374 = vld [vmem:[#allocation11 + $0xb0] sm:$0xff]
    %v2375 = vld [vmem:[#allocation11 + $0xb8] sm:$0xff]
    %v2376 = vld [vmem:[#allocation11 + $0xc0] sm:$0xff]
    %v2377 = vld [vmem:[#allocation11 + $0xc8] sm:$0xff]
    %v2378 = vld [vmem:[#allocation11 + $0xd0] sm:$0xff]
    %v2379 = vld [vmem:[#allocation11 + $0xd8] sm:$0xff]
    %v2380 = vld [vmem:[#allocation11 + $0xe0] sm:$0xff]
    %v2381 = vld [vmem:[#allocation11 + $0xe8] sm:$0xff]
    %v2382 = vld [vmem:[#allocation11 + $0xf0] sm:$0xff]
    %v2383 = vld [vmem:[#allocation11 + $0xf8] sm:$0xff]
    %v2384 = vld [vmem:[#allocation13] sm:$0x3]
    %v2386 = vlaneseq
    %v2387 = vshrl.u32 %v2386, 7
    %v2388 = vsub.s32 0, %v2387
    %v2389 = vrot.slane %v2384, %v2388
    %v2390 = vlaneseq
    %v2391 = vshrl.u32 %v2390, 7
    %v2392 = vsub.s32 1, %v2391
    %v2393 = vrot.slane %v2384, %v2392
    %2396 = vmatprep.subr.mxu0 %v2383
    %2397 = vmatpush1.msra.mxu0 %v2382
    %2398 = vmatprep.subr.mxu0 %v2381
    %2399 = vmatpush1.msra.mxu0 %v2380
    %2400 = vmatprep.subr.mxu0 %v2379
    %2401 = vmatpush1.msra.mxu0 %v2378
    %2402 = vmatprep.subr.mxu0 %v2377
    %2403 = vmatpush1.msra.mxu0 %v2376
    %2404 = vmatprep.subr.mxu0 %v2375
    %2405 = vmatpush1.msra.mxu0 %v2374
    %2406 = vmatprep.subr.mxu0 %v2373
    %2407 = vmatpush1.msra.mxu0 %v2372
    %2408 = vmatprep.subr.mxu0 %v2371
    %2409 = vmatpush1.msra.mxu0 %v2370
    %2410 = vmatprep.subr.mxu0 %v2369
    %2411 = vmatpush1.msra.mxu0 %v2368
    %2412 = vmatprep.subr.mxu0 %v2367
    %2413 = vmatpush1.msra.mxu0 %v2366
    %2414 = vmatprep.subr.mxu0 %v2365
    %2415 = vmatpush1.msra.mxu0 %v2364
    %2416 = vmatprep.subr.mxu0 %v2363
    %2417 = vmatpush1.msra.mxu0 %v2362
    %2418 = vmatprep.subr.mxu0 %v2361
    %2419 = vmatpush1.msra.mxu0 %v2360
    %2420 = vmatprep.subr.mxu0 %v2359
    %2421 = vmatpush1.msra.mxu0 %v2358
    %2422 = vmatprep.subr.mxu0 %v2357
    %2423 = vmatpush1.msra.mxu0 %v2356
    %2424 = vmatprep.subr.mxu0 %v2355
    %2425 = vmatpush1.msra.mxu0 %v2354
    %2426 = vmatprep.subr.mxu0 %v2353
    %2427 = vmatpush1.msra.mxu0 %v2352
    %2428 = vmatprep.subr.mxu0 0.0
    %2429 = vmatpush2.msra.mxu0 0.0
    %2430 = vmatprep.subr.mxu0 0.0
    %2431 = vmatpush2.msra.mxu0 0.0
    %2432 = vmatprep.subr.mxu0 0.0
    %2433 = vmatpush2.msra.mxu0 0.0
    %2434 = vmatprep.subr.mxu0 0.0
    %2435 = vmatpush2.msra.mxu0 0.0
    %2436 = vmatprep.subr.mxu0 0.0
    %2437 = vmatpush2.msra.mxu0 0.0
    %2438 = vmatprep.subr.mxu0 0.0
    %2439 = vmatpush2.msra.mxu0 0.0
    %2440 = vmatprep.subr.mxu0 0.0
    %2441 = vmatpush2.msra.mxu0 0.0
    %2442 = vmatprep.subr.mxu0 0.0
    %2443 = vmatpush2.msra.mxu0 0.0
    %2444 = vmatprep.subr.mxu0 0.0
    %2445 = vmatpush2.msra.mxu0 0.0
    %2446 = vmatprep.subr.mxu0 0.0
    %2447 = vmatpush2.msra.mxu0 0.0
    %2448 = vmatprep.subr.mxu0 0.0
    %2449 = vmatpush2.msra.mxu0 0.0
    %2450 = vmatprep.subr.mxu0 0.0
    %2451 = vmatpush2.msra.mxu0 0.0
    %2452 = vmatprep.subr.mxu0 0.0
    %2453 = vmatpush2.msra.mxu0 0.0
    %2454 = vmatprep.subr.mxu0 0.0
    %2455 = vmatpush2.msra.mxu0 0.0
    %2456 = vmatprep.subr.mxu0 0.0
    %2457 = vmatpush2.msra.mxu0 0.0
    %2458 = vmatprep.subr.mxu0 0.0
    %2459 = vmatpush2.msra.mxu0 0.0
    %2460 = vmatprep.mubr.f32.mxu0 0.0
    %2461 = vmatmul.mubr.f32.gmra.mxu0 %v2348
    %v2462 = vpop.f32.mrf.mxu0
    %v2463 = vadd.f32 %v2389, %v2462
    %v2464 = vpop.f32.mrf.mxu0
    %v2465 = vadd.f32 %v2393, %v2464
    %2466 = vmatprep.mubr.f32.mxu0 0.0
    %2467 = vmatmul.mubr.f32.gmra.mxu0 %v2349
    %v2468 = vpop.f32.mrf.mxu0
    %v2469 = vadd.f32 %v2389, %v2468
    %v2470 = vpop.f32.mrf.mxu0
    %v2471 = vadd.f32 %v2393, %v2470
    %2472 = vmatprep.mubr.f32.mxu0 0.0
    %2473 = vmatmul.mubr.f32.gmra.mxu0 %v2350
    %v2474 = vpop.f32.mrf.mxu0
    %v2475 = vadd.f32 %v2389, %v2474
    %v2476 = vpop.f32.mrf.mxu0
    %v2477 = vadd.f32 %v2393, %v2476
    %2478 = vmatprep.mubr.f32.mxu0 0.0
    %2479 = vmatmul.mubr.f32.gmra.mxu0 %v2351
    %v2480 = vpop.f32.mrf.mxu0
    %v2481 = vadd.f32 %v2389, %v2480
    %v2482 = vpop.f32.mrf.mxu0
    %v2483 = vadd.f32 %v2393, %v2482
    %2484 = vdwg.mxu0
    %v2485 = vmul.f32 %v2463, 0.5
    %v2486 = vmul.f32 %v2465, 0.5
    %v2487 = vmul.f32 %v2469, 0.5
    %v2488 = vmul.f32 %v2471, 0.5
    %v2489 = vmul.f32 %v2475, 0.5
    %v2490 = vmul.f32 %v2477, 0.5
    %v2491 = vmul.f32 %v2481, 0.5
    %v2492 = vmul.f32 %v2483, 0.5
    %v2493 = vmul.f32 %v2463, 0.70710677
    %v2494 = vmul.f32 %v2465, 0.70710677
    %v2495 = vmul.f32 %v2469, 0.70710677
    %v2496 = vmul.f32 %v2471, 0.70710677
    %v2497 = vmul.f32 %v2475, 0.70710677
    %v2498 = vmul.f32 %v2477, 0.70710677
    %v2499 = vmul.f32 %v2481, 0.70710677
    %v2500 = vmul.f32 %v2483, 0.70710677
    %v2501 = vand.u32 2147483647, %v2493
    %v2502 = vand.u32 2147483647, %v2494
    %v2503 = vand.u32 2147483647, %v2495
    %v2504 = vand.u32 2147483647, %v2496
    %v2505 = vand.u32 2147483647, %v2497
    %v2506 = vand.u32 2147483647, %v2498
    %v2507 = vand.u32 2147483647, %v2499
    %v2508 = vand.u32 2147483647, %v2500
    %v2509 = vmul.f32 %v2501, 0.3275911
    %v2510 = vmul.f32 %v2502, 0.3275911
    %v2511 = vmul.f32 %v2503, 0.3275911
    %v2512 = vmul.f32 %v2504, 0.3275911
    %v2513 = vmul.f32 %v2505, 0.3275911
    %v2514 = vmul.f32 %v2506, 0.3275911
    %v2515 = vmul.f32 %v2507, 0.3275911
    %v2516 = vmul.f32 %v2508, 0.3275911
    %v2517 = vadd.f32 %v2509, 1.0
    %v2518 = vadd.f32 %v2510, 1.0
    %v2519 = vadd.f32 %v2511, 1.0
    %v2520 = vadd.f32 %v2512, 1.0
    %v2521 = vadd.f32 %v2513, 1.0
    %v2522 = vadd.f32 %v2514, 1.0
    %v2523 = vadd.f32 %v2515, 1.0
    %v2524 = vadd.f32 %v2516, 1.0
    %v2525 = vrcp.pop %v2517
    %v2526 = vmul.f32 1.0, %v2525
    %v2527 = vrcp.pop %v2518
    %v2528 = vmul.f32 1.0, %v2527
    %v2529 = vrcp.pop %v2519
    %v2530 = vmul.f32 1.0, %v2529
    %v2531 = vrcp.pop %v2520
    %v2532 = vmul.f32 1.0, %v2531
    %v2533 = vrcp.pop %v2521
    %v2534 = vmul.f32 1.0, %v2533
    %v2535 = vrcp.pop %v2522
    %v2536 = vmul.f32 1.0, %v2535
    %v2537 = vrcp.pop %v2523
    %v2538 = vmul.f32 1.0, %v2537
    %v2539 = vrcp.pop %v2524
    %v2540 = vmul.f32 1.0, %v2539
    %v2541 = vmul.f32 %v2526, 1.0614054
    %v2542 = vmul.f32 %v2528, 1.0614054
    %v2543 = vmul.f32 %v2530, 1.0614054
    %v2544 = vmul.f32 %v2532, 1.0614054
    %v2545 = vmul.f32 %v2534, 1.0614054
    %v2546 = vmul.f32 %v2536, 1.0614054
    %v2547 = vmul.f32 %v2538, 1.0614054
    %v2548 = vmul.f32 %v2540, 1.0614054
    %v2549 = vadd.f32 %v2541, -1.4531521
    %v2550 = vadd.f32 %v2542, -1.4531521
    %v2551 = vadd.f32 %v2543, -1.4531521
    %v2552 = vadd.f32 %v2544, -1.4531521
    %v2553 = vadd.f32 %v2545, -1.4531521
    %v2554 = vadd.f32 %v2546, -1.4531521
    %v2555 = vadd.f32 %v2547, -1.4531521
    %v2556 = vadd.f32 %v2548, -1.4531521
    %v2557 = vmul.f32 %v2549, %v2526
    %v2558 = vmul.f32 %v2550, %v2528
    %v2559 = vmul.f32 %v2551, %v2530
    %v2560 = vmul.f32 %v2552, %v2532
    %v2561 = vmul.f32 %v2553, %v2534
    %v2562 = vmul.f32 %v2554, %v2536
    %v2563 = vmul.f32 %v2555, %v2538
    %v2564 = vmul.f32 %v2556, %v2540
    %v2565 = vadd.f32 %v2557, 1.4214138
    %v2566 = vadd.f32 %v2558, 1.4214138
    %v2567 = vadd.f32 %v2559, 1.4214138
    %v2568 = vadd.f32 %v2560, 1.4214138
    %v2569 = vadd.f32 %v2561, 1.4214138
    %v2570 = vadd.f32 %v2562, 1.4214138
    %v2571 = vadd.f32 %v2563, 1.4214138
    %v2572 = vadd.f32 %v2564, 1.4214138
    %v2573 = vmul.f32 %v2565, %v2526
    %v2574 = vmul.f32 %v2566, %v2528
    %v2575 = vmul.f32 %v2567, %v2530
    %v2576 = vmul.f32 %v2568, %v2532
    %v2577 = vmul.f32 %v2569, %v2534
    %v2578 = vmul.f32 %v2570, %v2536
    %v2579 = vmul.f32 %v2571, %v2538
    %v2580 = vmul.f32 %v2572, %v2540
    %v2581 = vadd.f32 %v2573, -0.28449672
    %v2582 = vadd.f32 %v2574, -0.28449672
    %v2583 = vadd.f32 %v2575, -0.28449672
    %v2584 = vadd.f32 %v2576, -0.28449672
    %v2585 = vadd.f32 %v2577, -0.28449672
    %v2586 = vadd.f32 %v2578, -0.28449672
    %v2587 = vadd.f32 %v2579, -0.28449672
    %v2588 = vadd.f32 %v2580, -0.28449672
    %v2589 = vmul.f32 %v2581, %v2526
    %v2590 = vmul.f32 %v2582, %v2528
    %v2591 = vmul.f32 %v2583, %v2530
    %v2592 = vmul.f32 %v2584, %v2532
    %v2593 = vmul.f32 %v2585, %v2534
    %v2594 = vmul.f32 %v2586, %v2536
    %v2595 = vmul.f32 %v2587, %v2538
    %v2596 = vmul.f32 %v2588, %v2540
    %v2597 = vadd.f32 %v2589, 0.2548296
    %v2598 = vadd.f32 %v2590, 0.2548296
    %v2599 = vadd.f32 %v2591, 0.2548296
    %v2600 = vadd.f32 %v2592, 0.2548296
    %v2601 = vadd.f32 %v2593, 0.2548296
    %v2602 = vadd.f32 %v2594, 0.2548296
    %v2603 = vadd.f32 %v2595, 0.2548296
    %v2604 = vadd.f32 %v2596, 0.2548296
    %v2605 = vmul.f32 %v2597, %v2526
    %v2606 = vmul.f32 %v2598, %v2528
    %v2607 = vmul.f32 %v2599, %v2530
    %v2608 = vmul.f32 %v2600, %v2532
    %v2609 = vmul.f32 %v2601, %v2534
    %v2610 = vmul.f32 %v2602, %v2536
    %v2611 = vmul.f32 %v2603, %v2538
    %v2612 = vmul.f32 %v2604, %v2540
    %v2613 = vsub.f32 0.0, %v2501
    %v2614 = vsub.f32 0.0, %v2502
    %v2615 = vsub.f32 0.0, %v2503
    %v2616 = vsub.f32 0.0, %v2504
    %v2617 = vsub.f32 0.0, %v2505
    %v2618 = vsub.f32 0.0, %v2506
    %v2619 = vsub.f32 0.0, %v2507
    %v2620 = vsub.f32 0.0, %v2508
    %v2621 = vmul.f32 %v2613, %v2501
    %v2622 = vmul.f32 %v2614, %v2502
    %v2623 = vmul.f32 %v2615, %v2503
    %v2624 = vmul.f32 %v2616, %v2504
    %v2625 = vmul.f32 %v2617, %v2505
    %v2626 = vmul.f32 %v2618, %v2506
    %v2627 = vmul.f32 %v2619, %v2507
    %v2628 = vmul.f32 %v2620, %v2508
    %v2629 = vmul.f32 %v2621, 1.442695
    %v2630 = vpow.pop %v2629
    %v2631 = vmul.f32 %v2622, 1.442695
    %v2632 = vpow.pop %v2631
    %v2633 = vmul.f32 %v2623, 1.442695
    %v2634 = vpow.pop %v2633
    %v2635 = vmul.f32 %v2624, 1.442695
    %v2636 = vpow.pop %v2635
    %v2637 = vmul.f32 %v2625, 1.442695
    %v2638 = vpow.pop %v2637
    %v2639 = vmul.f32 %v2626, 1.442695
    %v2640 = vpow.pop %v2639
    %v2641 = vmul.f32 %v2627, 1.442695
    %v2642 = vpow.pop %v2641
    %v2643 = vmul.f32 %v2628, 1.442695
    %v2644 = vpow.pop %v2643
    %v2645 = vmul.f32 %v2605, %v2630
    %v2646 = vmul.f32 %v2606, %v2632
    %v2647 = vmul.f32 %v2607, %v2634
    %v2648 = vmul.f32 %v2608, %v2636
    %v2649 = vmul.f32 %v2609, %v2638
    %v2650 = vmul.f32 %v2610, %v2640
    %v2651 = vmul.f32 %v2611, %v2642
    %v2652 = vmul.f32 %v2612, %v2644
    %v2653 = vsub.f32 1.0, %v2645
    %v2654 = vsub.f32 1.0, %v2646
    %v2655 = vsub.f32 1.0, %v2647
    %v2656 = vsub.f32 1.0, %v2648
    %v2657 = vsub.f32 1.0, %v2649
    %v2658 = vsub.f32 1.0, %v2650
    %v2659 = vsub.f32 1.0, %v2651
    %v2660 = vsub.f32 1.0, %v2652
    %vm2661 = vcmp.lt.f32.partialorder %v2493, 0.0
    %vm2662 = vcmp.lt.f32.partialorder %v2494, 0.0
    %vm2663 = vcmp.lt.f32.partialorder %v2495, 0.0
    %vm2664 = vcmp.lt.f32.partialorder %v2496, 0.0
    %vm2665 = vcmp.lt.f32.partialorder %v2497, 0.0
    %vm2666 = vcmp.lt.f32.partialorder %v2498, 0.0
    %vm2667 = vcmp.lt.f32.partialorder %v2499, 0.0
    %vm2668 = vcmp.lt.f32.partialorder %v2500, 0.0
    %v2669 = vsub.f32 0.0, %v2653
    %v2670 = vsub.f32 0.0, %v2654
    %v2671 = vsub.f32 0.0, %v2655
    %v2672 = vsub.f32 0.0, %v2656
    %v2673 = vsub.f32 0.0, %v2657
    %v2674 = vsub.f32 0.0, %v2658
    %v2675 = vsub.f32 0.0, %v2659
    %v2676 = vsub.f32 0.0, %v2660
    %v2677 = vsel %vm2661, %v2669, %v2653
    %v2678 = vsel %vm2662, %v2670, %v2654
    %v2679 = vsel %vm2663, %v2671, %v2655
    %v2680 = vsel %vm2664, %v2672, %v2656
    %v2681 = vsel %vm2665, %v2673, %v2657
    %v2682 = vsel %vm2666, %v2674, %v2658
    %v2683 = vsel %vm2667, %v2675, %v2659
    %v2684 = vsel %vm2668, %v2676, %v2660
    %v2685 = vadd.f32 %v2677, 1.0
    %v2686 = vadd.f32 %v2678, 1.0
    %v2687 = vadd.f32 %v2679, 1.0
    %v2688 = vadd.f32 %v2680, 1.0
    %v2689 = vadd.f32 %v2681, 1.0
    %v2690 = vadd.f32 %v2682, 1.0
    %v2691 = vadd.f32 %v2683, 1.0
    %v2692 = vadd.f32 %v2684, 1.0
    %v2693 = vmul.f32 %v2485, %v2685
    %v2694 = vmul.f32 %v2486, %v2686
    %v2695 = vmul.f32 %v2487, %v2687
    %v2696 = vmul.f32 %v2488, %v2688
    %v2697 = vmul.f32 %v2489, %v2689
    %v2698 = vmul.f32 %v2490, %v2690
    %v2699 = vmul.f32 %v2491, %v2691
    %v2700 = vmul.f32 %v2492, %v2692
    %v2701 = vld [vmem:[#allocation14] sm:$0xff]
    %v2702 = vld [vmem:[#allocation14 + $0x8] sm:$0xff]
    %v2703 = vld [vmem:[#allocation14 + $0x10] sm:$0xff]
    %v2704 = vld [vmem:[#allocation14 + $0x18] sm:$0xff]
    %v2705 = vld [vmem:[#allocation14 + $0x20] sm:$0xff]
    %v2706 = vld [vmem:[#allocation14 + $0x28] sm:$0xff]
    %v2707 = vld [vmem:[#allocation14 + $0x30] sm:$0xff]
    %v2708 = vld [vmem:[#allocation14 + $0x38] sm:$0xff]
    %v2709 = vld [vmem:[#allocation14 + $0x40] sm:$0xff]
    %v2710 = vld [vmem:[#allocation14 + $0x48] sm:$0xff]
    %v2711 = vld [vmem:[#allocation14 + $0x50] sm:$0xff]
    %v2712 = vld [vmem:[#allocation14 + $0x58] sm:$0xff]
    %v2713 = vld [vmem:[#allocation14 + $0x60] sm:$0xff]
    %v2714 = vld [vmem:[#allocation14 + $0x68] sm:$0xff]
    %v2715 = vld [vmem:[#allocation14 + $0x70] sm:$0xff]
    %v2716 = vld [vmem:[#allocation14 + $0x78] sm:$0xff]
    %v2717 = vld [vmem:[#allocation14 + $0x80] sm:$0xff]
    %v2718 = vld [vmem:[#allocation14 + $0x88] sm:$0xff]
    %v2719 = vld [vmem:[#allocation14 + $0x90] sm:$0xff]
    %v2720 = vld [vmem:[#allocation14 + $0x98] sm:$0xff]
    %v2721 = vld [vmem:[#allocation14 + $0xa0] sm:$0xff]
    %v2722 = vld [vmem:[#allocation14 + $0xa8] sm:$0xff]
    %v2723 = vld [vmem:[#allocation14 + $0xb0] sm:$0xff]
    %v2724 = vld [vmem:[#allocation14 + $0xb8] sm:$0xff]
    %v2725 = vld [vmem:[#allocation14 + $0xc0] sm:$0xff]
    %v2726 = vld [vmem:[#allocation14 + $0xc8] sm:$0xff]
    %v2727 = vld [vmem:[#allocation14 + $0xd0] sm:$0xff]
    %v2728 = vld [vmem:[#allocation14 + $0xd8] sm:$0xff]
    %v2729 = vld [vmem:[#allocation14 + $0xe0] sm:$0xff]
    %v2730 = vld [vmem:[#allocation14 + $0xe8] sm:$0xff]
    %v2731 = vld [vmem:[#allocation14 + $0xf0] sm:$0xff]
    %v2732 = vld [vmem:[#allocation14 + $0xf8] sm:$0xff]
    %v2733 = vlaneseq
    %v2734 = vshrl.u32 %v2733, 7
    %v2735 = vsub.s32 4, %v2734
    %v2736 = vrot.slane %v162, %v2735
    %2737 = vmatprep.subr.mxu0 0.0
    %2738 = vmatpush1.msra.mxu0 %v2716
    %2739 = vmatprep.subr.mxu0 0.0
    %2740 = vmatpush1.msra.mxu0 %v2715
    %2741 = vmatprep.subr.mxu0 0.0
    %2742 = vmatpush1.msra.mxu0 %v2714
    %2743 = vmatprep.subr.mxu0 0.0
    %2744 = vmatpush1.msra.mxu0 %v2713
    %2745 = vmatprep.subr.mxu0 0.0
    %2746 = vmatpush1.msra.mxu0 %v2712
    %2747 = vmatprep.subr.mxu0 0.0
    %2748 = vmatpush1.msra.mxu0 %v2711
    %2749 = vmatprep.subr.mxu0 0.0
    %2750 = vmatpush1.msra.mxu0 %v2710
    %2751 = vmatprep.subr.mxu0 0.0
    %2752 = vmatpush1.msra.mxu0 %v2709
    %2753 = vmatprep.subr.mxu0 0.0
    %2754 = vmatpush1.msra.mxu0 %v2708
    %2755 = vmatprep.subr.mxu0 0.0
    %2756 = vmatpush1.msra.mxu0 %v2707
    %2757 = vmatprep.subr.mxu0 0.0
    %2758 = vmatpush1.msra.mxu0 %v2706
    %2759 = vmatprep.subr.mxu0 0.0
    %2760 = vmatpush1.msra.mxu0 %v2705
    %2761 = vmatprep.subr.mxu0 0.0
    %2762 = vmatpush1.msra.mxu0 %v2704
    %2763 = vmatprep.subr.mxu0 0.0
    %2764 = vmatpush1.msra.mxu0 %v2703
    %2765 = vmatprep.subr.mxu0 0.0
    %2766 = vmatpush1.msra.mxu0 %v2702
    %2767 = vmatprep.subr.mxu0 0.0
    %2768 = vmatpush1.msra.mxu0 %v2701
    %2769 = vmatprep.subr.mxu0 0.0
    %2770 = vmatpush2.msra.mxu0 %v2732
    %2771 = vmatprep.subr.mxu0 0.0
    %2772 = vmatpush2.msra.mxu0 %v2731
    %2773 = vmatprep.subr.mxu0 0.0
    %2774 = vmatpush2.msra.mxu0 %v2730
    %2775 = vmatprep.subr.mxu0 0.0
    %2776 = vmatpush2.msra.mxu0 %v2729
    %2777 = vmatprep.subr.mxu0 0.0
    %2778 = vmatpush2.msra.mxu0 %v2728
    %2779 = vmatprep.subr.mxu0 0.0
    %2780 = vmatpush2.msra.mxu0 %v2727
    %2781 = vmatprep.subr.mxu0 0.0
    %2782 = vmatpush2.msra.mxu0 %v2726
    %2783 = vmatprep.subr.mxu0 0.0
    %2784 = vmatpush2.msra.mxu0 %v2725
    %2785 = vmatprep.subr.mxu0 0.0
    %2786 = vmatpush2.msra.mxu0 %v2724
    %2787 = vmatprep.subr.mxu0 0.0
    %2788 = vmatpush2.msra.mxu0 %v2723
    %2789 = vmatprep.subr.mxu0 0.0
    %2790 = vmatpush2.msra.mxu0 %v2722
    %2791 = vmatprep.subr.mxu0 0.0
    %2792 = vmatpush2.msra.mxu0 %v2721
    %2793 = vmatprep.subr.mxu0 0.0
    %2794 = vmatpush2.msra.mxu0 %v2720
    %2795 = vmatprep.subr.mxu0 0.0
    %2796 = vmatpush2.msra.mxu0 %v2719
    %2797 = vmatprep.subr.mxu0 0.0
    %2798 = vmatpush2.msra.mxu0 %v2718
    %2799 = vmatprep.subr.mxu0 0.0
    %2800 = vmatpush2.msra.mxu0 %v2717
    %2801 = vmatprep.mubr.f32.mxu0 %v2694
    %2802 = vmatmul.mubr.f32.gmra.mxu0 %v2693
    %v2803 = vpop.f32.mrf.mxu0
    %v2804 = vadd.f32 %v2736, %v2803
    %v2805 = vpop.f32.mrf.mxu0
    %2806 = vmatprep.mubr.f32.mxu0 %v2696
    %2807 = vmatmul.mubr.f32.gmra.mxu0 %v2695
    %v2808 = vpop.f32.mrf.mxu0
    %v2809 = vadd.f32 %v2736, %v2808
    %v2810 = vpop.f32.mrf.mxu0
    %2811 = vmatprep.mubr.f32.mxu0 %v2698
    %2812 = vmatmul.mubr.f32.gmra.mxu0 %v2697
    %v2813 = vpop.f32.mrf.mxu0
    %v2814 = vadd.f32 %v2736, %v2813
    %v2815 = vpop.f32.mrf.mxu0
    %2816 = vmatprep.mubr.f32.mxu0 %v2700
    %2817 = vmatmul.mubr.f32.gmra.mxu0 %v2699
    %v2818 = vpop.f32.mrf.mxu0
    %v2819 = vadd.f32 %v2736, %v2818
    %v2820 = vpop.f32.mrf.mxu0
    %2821 = vdwg.mxu0
    %v2822 = vadd.f32 %v2348, %v2804
    %v2823 = vadd.f32 %v2349, %v2809
    %v2824 = vadd.f32 %v2350, %v2814
    %v2825 = vadd.f32 %v2351, %v2819
    %2826 = vadd.xlane.f32.xlu0 %v2822
    %v2827 = vpop.xlane.xlu0 %2826
    %2828 = vadd.xlane.f32.xlu0 %v2823
    %v2829 = vpop.xlane.xlu0 %2828
    %2830 = vadd.xlane.f32.xlu0 %v2824
    %v2831 = vpop.xlane.xlu0 %2830
    %2832 = vadd.xlane.f32.xlu0 %v2825
    %v2833 = vpop.xlane.xlu0 %2832
    %v2834 = vmul.f32 %v2827, %v2299
    %v2835 = vmul.f32 %v2829, %v2299
    %v2836 = vmul.f32 %v2831, %v2299
    %v2837 = vmul.f32 %v2833, %v2299
    %v2838 = vsub.f32 %v2822, %v2834
    %v2839 = vsub.f32 %v2823, %v2835
    %v2840 = vsub.f32 %v2824, %v2836
    %v2841 = vsub.f32 %v2825, %v2837
    %v2842 = vmul.f32 %v2838, %v2838
    %v2843 = vmul.f32 %v2839, %v2839
    %v2844 = vmul.f32 %v2840, %v2840
    %v2845 = vmul.f32 %v2841, %v2841
    %2846 = vadd.xlane.f32.xlu0 %v2842
    %v2847 = vpop.xlane.xlu0 %2846
    %2848 = vadd.xlane.f32.xlu0 %v2843
    %v2849 = vpop.xlane.xlu0 %2848
    %2850 = vadd.xlane.f32.xlu0 %v2844
    %v2851 = vpop.xlane.xlu0 %2850
    %2852 = vadd.xlane.f32.xlu0 %v2845
    %v2853 = vpop.xlane.xlu0 %2852
    %v2854 = vmul.f32 %v2847, %v2299
    %v2855 = vmul.f32 %v2849, %v2299
    %v2856 = vmul.f32 %v2851, %v2299
    %v2857 = vmul.f32 %v2853, %v2299
    %v2858 = vadd.f32 %v2854, 1e-05
    %v2859 = vadd.f32 %v2855, 1e-05
    %v2860 = vadd.f32 %v2856, 1e-05
    %v2861 = vadd.f32 %v2857, 1e-05
    %v2862 = vrsqrt.pop %v2858
    %v2863 = vrsqrt.pop %v2859
    %v2864 = vrsqrt.pop %v2860
    %v2865 = vrsqrt.pop %v2861
    %v2866 = vmul.f32 %v2838, %v2862
    %v2867 = vmul.f32 %v2839, %v2863
    %v2868 = vmul.f32 %v2840, %v2864
    %v2869 = vmul.f32 %v2841, %v2865
    %v2870 = vlaneseq
    %v2871 = vshrl.u32 %v2870, 7
    %v2872 = vsub.s32 5, %v2871
    %v2873 = vrot.slane %v162, %v2872
    %v2874 = vmul.f32 %v2866, %v2873
    %v2875 = vmul.f32 %v2867, %v2873
    %v2876 = vmul.f32 %v2868, %v2873
    %v2877 = vmul.f32 %v2869, %v2873
    %v2878 = vlaneseq
    %v2879 = vshrl.u32 %v2878, 7
    %v2880 = vsub.s32 6, %v2879
    %v2881 = vrot.slane %v162, %v2880
    %v2882 = vadd.f32 %v2874, %v2881
    %v2883 = vadd.f32 %v2875, %v2881
    %v2884 = vadd.f32 %v2876, %v2881
    %v2885 = vadd.f32 %v2877, %v2881
    %v2886 = vadd.f32 %v2882, %v2883
    %v2887 = vrot.slane %v2886, 4
    %v2888 = vadd.f32 %v2886, %v2887
    %v2889 = vrot.slane %v2888, 2
    %v2890 = vadd.f32 %v2888, %v2889
    %v2891 = vrot.slane %v2890, 1
    %v2892 = vadd.f32 %v2890, %v2891
    %v2893 = vadd.f32 %v2884, %v2885
    %v2894 = vrot.slane %v2893, 4
    %v2895 = vadd.f32 %v2893, %v2894
    %v2896 = vrot.slane %v2895, 2
    %v2897 = vadd.f32 %v2895, %v2896
    %v2898 = vrot.slane %v2897, 1
    %v2899 = vadd.f32 %v2897, %v2898
    %v2900 = vrcp.pop 16.0
    %v2901 = vmul.f32 %v2892, %v2900
    %v2902 = vmul.f32 %v2899, %v2900
    %vm2905 = vcmask 1041409
    %v2906 = vsel %vm2905, %v2902, %v2901
    %vm2908 = vcmask 1041408
    %v2909 = vsel %vm2908, %v2906, 0.0
    %2910 = vadd.xlane.f32.xlu0 %v2909
    %v2911 = vpop.xlane.xlu0 %2910
    %v2912 = vmul.f32 %v2911, %v2299
    %v2914 = vrot.slane %v2912, 1
    %v2917 = vsub.f32 %v2901, %v2912
    %v2918 = vsub.f32 %v2902, %v2914
    %v2919 = vmul.f32 %v2917, %v2917
    %v2920 = vmul.f32 %v2918, %v2918
    %v2923 = vrot.slane %v2920, 7
    %v2924 = vsel %vm2905, %v2923, %v2919
    %v2926 = vsel %vm2908, %v2924, 0.0
    %2927 = vadd.xlane.f32.xlu0 %v2926
    %v2928 = vpop.xlane.xlu0 %2927
    %v2929 = vmul.f32 %v2928, %v2299
    %v2930 = vadd.f32 %v2929, 1e-05
    %v2931 = vrsqrt.pop %v2930
    %v2933 = vrot.slane %v2931, 1
    %v2936 = vmul.f32 %v2917, %v2931
    %v2937 = vmul.f32 %v2918, %v2933
    %v2938 = vlaneseq
    %v2939 = vshrl.u32 %v2938, 7
    %v2940 = vsub.s32 7, %v2939
    %v2941 = vrot.slane %v162, %v2940
    %v2942 = vmul.f32 %v2936, %v2941
    %v2943 = vmul.f32 %v2937, %v2941
    %v2944 = vlaneseq
    %v2945 = vshrl.u32 %v2944, 7
    %v2946 = vsub.s32 0, %v2945
    %v2947 = vrot.slane %v163, %v2946
    %v2948 = vadd.f32 %v2942, %v2947
    %v2949 = vadd.f32 %v2943, %v2947
    %v2950 = vld [vmem:[#allocation16] sm:$0xff]
    %v2951 = vld [vmem:[#allocation16 + $0x8] sm:$0xff]
    %v2952 = vld [vmem:[#allocation16 + $0x10] sm:$0xff]
    %v2953 = vld [vmem:[#allocation16 + $0x18] sm:$0xff]
    %v2954 = vld [vmem:[#allocation16 + $0x20] sm:$0xff]
    %v2955 = vld [vmem:[#allocation16 + $0x28] sm:$0xff]
    %v2956 = vld [vmem:[#allocation16 + $0x30] sm:$0xff]
    %v2957 = vld [vmem:[#allocation16 + $0x38] sm:$0xff]
    %v2958 = vld [vmem:[#allocation16 + $0x40] sm:$0xff]
    %v2959 = vld [vmem:[#allocation16 + $0x48] sm:$0xff]
    %v2960 = vld [vmem:[#allocation16 + $0x50] sm:$0xff]
    %v2961 = vld [vmem:[#allocation16 + $0x58] sm:$0xff]
    %v2962 = vld [vmem:[#allocation16 + $0x60] sm:$0xff]
    %v2963 = vld [vmem:[#allocation16 + $0x68] sm:$0xff]
    %v2964 = vld [vmem:[#allocation16 + $0x70] sm:$0xff]
    %v2965 = vld [vmem:[#allocation16 + $0x78] sm:$0xff]
    %v2966 = vld [vmem:[%s10] sm:$0x1]
    %v2968 = vlaneseq
    %v2969 = vshrl.u32 %v2968, 7
    %v2970 = vsub.s32 0, %v2969
    %v2971 = vrot.slane %v2966, %v2970
    %v2975 = vrot.slane %v2949, 7
    %v2976 = vsel %vm2905, %v2975, %v2948
    %2978 = vmatprep.subr.mxu0 0.0
    %2979 = vmatpush1.msra.mxu0 %v2965
    %2980 = vmatprep.subr.mxu0 0.0
    %2981 = vmatpush1.msra.mxu0 %v2964
    %2982 = vmatprep.subr.mxu0 0.0
    %2983 = vmatpush1.msra.mxu0 %v2963
    %2984 = vmatprep.subr.mxu0 0.0
    %2985 = vmatpush1.msra.mxu0 %v2962
    %2986 = vmatprep.subr.mxu0 0.0
    %2987 = vmatpush1.msra.mxu0 %v2961
    %2988 = vmatprep.subr.mxu0 0.0
    %2989 = vmatpush1.msra.mxu0 %v2960
    %2990 = vmatprep.subr.mxu0 0.0
    %2991 = vmatpush1.msra.mxu0 %v2959
    %2992 = vmatprep.subr.mxu0 0.0
    %2993 = vmatpush1.msra.mxu0 %v2958
    %2994 = vmatprep.subr.mxu0 0.0
    %2995 = vmatpush1.msra.mxu0 %v2957
    %2996 = vmatprep.subr.mxu0 0.0
    %2997 = vmatpush1.msra.mxu0 %v2956
    %2998 = vmatprep.subr.mxu0 0.0
    %2999 = vmatpush1.msra.mxu0 %v2955
    %3000 = vmatprep.subr.mxu0 0.0
    %3001 = vmatpush1.msra.mxu0 %v2954
    %3002 = vmatprep.subr.mxu0 0.0
    %3003 = vmatpush1.msra.mxu0 %v2953
    %3004 = vmatprep.subr.mxu0 0.0
    %3005 = vmatpush1.msra.mxu0 %v2952
    %3006 = vmatprep.subr.mxu0 0.0
    %3007 = vmatpush1.msra.mxu0 %v2951
    %3008 = vmatprep.subr.mxu0 0.0
    %3009 = vmatpush1.msra.mxu0 %v2950
    %3010 = vmatprep.subr.mxu0 0.0
    %3011 = vmatpush2.msra.mxu0 0.0
    %3012 = vmatprep.subr.mxu0 0.0
    %3013 = vmatpush2.msra.mxu0 0.0
    %3014 = vmatprep.subr.mxu0 0.0
    %3015 = vmatpush2.msra.mxu0 0.0
    %3016 = vmatprep.subr.mxu0 0.0
    %3017 = vmatpush2.msra.mxu0 0.0
    %3018 = vmatprep.subr.mxu0 0.0
    %3019 = vmatpush2.msra.mxu0 0.0
    %3020 = vmatprep.subr.mxu0 0.0
    %3021 = vmatpush2.msra.mxu0 0.0
    %3022 = vmatprep.subr.mxu0 0.0
    %3023 = vmatpush2.msra.mxu0 0.0
    %3024 = vmatprep.subr.mxu0 0.0
    %3025 = vmatpush2.msra.mxu0 0.0
    %3026 = vmatprep.subr.mxu0 0.0
    %3027 = vmatpush2.msra.mxu0 0.0
    %3028 = vmatprep.subr.mxu0 0.0
    %3029 = vmatpush2.msra.mxu0 0.0
    %3030 = vmatprep.subr.mxu0 0.0
    %3031 = vmatpush2.msra.mxu0 0.0
    %3032 = vmatprep.subr.mxu0 0.0
    %3033 = vmatpush2.msra.mxu0 0.0
    %3034 = vmatprep.subr.mxu0 0.0
    %3035 = vmatpush2.msra.mxu0 0.0
    %3036 = vmatprep.subr.mxu0 0.0
    %3037 = vmatpush2.msra.mxu0 0.0
    %3038 = vmatprep.subr.mxu0 0.0
    %3039 = vmatpush2.msra.mxu0 0.0
    %3040 = vmatprep.subr.mxu0 0.0
    %3041 = vmatpush2.msra.mxu0 0.0
    %3042 = vmatprep.mubr.f32.mxu0 0.0
    %3043 = vmatmul.mubr.f32.gmra.mxu0 %v2976
    %v3044 = vpop.f32.mrf.mxu0
    %v3045 = vadd.f32 %v2971, %v3044
    %v3046 = vpop.f32.mrf.mxu0
    %3047 = vdwg.mxu0
    %3048 = vst [vmem:[#allocation17] sm:$0x3] %v3045
    // Predicated region
    $region86: #{tpu_custom_call.1} parent=1 // pred_check
      _
    $region87: #{tpu_custom_call.1} parent=1 // pred_check_branch
      %3050 = sbr.rel (0) target = $region89
    $region88: #{tpu_custom_call.1} parent=1 // pred_region
      %s3052 = ssub.s32 32, 32
      %3053 = vsyncadd [#allocation4], %s3052
      %s3055 = sshll.u32 [#allocation17], 4
      %s3056 = int_to_ptr.vmem [resolvable:$true] %s3055
      %3058 = dma.vmem_to_hbm [thread:$0]  %s3056, 32, %s12, [#allocation4]
    $region89: #{tpu_custom_call.1} parent=1 // pred_fallthru
      _
    // Predicated region
    $region90: #{tpu_custom_call.1} parent=1 // pred_check
      _
    $region91: #{tpu_custom_call.1} parent=1 // pred_check_branch
      %3060 = sbr.rel (0) target = $region93
    $region92: #{tpu_custom_call.1} parent=1 // pred_region
      %3061 = dma.done [#allocation4], 32
    $region93: #{tpu_custom_call.1} parent=1 // pred_fallthru
      _
    %3062 = vsyncpa [#allocation3], 1
    %3063 = vsyncpa [#allocation6], 1
    %3064 = vsyncpa [#allocation9], 1
    %3065 = vsyncpa [#allocation12], 1
    %3066 = vsyncpa [#allocation15], 1
    %3067 = vsyncpa [#allocation4], 1

</llo_original>
